<compile_context>
chip_gen: v6e
topology: v6e:2x2x1
jax: 0.10.0
libtpu: 0.0.40
codegen_flags: <defaults>
</compile_context>

<pallas_src>
import math

import jax
import jax.numpy as jnp
from jax.experimental import pallas as pl
from jax.experimental.pallas import tpu as pltpu


MODEL_CH = 128               # UNetModel model_channels
TIME_EMB_DIM = 4 * MODEL_CH  # 512
TASK_DIM = 512               # task_token_channels
UNET_IN_CH = 6
CIN_PAD = 8                  # in-channels padded 6 -> 8 (sublane multiple, not 128)
UNET_OUT_CH = 3


def _rup(a, m):
    return ((a + m - 1) // m) * m


# -----------------------------------------------------------------------------
# Kernel 1: fused conditioning MLP (all weights resident in VMEM, single launch)
#   e  = Linear(SiLU(Linear(temb))) + Linear(task_pooled)
#   ss = Linear(SiLU(e))            -> (scale, shift)
# -----------------------------------------------------------------------------
def _cond_kernel(temb_ref, task_ref, w1_ref, b1_ref, w2_ref, b2_ref,
                 tw_ref, tb_ref, ew_ref, eb_ref, ss_ref):
    e = jnp.dot(temb_ref[...], w1_ref[...],
                preferred_element_type=jnp.float32) + b1_ref[...]
    e = e * jax.nn.sigmoid(e)                                   # SiLU
    e = jnp.dot(e, w2_ref[...],
                preferred_element_type=jnp.float32) + b2_ref[...]
    e = e + jnp.dot(task_ref[...], tw_ref[...],
                    preferred_element_type=jnp.float32) + tb_ref[...]
    e = e * jax.nn.sigmoid(e)                                   # SiLU
    ss_ref[...] = jnp.dot(e, ew_ref[...],
                          preferred_element_type=jnp.float32) + eb_ref[...]


def cond_mlp(p, temb, task_pooled):
    """temb: (B,128), task_pooled: (B,512) -> (Bp, 2*128) scale/shift rows."""
    B = temb.shape[0]
    Bp = _rup(max(B, 8), 8)
    temb_p = jnp.pad(temb, ((0, Bp - B), (0, 0)))
    task_p = jnp.pad(task_pooled, ((0, Bp - B), (0, 0)))
    # No grid: every operand is a full-array VMEM block (total ~3 MB).
    return pl.pallas_call(
        _cond_kernel,
        out_shape=jax.ShapeDtypeStruct((Bp, 2 * MODEL_CH), jnp.float32),
    )(temb_p, task_p, p["te_w1"], p["te_b1"], p["te_w2"], p["te_b2"],
      p["task_w"], p["task_b"], p["emb_w"], p["emb_b"])


# -----------------------------------------------------------------------------
# Kernel 2: fused pointwise UNet path, transposed (channels x positions) layout.
#   h   = W_in^T @ x + b_in              (6->128, K kept at 8, not padded to 128)
#   h   = SiLU(h * (1 + scale) + shift)  (FiLM, per-batch)
#   out = W_out^T @ h + b_out            (128->3, lane-dense store)
# -----------------------------------------------------------------------------
def _fused_pointwise_kernel(x_ref, inw_ref, inb_ref, scale_ref, shift_ref,
                            outw_ref, outb_ref, o_ref):
    # x_ref:     (1, CIN_PAD, tp)       bf16
    # inw_ref:   (MODEL_CH, CIN_PAD)    bf16
    # inb_ref:   (MODEL_CH, 1)          f32
    # scale/shift: (1, MODEL_CH, 1)     f32
    # outw_ref:  (UNET_OUT_CH, MODEL_CH) f32
    # outb_ref:  (UNET_OUT_CH, 1)       f32
    # o_ref:     (1, UNET_OUT_CH, tp)   f32   (lane-dense along positions)
    h = jnp.dot(inw_ref[...], x_ref[0],
                preferred_element_type=jnp.float32)             # (128, tp) f32
    h = h + inb_ref[...]
    h = h * (1.0 + scale_ref[0]) + shift_ref[0]                 # FiLM
    h = h * jax.nn.sigmoid(h)                                   # SiLU (f32 / EUP)
    o_ref[0] = jnp.dot(outw_ref[...], h,
                       preferred_element_type=jnp.float32) + outb_ref[...]


def fused_pointwise(p, x8, scale, shift):
    """x8: (B, CIN_PAD, P) bf16; scale/shift: (Bp, 128, 1) f32 -> (B, 3, P) f32."""
    B, _, P = x8.shape
    Pp = _rup(P, 128)
    if Pp != P:
        x8 = jnp.pad(x8, ((0, 0), (0, 0), (0, Pp - P)))
    tp = next(t for t in (1024, 512, 256, 128) if Pp % t == 0)

    out = pl.pallas_call(
        _fused_pointwise_kernel,
        out_shape=jax.ShapeDtypeStruct((B, UNET_OUT_CH, Pp), jnp.float32),
        grid_spec=pltpu.PrefetchScalarGridSpec(
            num_scalar_prefetch=0,
            grid=(B, Pp // tp),
            in_specs=[
                pl.BlockSpec((1, CIN_PAD, tp), lambda b, j: (b, 0, j)),
                pl.BlockSpec((MODEL_CH, CIN_PAD), lambda b, j: (0, 0)),
                pl.BlockSpec((MODEL_CH, 1), lambda b, j: (0, 0)),
                pl.BlockSpec((1, MODEL_CH, 1), lambda b, j: (b, 0, 0)),
                pl.BlockSpec((1, MODEL_CH, 1), lambda b, j: (b, 0, 0)),
                pl.BlockSpec((UNET_OUT_CH, MODEL_CH), lambda b, j: (0, 0)),
                pl.BlockSpec((UNET_OUT_CH, 1), lambda b, j: (0, 0)),
            ],
            out_specs=pl.BlockSpec((1, UNET_OUT_CH, tp), lambda b, j: (b, 0, j)),
        ),
        compiler_params=pltpu.CompilerParams(
            dimension_semantics=("parallel", "parallel")),
    )(x8, p["in_wT"], p["in_b"], scale, shift, p["out_wT"], p["out_b"])
    return out[:, :, :P] if Pp != P else out


# -----------------------------------------------------------------------------
# Parameters / helpers
# -----------------------------------------------------------------------------
def init_params(key):
    ks = jax.random.split(key, 6)

    def lin(k, i, o, scale=0.02):
        kw, kb = jax.random.split(k)
        return (jax.random.normal(kw, (i, o), jnp.float32) * scale,
                jax.random.normal(kb, (1, o), jnp.float32) * 0.01)

    p = {}
    p["te_w1"], p["te_b1"] = lin(ks[0], MODEL_CH, TIME_EMB_DIM)
    p["te_w2"], p["te_b2"] = lin(ks[1], TIME_EMB_DIM, TIME_EMB_DIM)
    p["task_w"], p["task_b"] = lin(ks[2], TASK_DIM, TIME_EMB_DIM)
    p["emb_w"], p["emb_b"] = lin(ks[3], TIME_EMB_DIM, 2 * MODEL_CH)

    in_w, in_b = lin(ks[4], UNET_IN_CH, MODEL_CH)               # (6,128), (1,128)
    # transposed + channel-padded (6->8); stored bf16 (f32 accumulation on MXU)
    p["in_wT"] = jnp.pad(in_w.T, ((0, 0), (0, CIN_PAD - UNET_IN_CH))
                         ).astype(jnp.bfloat16)                 # (128, 8)
    p["in_b"] = in_b.reshape(MODEL_CH, 1)                       # (128, 1)

    out_w, out_b = lin(ks[5], MODEL_CH, UNET_OUT_CH)            # (128,3), (1,3)
    p["out_wT"] = out_w.T                                       # (3, 128)
    p["out_b"] = out_b.reshape(UNET_OUT_CH, 1)                  # (3, 1)
    return p


def timestep_embedding(t, dim, max_period=10000.0):
    half = dim // 2
    freqs = jnp.exp(-math.log(max_period) *
                    jnp.arange(half, dtype=jnp.float32) / half)
    args = t.astype(jnp.float32)[:, None] * freqs[None, :]
    return jnp.concatenate([jnp.cos(args), jnp.sin(args)], axis=-1)


# -----------------------------------------------------------------------------
# UnetMW.forward
# -----------------------------------------------------------------------------
def forward(params, x, t, task_embed=None):
    B, Ctot, H, W = x.shape
    f = Ctot // 3 - 1
    P = f * H * W

    # x_cond = repeat(x[:, -3:], 'b c h w -> b c f h w', f=f)
    x_cond = jnp.broadcast_to(x[:, -3:, None, :, :], (B, 3, f, H, W))
    # x = rearrange(x[:, :-3], 'b (f c) h w -> b c f h w', c=3)
    xf = jnp.transpose(x[:, :-3].reshape(B, f, 3, H, W), (0, 2, 1, 3, 4))
    # cat + pad channels 6 -> 8 (avoids the old 6->128 K-padding), keep it
    # channels-major so the kernel's transposed layout needs NO data transpose.
    zeros = jnp.zeros((B, CIN_PAD - 2 * 3, f, H, W), x.dtype)
    x8 = jnp.concatenate([xf, x_cond, zeros], axis=1)           # (B, 8, f, H, W)
    x8 = x8.reshape(B, CIN_PAD, P).astype(jnp.bfloat16)

    # conditioning path: one fused Pallas launch
    temb = timestep_embedding(t, MODEL_CH)                      # (B, 128)
    if task_embed is None:
        task_pooled = jnp.zeros((B, TASK_DIM), jnp.float32)
    else:
        # TODO(synk): real UNetModel uses per-block cross-attention over task
        # tokens; mean-pool + projection is a reduced stand-in.
        task_pooled = jnp.mean(task_embed, axis=1)              # (B, 512)
    ss = cond_mlp(params, temb, task_pooled)                    # (Bp, 256)
    scale = ss[:, :MODEL_CH].reshape(-1, MODEL_CH, 1)
    shift = ss[:, MODEL_CH:].reshape(-1, MODEL_CH, 1)

    # fused in-conv -> FiLM -> SiLU -> out-conv, activation resident in VMEM
    out = fused_pointwise(params, x8, scale, shift)             # (B, 3, P) f32

    out5 = out.reshape(B, UNET_OUT_CH, f, H, W)
    # rearrange(out, 'b c f h w -> b (f c) h w')
    return jnp.transpose(out5, (0, 2, 1, 3, 4)).reshape(B, f * UNET_OUT_CH, H, W)


if __name__ == "__main__":
    key = jax.random.PRNGKey(0)
    kx, kt, ktask, kparams = jax.random.split(key, 4)

    B, f, H, W = 2, 2, 32, 32
    x = jax.random.normal(kx, (B, 3 * (f + 1), H, W), jnp.float32)
    t = jax.random.randint(kt, (B,), 0, 1000).astype(jnp.float32)
    task_embed = jax.random.normal(ktask, (B, 2, TASK_DIM), jnp.float32)

    params = init_params(kparams)
    fwd = jax.jit(forward)
    out = jax.block_until_ready(fwd(params, x, t, task_embed))

    assert out.shape == (B, 3 * f, H, W), out.shape
    assert out.dtype == jnp.float32
    assert bool(jnp.all(jnp.isfinite(out)))
    print("KERNEL_OK")
</pallas_src>

<mosaic_0001>
module attributes {stable_mosaic.version = 11 : i64} {
  func.func @_cond_kernel(%arg0: memref<8x128xf32, #tpu.memory_space<vmem>>, %arg1: memref<8x512xf32, #tpu.memory_space<vmem>>, %arg2: memref<128x512xf32, #tpu.memory_space<vmem>>, %arg3: memref<1x512xf32, #tpu.memory_space<vmem>>, %arg4: memref<512x512xf32, #tpu.memory_space<vmem>>, %arg5: memref<1x512xf32, #tpu.memory_space<vmem>>, %arg6: memref<512x512xf32, #tpu.memory_space<vmem>>, %arg7: memref<1x512xf32, #tpu.memory_space<vmem>>, %arg8: memref<512x256xf32, #tpu.memory_space<vmem>>, %arg9: memref<1x256xf32, #tpu.memory_space<vmem>>, %arg10: memref<8x256xf32, #tpu.memory_space<vmem>>) attributes {dimension_semantics = [], scalar_prefetch = 0 : i64, scratch_operands = 0 : i64, tpu.core_type = #tpu.core_type<tc>} {
    %c0 = arith.constant 0 : index
    %c0_0 = arith.constant 0 : index
    %0 = vector.load %arg0[%c0, %c0_0] : memref<8x128xf32, #tpu.memory_space<vmem>>, vector<8x128xf32>
    %c0_1 = arith.constant 0 : index
    %c0_2 = arith.constant 0 : index
    %1 = vector.load %arg2[%c0_1, %c0_2] : memref<128x512xf32, #tpu.memory_space<vmem>>, vector<128x512xf32>
    %cst = arith.constant dense<0.000000e+00> : vector<8x512xf32>
    %2 = tpu.matmul %0, %1, %cst {dimension_numbers = #tpu.dot_dimension_numbers<[1], [0], [0], [1], [0, 0, 1, 1], [], []>} : vector<8x128xf32>, vector<128x512xf32>, vector<8x512xf32> -> vector<8x512xf32>
    %c0_3 = arith.constant 0 : index
    %c0_4 = arith.constant 0 : index
    %3 = vector.load %arg3[%c0_3, %c0_4] : memref<1x512xf32, #tpu.memory_space<vmem>>, vector<1x512xf32>
    %4 = vector.broadcast %3 : vector<1x512xf32> to vector<8x512xf32>
    %5 = arith.addf %2, %4 : vector<8x512xf32>
    %6 = arith.negf %5 : vector<8x512xf32>
    %7 = math.exp %6 : vector<8x512xf32>
    %cst_5 = arith.constant 1.000000e+00 : f32
    %8 = vector.broadcast %cst_5 : f32 to vector<8x512xf32>
    %9 = arith.addf %8, %7 : vector<8x512xf32>
    %10 = arith.divf %8, %9 : vector<8x512xf32>
    %11 = arith.mulf %5, %10 : vector<8x512xf32>
    %c0_6 = arith.constant 0 : index
    %c0_7 = arith.constant 0 : index
    %12 = vector.load %arg4[%c0_6, %c0_7] : memref<512x512xf32, #tpu.memory_space<vmem>>, vector<512x512xf32>
    %cst_8 = arith.constant dense<0.000000e+00> : vector<8x512xf32>
    %13 = tpu.matmul %11, %12, %cst_8 {dimension_numbers = #tpu.dot_dimension_numbers<[1], [0], [0], [1], [0, 0, 1, 1], [], []>} : vector<8x512xf32>, vector<512x512xf32>, vector<8x512xf32> -> vector<8x512xf32>
    %c0_9 = arith.constant 0 : index
    %c0_10 = arith.constant 0 : index
    %14 = vector.load %arg5[%c0_9, %c0_10] : memref<1x512xf32, #tpu.memory_space<vmem>>, vector<1x512xf32>
    %15 = vector.broadcast %14 : vector<1x512xf32> to vector<8x512xf32>
    %16 = arith.addf %13, %15 : vector<8x512xf32>
    %c0_11 = arith.constant 0 : index
    %c0_12 = arith.constant 0 : index
    %17 = vector.load %arg1[%c0_11, %c0_12] : memref<8x512xf32, #tpu.memory_space<vmem>>, vector<8x512xf32>
    %c0_13 = arith.constant 0 : index
    %c0_14 = arith.constant 0 : index
    %18 = vector.load %arg6[%c0_13, %c0_14] : memref<512x512xf32, #tpu.memory_space<vmem>>, vector<512x512xf32>
    %cst_15 = arith.constant dense<0.000000e+00> : vector<8x512xf32>
    %19 = tpu.matmul %17, %18, %cst_15 {dimension_numbers = #tpu.dot_dimension_numbers<[1], [0], [0], [1], [0, 0, 1, 1], [], []>} : vector<8x512xf32>, vector<512x512xf32>, vector<8x512xf32> -> vector<8x512xf32>
    %20 = arith.addf %16, %19 : vector<8x512xf32>
    %c0_16 = arith.constant 0 : index
    %c0_17 = arith.constant 0 : index
    %21 = vector.load %arg7[%c0_16, %c0_17] : memref<1x512xf32, #tpu.memory_space<vmem>>, vector<1x512xf32>
    %22 = vector.broadcast %21 : vector<1x512xf32> to vector<8x512xf32>
    %23 = arith.addf %20, %22 : vector<8x512xf32>
    %24 = arith.negf %23 : vector<8x512xf32>
    %25 = math.exp %24 : vector<8x512xf32>
    %cst_18 = arith.constant 1.000000e+00 : f32
    %26 = vector.broadcast %cst_18 : f32 to vector<8x512xf32>
    %27 = arith.addf %26, %25 : vector<8x512xf32>
    %28 = arith.divf %26, %27 : vector<8x512xf32>
    %29 = arith.mulf %23, %28 : vector<8x512xf32>
    %c0_19 = arith.constant 0 : index
    %c0_20 = arith.constant 0 : index
    %30 = vector.load %arg8[%c0_19, %c0_20] : memref<512x256xf32, #tpu.memory_space<vmem>>, vector<512x256xf32>
    %cst_21 = arith.constant dense<0.000000e+00> : vector<8x256xf32>
    %31 = tpu.matmul %29, %30, %cst_21 {dimension_numbers = #tpu.dot_dimension_numbers<[1], [0], [0], [1], [0, 0, 1, 1], [], []>} : vector<8x512xf32>, vector<512x256xf32>, vector<8x256xf32> -> vector<8x256xf32>
    %c0_22 = arith.constant 0 : index
    %c0_23 = arith.constant 0 : index
    %32 = vector.load %arg9[%c0_22, %c0_23] : memref<1x256xf32, #tpu.memory_space<vmem>>, vector<1x256xf32>
    %33 = vector.broadcast %32 : vector<1x256xf32> to vector<8x256xf32>
    %34 = arith.addf %31, %33 : vector<8x256xf32>
    %c0_24 = arith.constant 0 : index
    %c0_25 = arith.constant 0 : index
    %35 = vector.load %arg10[%c0_24, %c0_25] : memref<8x256xf32, #tpu.memory_space<vmem>>, vector<8x256xf32>
    tpu.vector_store %arg10[%c0_24, %c0_25], %34 {strides = array<i32>} : memref<8x256xf32, #tpu.memory_space<vmem>>, vector<8x256xf32>,
    return
  }
}

module attributes {stable_mosaic.version = 11 : i64} {
  func.func @_fused_pointwise_kernel(%arg0: i32, %arg1: i32, %arg2: memref<1x8x1024xbf16, #tpu.memory_space<vmem>>, %arg3: memref<128x8xbf16, #tpu.memory_space<vmem>>, %arg4: memref<128x1xf32, #tpu.memory_space<vmem>>, %arg5: memref<1x128x1xf32, #tpu.memory_space<vmem>>, %arg6: memref<1x128x1xf32, #tpu.memory_space<vmem>>, %arg7: memref<3x128xf32, #tpu.memory_space<vmem>>, %arg8: memref<3x1xf32, #tpu.memory_space<vmem>>, %arg9: memref<1x3x1024xf32, #tpu.memory_space<vmem>>) attributes {dimension_semantics = [#tpu.dimension_semantics<parallel>, #tpu.dimension_semantics<parallel>], iteration_bounds = array<i64: 2, 2>, scalar_prefetch = 0 : i64, scratch_operands = 0 : i64, tpu.core_type = #tpu.core_type<tc>, window_params = [{transform_indices = @transform_0, window_bounds = array<i64: 1, 8, 1024>}, {pipeline_mode = #tpu.pipeline_mode<synchronous>, transform_indices = @transform_1, window_bounds = array<i64: 128, 8>}, {pipeline_mode = #tpu.pipeline_mode<synchronous>, transform_indices = @transform_2, window_bounds = array<i64: 128, 1>}, {transform_indices = @transform_3, window_bounds = array<i64: 1, 128, 1>}, {transform_indices = @transform_4, window_bounds = array<i64: 1, 128, 1>}, {pipeline_mode = #tpu.pipeline_mode<synchronous>, transform_indices = @transform_5, window_bounds = array<i64: 3, 128>}, {pipeline_mode = #tpu.pipeline_mode<synchronous>, transform_indices = @transform_6, window_bounds = array<i64: 3, 1>}, {transform_indices = @transform_7, window_bounds = array<i64: 1, 3, 1024>}]} {
    %c0 = arith.constant 0 : index
    %c0_0 = arith.constant 0 : index
    %0 = vector.load %arg3[%c0, %c0_0] : memref<128x8xbf16, #tpu.memory_space<vmem>>, vector<128x8xbf16>
    %c0_1 = arith.constant 0 : index
    %c0_2 = arith.constant 0 : index
    %c0_3 = arith.constant 0 : index
    %1 = vector.load %arg2[%c0_1, %c0_2, %c0_3] : memref<1x8x1024xbf16, #tpu.memory_space<vmem>>, vector<1x8x1024xbf16>
    %2 = vector.shape_cast %1 : vector<1x8x1024xbf16> to vector<8x1024xbf16>
    %cst = arith.constant dense<0.000000e+00> : vector<128x1024xf32>
    %3 = tpu.matmul %0, %2, %cst {dimension_numbers = #tpu.dot_dimension_numbers<[1], [0], [0], [1], [0, 0, 1, 1], [], []>} : vector<128x8xbf16>, vector<8x1024xbf16>, vector<128x1024xf32> -> vector<128x1024xf32>
    %c0_4 = arith.constant 0 : index
    %c0_5 = arith.constant 0 : index
    %4 = vector.load %arg4[%c0_4, %c0_5] : memref<128x1xf32, #tpu.memory_space<vmem>>, vector<128x1xf32>
    %5 = vector.broadcast %4 : vector<128x1xf32> to vector<128x1024xf32>
    %6 = arith.addf %3, %5 : vector<128x1024xf32>
    %c0_6 = arith.constant 0 : index
    %c0_7 = arith.constant 0 : index
    %c0_8 = arith.constant 0 : index
    %7 = vector.load %arg5[%c0_6, %c0_7, %c0_8] : memref<1x128x1xf32, #tpu.memory_space<vmem>>, vector<1x128x1xf32>
    %8 = vector.shape_cast %7 : vector<1x128x1xf32> to vector<128x1xf32>
    %cst_9 = arith.constant 1.000000e+00 : f32
    %9 = vector.broadcast %cst_9 : f32 to vector<128x1xf32>
    %10 = arith.addf %9, %8 : vector<128x1xf32>
    %11 = vector.broadcast %10 : vector<128x1xf32> to vector<128x1024xf32>
    %12 = arith.mulf %6, %11 : vector<128x1024xf32>
    %c0_10 = arith.constant 0 : index
    %c0_11 = arith.constant 0 : index
    %c0_12 = arith.constant 0 : index
    %13 = vector.load %arg6[%c0_10, %c0_11, %c0_12] : memref<1x128x1xf32, #tpu.memory_space<vmem>>, vector<1x128x1xf32>
    %14 = vector.shape_cast %13 : vector<1x128x1xf32> to vector<128x1xf32>
    %15 = vector.broadcast %14 : vector<128x1xf32> to vector<128x1024xf32>
    %16 = arith.addf %12, %15 : vector<128x1024xf32>
    %17 = arith.negf %16 : vector<128x1024xf32>
    %18 = math.exp %17 : vector<128x1024xf32>
    %cst_13 = arith.constant 1.000000e+00 : f32
    %19 = vector.broadcast %cst_13 : f32 to vector<128x1024xf32>
    %20 = arith.addf %19, %18 : vector<128x1024xf32>
    %21 = arith.divf %19, %20 : vector<128x1024xf32>
    %22 = arith.mulf %16, %21 : vector<128x1024xf32>
    %c0_14 = arith.constant 0 : index
    %c0_15 = arith.constant 0 : index
    %23 = vector.load %arg7[%c0_14, %c0_15] : memref<3x128xf32, #tpu.memory_space<vmem>>, vector<3x128xf32>
    %cst_16 = arith.constant dense<0.000000e+00> : vector<3x1024xf32>
    %24 = tpu.matmul %23, %22, %cst_16 {dimension_numbers = #tpu.dot_dimension_numbers<[1], [0], [0], [1], [0, 0, 1, 1], [], []>} : vector<3x128xf32>, vector<128x1024xf32>, vector<3x1024xf32> -> vector<3x1024xf32>
    %c0_17 = arith.constant 0 : index
    %c0_18 = arith.constant 0 : index
    %25 = vector.load %arg8[%c0_17, %c0_18] : memref<3x1xf32, #tpu.memory_space<vmem>>, vector<3x1xf32>
    %26 = vector.broadcast %25 : vector<3x1xf32> to vector<3x1024xf32>
    %27 = arith.addf %24, %26 : vector<3x1024xf32>
    %c0_19 = arith.constant 0 : index
    %c0_20 = arith.constant 0 : index
    %c0_21 = arith.constant 0 : index
    %28 = vector.load %arg9[%c0_19, %c0_20, %c0_21] : memref<1x3x1024xf32, #tpu.memory_space<vmem>>, vector<1x3x1024xf32>
    %29 = vector.shape_cast %28 : vector<1x3x1024xf32> to vector<3x1024xf32>
    %30 = vector.shape_cast %27 : vector<3x1024xf32> to vector<1x3x1024xf32>
    tpu.vector_store %arg9[%c0_19, %c0_20, %c0_21], %30 {strides = array<i32>} : memref<1x3x1024xf32, #tpu.memory_space<vmem>>, vector<1x3x1024xf32>,
    return
  }
  func.func @transform_0(%arg0: i32, %arg1: i32) -> (i32, i32, i32) {
    %c0_i32 = arith.constant 0 : i32
    %c0_i32_0 = arith.constant 0 : i32
    return %arg0, %c0_i32, %arg1 : i32, i32, i32
  }
  func.func @transform_1(%arg0: i32, %arg1: i32) -> (i32, i32) {
    %c0_i32 = arith.constant 0 : i32
    %c0_i32_0 = arith.constant 0 : i32
    %c0_i32_1 = arith.constant 0 : i32
    return %c0_i32, %c0_i32_0 : i32, i32
  }
  func.func @transform_2(%arg0: i32, %arg1: i32) -> (i32, i32) {
    %c0_i32 = arith.constant 0 : i32
    %c0_i32_0 = arith.constant 0 : i32
    %c0_i32_1 = arith.constant 0 : i32
    return %c0_i32, %c0_i32_0 : i32, i32
  }
  func.func @transform_3(%arg0: i32, %arg1: i32) -> (i32, i32, i32) {
    %c0_i32 = arith.constant 0 : i32
    %c0_i32_0 = arith.constant 0 : i32
    %c0_i32_1 = arith.constant 0 : i32
    return %arg0, %c0_i32, %c0_i32_0 : i32, i32, i32
  }
  func.func @transform_4(%arg0: i32, %arg1: i32) -> (i32, i32, i32) {
    %c0_i32 = arith.constant 0 : i32
    %c0_i32_0 = arith.constant 0 : i32
    %c0_i32_1 = arith.constant 0 : i32
    return %arg0, %c0_i32, %c0_i32_0 : i32, i32, i32
  }
  func.func @transform_5(%arg0: i32, %arg1: i32) -> (i32, i32) {
    %c0_i32 = arith.constant 0 : i32
    %c0_i32_0 = arith.constant 0 : i32
    %c0_i32_1 = arith.constant 0 : i32
    return %c0_i32, %c0_i32_0 : i32, i32
  }
  func.func @transform_6(%arg0: i32, %arg1: i32) -> (i32, i32) {
    %c0_i32 = arith.constant 0 : i32
    %c0_i32_0 = arith.constant 0 : i32
    %c0_i32_1 = arith.constant 0 : i32
    return %c0_i32, %c0_i32_0 : i32, i32
  }
  func.func @transform_7(%arg0: i32, %arg1: i32) -> (i32, i32, i32) {
    %c0_i32 = arith.constant 0 : i32
    %c0_i32_0 = arith.constant 0 : i32
    return %arg0, %c0_i32, %arg1 : i32, i32, i32
  }
}

</mosaic_0001>

<llo_original>
// kernel: forward.3
$region0: #{forward.3}
  #allocation0 [shape = 'u32[]', space=smem, size = 0x4, offset = 0x4, fixed_abs, tag = 'smem constant byte address 0x4 - core index']
  #allocation1 [shape = 'u32[144,128]{1,0:T(1,128)}', space=vmem, size = 0x12000, scoped, tag = 'internal scratch']
  %s0 = inlined_call_operand.vmem [shape: bf16[2,8,2048], index: 0, kind: input, shape index: {}]
  %s1 = inlined_call_operand.vmem [shape: bf16[128,8], index: 1, kind: input, shape index: {}]
  %s2 = inlined_call_operand.vmem [shape: f32[128,1], index: 2, kind: input, shape index: {}]
  %s3 = inlined_call_operand.vmem [shape: f32[8,128,1], index: 3, kind: input, shape index: {}]
  %s4 = inlined_call_operand.vmem [shape: f32[8,128,1], index: 4, kind: input, shape index: {}]
  %s5 = inlined_call_operand.vmem [shape: f32[3,128], index: 5, kind: input, shape index: {}]
  %s6 = inlined_call_operand.vmem [shape: f32[3,1], index: 6, kind: input, shape index: {}]
  %s7 = inlined_call_operand.vmem [shape: f32[2,3,2048], index: 7, kind: output, shape index: {}]
  %s8 = sld [smem:[#allocation0]]
  $region61: #{forward.3} parent=0
    _
  %s10 = ssub.s32 1, %s8
  %s11 = scalar_select 0, %s10, %s8
  loop: start=0, step=1, limit=6
  $region2: #{forward.3} parent=0 // loop_pre_header
    _
  $region3: #{forward.3} parent=0 // loop_header
    %s13 = sphi 0, %s17
    %p14 = scmp.ge.s32.totalorder %s13, 6
    %s20 = sphi 0, %s32
    %s21 = sphi 0, %s28
    %s22 = sphi 0, %s20
    %s23 = sphi 0, %s21
    %s24 = sphi 0, %s22
    %s25 = sphi 0, %s23
    %s37 = sphi 0, %s39
    %s40 = sphi 0, %s37
    %s41 = sphi 0, %s40
    %s57 = sphi 0, %s41
    %s61 = sphi 0, %s61
    %s63 = sphi 0, %s61
    %s64 = sphi 0, %s63
    %s78 = sphi 0, %s64
    %s82 = sphi 0, %s82
    %s84 = sphi 0, %s82
    %s85 = sphi 0, %s84
    %s99 = sphi 0, %s85
    %s105 = sphi 0, %s107
    %s108 = sphi 0, %s105
    %s109 = sphi 0, %s108
    %s125 = sphi 0, %s109
    %s131 = sphi 0, %s133
    %s134 = sphi 0, %s131
    %s135 = sphi 0, %s134
    %s151 = sphi 0, %s135
    %s155 = sphi 0, %s155
    %s157 = sphi 0, %s155
    %s158 = sphi 0, %s157
    %s172 = sphi 0, %s158
    %s176 = sphi 0, %s176
    %s178 = sphi 0, %s176
    %s179 = sphi 0, %s178
    %s193 = sphi 0, %s179
    %s201 = sphi 0, %s203
    %s204 = sphi 0, %s201
    %s205 = sphi 0, %s204
    %s221 = sphi 0, %s205
  $region4: #{forward.3} parent=0 // loop_header_branch
    %16 = sbr.rel (%p14) target = $region8
  $region5: #{forward.3} parent=0 // loop_body
    %s18 = ssub.s32 %s13, 1
    %s19 = ssub.s32 %s13, 2
    %s26 = sadd.s32 1, %s21
    %p27 = scmp.ge.s32.totalorder %s26, 2
    %s28 = scalar_select %p27, 0, %s26
    %s29 = sadd.s32 1, %s20
    %s30 = scalar_select %p27, %s29, %s20
    %p31 = scmp.ge.s32.totalorder %s30, 2
    %s32 = scalar_select %p31, 0, %s30
    %s33 = ssub.s32 %s20, %s32
    %s34 = ssub.s32 %s21, %s28
    %s35 = sor.u32 %s33, %s34
    %p36 = scmp.eq.s32.totalorder %s35, 0
    %s38 = sadd.s32 %s37, 1
    %s39 = scalar_select %p36, %s37, %s38
    %p42 = pneg %p36
    %p43 = scmp.eq.s32.totalorder %s13, 3
    %p44 = por %p42, %p43
    %p45 = scmp.ne.s32.totalorder %s37, %s40
    %p46 = scmp.eq.s32.totalorder %s13, 0
    %p47 = por %p45, %p46
    %p48 = scmp.ne.s32.totalorder %s37, %s40
    %p49 = scmp.eq.s32.totalorder %s18, 3
    %p50 = por %p48, %p49
    %p51 = scmp.ne.s32.totalorder %s40, %s41
    %p52 = scmp.eq.s32.totalorder %s18, 0
    %p53 = por %p51, %p52
    %p54 = scmp.ne.s32.totalorder %s40, %s41
    %p55 = scmp.eq.s32.totalorder %s19, 3
    %p56 = por %p54, %p55
    %p58 = scmp.ne.s32.totalorder %s41, %s57
    %p59 = scmp.eq.s32.totalorder %s19, 0
    %p60 = por %p58, %p59
    %s62 = sadd.s32 %s61, 1
    %p65 = scmp.eq.s32.totalorder %s13, 3
    %p66 = scmp.ne.s32.totalorder %s61, %s63
    %p67 = scmp.eq.s32.totalorder %s13, 0
    %p68 = por %p66, %p67
    %p69 = scmp.ne.s32.totalorder %s61, %s63
    %p70 = scmp.eq.s32.totalorder %s18, 3
    %p71 = por %p69, %p70
    %p72 = scmp.ne.s32.totalorder %s63, %s64
    %p73 = scmp.eq.s32.totalorder %s18, 0
    %p74 = por %p72, %p73
    %p75 = scmp.ne.s32.totalorder %s63, %s64
    %p76 = scmp.eq.s32.totalorder %s19, 3
    %p77 = por %p75, %p76
    %p79 = scmp.ne.s32.totalorder %s64, %s78
    %p80 = scmp.eq.s32.totalorder %s19, 0
    %p81 = por %p79, %p80
    %s83 = sadd.s32 %s82, 1
    %p86 = scmp.eq.s32.totalorder %s13, 3
    %p87 = scmp.ne.s32.totalorder %s82, %s84
    %p88 = scmp.eq.s32.totalorder %s13, 0
    %p89 = por %p87, %p88
    %p90 = scmp.ne.s32.totalorder %s82, %s84
    %p91 = scmp.eq.s32.totalorder %s18, 3
    %p92 = por %p90, %p91
    %p93 = scmp.ne.s32.totalorder %s84, %s85
    %p94 = scmp.eq.s32.totalorder %s18, 0
    %p95 = por %p93, %p94
    %p96 = scmp.ne.s32.totalorder %s84, %s85
    %p97 = scmp.eq.s32.totalorder %s19, 3
    %p98 = por %p96, %p97
    %p100 = scmp.ne.s32.totalorder %s85, %s99
    %p101 = scmp.eq.s32.totalorder %s19, 0
    %p102 = por %p100, %p101
    %s103 = ssub.s32 %s20, %s32
    %p104 = scmp.eq.s32.totalorder %s103, 0
    %s106 = sadd.s32 %s105, 1
    %s107 = scalar_select %p104, %s105, %s106
    %p110 = pneg %p104
    %p111 = scmp.eq.s32.totalorder %s13, 3
    %p112 = por %p110, %p111
    %p113 = scmp.ne.s32.totalorder %s105, %s108
    %p114 = scmp.eq.s32.totalorder %s13, 0
    %p115 = por %p113, %p114
    %p116 = scmp.ne.s32.totalorder %s105, %s108
    %p117 = scmp.eq.s32.totalorder %s18, 3
    %p118 = por %p116, %p117
    %p119 = scmp.ne.s32.totalorder %s108, %s109
    %p120 = scmp.eq.s32.totalorder %s18, 0
    %p121 = por %p119, %p120
    %p122 = scmp.ne.s32.totalorder %s108, %s109
    %p123 = scmp.eq.s32.totalorder %s19, 3
    %p124 = por %p122, %p123
    %p126 = scmp.ne.s32.totalorder %s109, %s125
    %p127 = scmp.eq.s32.totalorder %s19, 0
    %p128 = por %p126, %p127
    %s129 = ssub.s32 %s20, %s32
    %p130 = scmp.eq.s32.totalorder %s129, 0
    %s132 = sadd.s32 %s131, 1
    %s133 = scalar_select %p130, %s131, %s132
    %p136 = pneg %p130
    %p137 = scmp.eq.s32.totalorder %s13, 3
    %p138 = por %p136, %p137
    %p139 = scmp.ne.s32.totalorder %s131, %s134
    %p140 = scmp.eq.s32.totalorder %s13, 0
    %p141 = por %p139, %p140
    %p142 = scmp.ne.s32.totalorder %s131, %s134
    %p143 = scmp.eq.s32.totalorder %s18, 3
    %p144 = por %p142, %p143
    %p145 = scmp.ne.s32.totalorder %s134, %s135
    %p146 = scmp.eq.s32.totalorder %s18, 0
    %p147 = por %p145, %p146
    %p148 = scmp.ne.s32.totalorder %s134, %s135
    %p149 = scmp.eq.s32.totalorder %s19, 3
    %p150 = por %p148, %p149
    %p152 = scmp.ne.s32.totalorder %s135, %s151
    %p153 = scmp.eq.s32.totalorder %s19, 0
    %p154 = por %p152, %p153
    %s156 = sadd.s32 %s155, 1
    %p159 = scmp.eq.s32.totalorder %s13, 3
    %p160 = scmp.ne.s32.totalorder %s155, %s157
    %p161 = scmp.eq.s32.totalorder %s13, 0
    %p162 = por %p160, %p161
    %p163 = scmp.ne.s32.totalorder %s155, %s157
    %p164 = scmp.eq.s32.totalorder %s18, 3
    %p165 = por %p163, %p164
    %p166 = scmp.ne.s32.totalorder %s157, %s158
    %p167 = scmp.eq.s32.totalorder %s18, 0
    %p168 = por %p166, %p167
    %p169 = scmp.ne.s32.totalorder %s157, %s158
    %p170 = scmp.eq.s32.totalorder %s19, 3
    %p171 = por %p169, %p170
    %p173 = scmp.ne.s32.totalorder %s158, %s172
    %p174 = scmp.eq.s32.totalorder %s19, 0
    %p175 = por %p173, %p174
    %s177 = sadd.s32 %s176, 1
    %p180 = scmp.eq.s32.totalorder %s13, 3
    %p181 = scmp.ne.s32.totalorder %s176, %s178
    %p182 = scmp.eq.s32.totalorder %s13, 0
    %p183 = por %p181, %p182
    %p184 = scmp.ne.s32.totalorder %s176, %s178
    %p185 = scmp.eq.s32.totalorder %s18, 3
    %p186 = por %p184, %p185
    %p187 = scmp.ne.s32.totalorder %s178, %s179
    %p188 = scmp.eq.s32.totalorder %s18, 0
    %p189 = por %p187, %p188
    %p190 = scmp.ne.s32.totalorder %s178, %s179
    %p191 = scmp.eq.s32.totalorder %s19, 3
    %p192 = por %p190, %p191
    %p194 = scmp.ne.s32.totalorder %s179, %s193
    %p195 = scmp.eq.s32.totalorder %s19, 0
    %p196 = por %p194, %p195
    %s197 = ssub.s32 %s20, %s32
    %s198 = ssub.s32 %s21, %s28
    %s199 = sor.u32 %s197, %s198
    %p200 = scmp.eq.s32.totalorder %s199, 0
    %s202 = sadd.s32 %s201, 1
    %s203 = scalar_select %p200, %s201, %s202
    %p206 = pneg %p200
    %p207 = scmp.eq.s32.totalorder %s13, 3
    %p208 = por %p206, %p207
    %p209 = scmp.ne.s32.totalorder %s201, %s204
    %p210 = scmp.eq.s32.totalorder %s13, 0
    %p211 = por %p209, %p210
    %p212 = scmp.ne.s32.totalorder %s201, %s204
    %p213 = scmp.eq.s32.totalorder %s18, 3
    %p214 = por %p212, %p213
    %p215 = scmp.ne.s32.totalorder %s204, %s205
    %p216 = scmp.eq.s32.totalorder %s18, 0
    %p217 = por %p215, %p216
    %p218 = scmp.ne.s32.totalorder %s204, %s205
    %p219 = scmp.eq.s32.totalorder %s19, 3
    %p220 = por %p218, %p219
    %p222 = scmp.ne.s32.totalorder %s205, %s221
    %p223 = scmp.eq.s32.totalorder %s19, 0
    %p224 = por %p222, %p223
    %p225 = scmp.le.s32.totalorder 1, %s13
    %p226 = scmp.lt.s32.totalorder %s13, 5
    %p227 = pnand %p225, %p226
    %p228 = pneg %p227
    // Predicated region
    $region9: #{forward.3} parent=5 // pred_check
      _
    $region10: #{forward.3} parent=5 // pred_check_branch
      %230 = sbr.rel (%p227) target = $region12
    $region11: #{forward.3} parent=5 // pred_region
      %s231 = ssub.s32 %s13, 1
      // Predicated region
      $region13: #{forward.3} parent=11 // pred_check
        %p232 = pneg %p74
      $region14: #{forward.3} parent=11 // pred_check_branch
        %234 = sbr.rel (%p232) target = $region16
      $region15: #{forward.3} parent=11 // pred_region
        _
      $region16: #{forward.3} parent=11 // pred_fallthru
        _
      // Predicated region
      $region17: #{forward.3} parent=11 // pred_check
        %p235 = pneg %p95
      $region18: #{forward.3} parent=11 // pred_check_branch
        %237 = sbr.rel (%p235) target = $region20
      $region19: #{forward.3} parent=11 // pred_region
        _
      $region20: #{forward.3} parent=11 // pred_fallthru
        _
      // Predicated region
      $region21: #{forward.3} parent=11 // pred_check
        %p238 = pneg %p168
      $region22: #{forward.3} parent=11 // pred_check_branch
        %240 = sbr.rel (%p238) target = $region24
      $region23: #{forward.3} parent=11 // pred_region
        _
      $region24: #{forward.3} parent=11 // pred_fallthru
        _
      // Predicated region
      $region25: #{forward.3} parent=11 // pred_check
        %p241 = pneg %p189
      $region26: #{forward.3} parent=11 // pred_check_branch
        %243 = sbr.rel (%p241) target = $region28
      $region27: #{forward.3} parent=11 // pred_region
        _
      $region28: #{forward.3} parent=11 // pred_fallthru
        _
    $region12: #{forward.3} parent=5 // pred_fallthru
      _
    %p244 = scmp.lt.s32.totalorder %s13, 4
    // Predicated region
    $region29: #{forward.3} parent=5 // pred_check
      %p245 = pneg %p244
    $region30: #{forward.3} parent=5 // pred_check_branch
      %247 = sbr.rel (%p245) target = $region32
    $region31: #{forward.3} parent=5 // pred_region
      // Predicated region
      $region33: #{forward.3} parent=31 // pred_check
        %p248 = pneg %p47
      $region34: #{forward.3} parent=31 // pred_check_branch
        %250 = sbr.rel (%p248) target = $region36
      $region35: #{forward.3} parent=31 // pred_region
        %s251 = smul.u32 8, %s21
        %p252 = scmp.lt.s32.totalorder %s20, 1
        %s253 = scalar_select %p252, %s20, 1
        %p254 = scmp.lt.s32.totalorder %s251, 15
        %s255 = scalar_select %p254, %s251, 15
        %s256 = smul.addr %s253, 16
        %s257 = sadd.s32 %s255, %s256
        %s258 = smul.addr %s257, 4
        %s259 = scalar_lea.vmem %s0, %s258
        %s260 = smul.u32 8, %s21
      $region36: #{forward.3} parent=31 // pred_fallthru
        _
      // Predicated region
      $region37: #{forward.3} parent=31 // pred_check
        %p261 = pneg %p115
      $region38: #{forward.3} parent=31 // pred_check_branch
        %263 = sbr.rel (%p261) target = $region40
      $region39: #{forward.3} parent=31 // pred_region
        %p264 = scmp.lt.s32.totalorder %s20, 7
        %s265 = scalar_select %p264, %s20, 7
        %s266 = smul.addr %s265, 16
        %s267 = smul.addr %s266, 8
        %s268 = scalar_lea.vmem %s3, %s267
      $region40: #{forward.3} parent=31 // pred_fallthru
        _
      // Predicated region
      $region41: #{forward.3} parent=31 // pred_check
        %p269 = pneg %p141
      $region42: #{forward.3} parent=31 // pred_check_branch
        %271 = sbr.rel (%p269) target = $region44
      $region43: #{forward.3} parent=31 // pred_region
        %p272 = scmp.lt.s32.totalorder %s20, 7
        %s273 = scalar_select %p272, %s20, 7
        %s274 = smul.addr %s273, 16
        %s275 = smul.addr %s274, 8
        %s276 = scalar_lea.vmem %s4, %s275
      $region44: #{forward.3} parent=31 // pred_fallthru
        _
    $region32: #{forward.3} parent=5 // pred_fallthru
      _
    %p277 = scmp.le.s32.totalorder 1, %s13
    %p278 = scmp.lt.s32.totalorder %s13, 5
    %p279 = pnand %p277, %p278
    %p280 = pneg %p279
    // Predicated region
    $region45: #{forward.3} parent=5 // pred_check
      _
    $region46: #{forward.3} parent=5 // pred_check_branch
      %282 = sbr.rel (%p279) target = $region48
    $region47: #{forward.3} parent=5 // pred_region
      %s283 = ssub.s32 %s13, 1
      %s284 = smul.u32 8, %s23
      %p285 = scmp.lt.s32.totalorder %s22, 1
      %s286 = scalar_select %p285, %s22, 1
      %p287 = scmp.lt.s32.totalorder %s284, 15
      %s288 = scalar_select %p287, %s284, 15
      %s289 = smul.addr %s286, 16
      %s290 = sadd.s32 %s288, %s289
      %s291 = smul.addr %s290, 4
      %s292 = scalar_lea.vmem %s0, %s291
      %p293 = pneg %p53
      %p294 = pneg %p50
      %p295 = pneg %p74
      %p296 = pneg %p71
      %p297 = pneg %p95
      %p298 = pneg %p92
      %p299 = scmp.lt.s32.totalorder %s22, 7
      %s300 = scalar_select %p299, %s22, 7
      %s301 = smul.addr %s300, 16
      %s302 = smul.addr %s301, 8
      %s303 = scalar_lea.vmem %s3, %s302
      %p304 = pneg %p121
      %p305 = pneg %p118
      %p306 = scmp.lt.s32.totalorder %s22, 7
      %s307 = scalar_select %p306, %s22, 7
      %s308 = smul.addr %s307, 16
      %s309 = smul.addr %s308, 8
      %s310 = scalar_lea.vmem %s4, %s309
      %p311 = pneg %p147
      %p312 = pneg %p144
      %p313 = pneg %p168
      %p314 = pneg %p165
      %p315 = pneg %p189
      %p316 = pneg %p186
      %p317 = pneg %p217
      %p318 = pneg %p214
      %s319 = smul.u32 8, %s23
      %p320 = scmp.lt.s32.totalorder %s22, 1
      %s321 = scalar_select %p320, %s22, 1
      %p322 = scmp.lt.s32.totalorder %s319, 15
      %s323 = scalar_select %p322, %s319, 15
      %s324 = smul.addr %s321, 16
      %s325 = sadd.s32 %s323, %s324
      %s326 = smul.addr %s325, 4
      %s327 = scalar_lea.vmem %s7, %s326
      %s328 = smul.u32 8, %s23
      %p329 = scmp.lt.s32.totalorder %s22, 1
      %s330 = scalar_select %p329, %s22, 1
      %p331 = scmp.lt.s32.totalorder %s328, 15
      %s332 = scalar_select %p331, %s328, 15
      %s333 = smul.addr %s330, 16
      %s334 = sadd.s32 %s332, %s333
      %s335 = smul.addr %s334, 4
      %s336 = scalar_lea.vmem %s0, %s335
      %s337 = smul.u32 8, %s23
      %p338 = scmp.lt.s32.totalorder %s22, 7
      %s339 = scalar_select %p338, %s22, 7
      %s340 = smul.addr %s339, 16
      %s341 = smul.addr %s340, 8
      %s342 = scalar_lea.vmem %s3, %s341
      %p343 = scmp.lt.s32.totalorder %s22, 7
      %s344 = scalar_select %p343, %s22, 7
      %s345 = smul.addr %s344, 16
      %s346 = smul.addr %s345, 8
      %s347 = scalar_lea.vmem %s4, %s346
      %s348 = smul.u32 8, %s23
      %p349 = scmp.lt.s32.totalorder %s22, 1
      %s350 = scalar_select %p349, %s22, 1
      %p351 = scmp.lt.s32.totalorder %s348, 15
      %s352 = scalar_select %p351, %s348, 15
      %s353 = smul.addr %s350, 16
      %s354 = sadd.s32 %s352, %s353
      %s355 = smul.addr %s354, 4
      %s356 = scalar_lea.vmem %s7, %s355
      %s357 = smul.u32 8, %s23
      %v359 = vld [vmem:[%s1] sm:$0xf]
      %v360 = vld [vmem:[%s1 + $0x4] sm:$0xf]
      %v361 = vld [vmem:[%s1 + $0x8] sm:$0xf]
      %v362 = vld [vmem:[%s1 + $0xc] sm:$0xf]
      %v363 = vld [vmem:[%s1 + $0x10] sm:$0xf]
      %v364 = vld [vmem:[%s1 + $0x14] sm:$0xf]
      %v365 = vld [vmem:[%s1 + $0x18] sm:$0xf]
      %v366 = vld [vmem:[%s1 + $0x1c] sm:$0xf]
      %v367 = vld [vmem:[%s1 + $0x20] sm:$0xf]
      %v368 = vld [vmem:[%s1 + $0x24] sm:$0xf]
      %v369 = vld [vmem:[%s1 + $0x28] sm:$0xf]
      %v370 = vld [vmem:[%s1 + $0x2c] sm:$0xf]
      %v371 = vld [vmem:[%s1 + $0x30] sm:$0xf]
      %v372 = vld [vmem:[%s1 + $0x34] sm:$0xf]
      %v373 = vld [vmem:[%s1 + $0x38] sm:$0xf]
      %v374 = vld [vmem:[%s1 + $0x3c] sm:$0xf]
      %v375 = vld [vmem:[%s336] sm:$0xff]
      %v376 = vld [vmem:[%s336 + $0x8] sm:$0xff]
      %v377 = vld [vmem:[%s336 + $0x10] sm:$0xff]
      %v378 = vld [vmem:[%s336 + $0x18] sm:$0xff]
      %v379 = vld [vmem:[%s2] sm:$0xff]
      %v380 = vld [vmem:[%s2 + $0x8] sm:$0xff]
      %v381 = vld [vmem:[%s2 + $0x10] sm:$0xff]
      %v382 = vld [vmem:[%s2 + $0x18] sm:$0xff]
      %v383 = vld [vmem:[%s2 + $0x20] sm:$0xff]
      %v384 = vld [vmem:[%s2 + $0x28] sm:$0xff]
      %v385 = vld [vmem:[%s2 + $0x30] sm:$0xff]
      %v386 = vld [vmem:[%s2 + $0x38] sm:$0xff]
      %v387 = vld [vmem:[%s2 + $0x40] sm:$0xff]
      %v388 = vld [vmem:[%s2 + $0x48] sm:$0xff]
      %v389 = vld [vmem:[%s2 + $0x50] sm:$0xff]
      %v390 = vld [vmem:[%s2 + $0x58] sm:$0xff]
      %v391 = vld [vmem:[%s2 + $0x60] sm:$0xff]
      %v392 = vld [vmem:[%s2 + $0x68] sm:$0xff]
      %v393 = vld [vmem:[%s2 + $0x70] sm:$0xff]
      %v394 = vld [vmem:[%s2 + $0x78] sm:$0xff]
      %396 = vset.pattern.permute.xlu0 0
      %397 = vperm.xlu0 %396, %v379
      %v398 = vpop.permute.xlu0 %397
      %401 = vset.pattern.permute.xlu0 0
      %402 = vperm.xlu0 %401, %v380
      %v403 = vpop.permute.xlu0 %402
      %406 = vset.pattern.permute.xlu0 0
      %407 = vperm.xlu0 %406, %v381
      %v408 = vpop.permute.xlu0 %407
      %411 = vset.pattern.permute.xlu0 0
      %412 = vperm.xlu0 %411, %v382
      %v413 = vpop.permute.xlu0 %412
      %416 = vset.pattern.permute.xlu0 0
      %417 = vperm.xlu0 %416, %v383
      %v418 = vpop.permute.xlu0 %417
      %421 = vset.pattern.permute.xlu0 0
      %422 = vperm.xlu0 %421, %v384
      %v423 = vpop.permute.xlu0 %422
      %426 = vset.pattern.permute.xlu0 0
      %427 = vperm.xlu0 %426, %v385
      %v428 = vpop.permute.xlu0 %427
      %431 = vset.pattern.permute.xlu0 0
      %432 = vperm.xlu0 %431, %v386
      %v433 = vpop.permute.xlu0 %432
      %436 = vset.pattern.permute.xlu0 0
      %437 = vperm.xlu0 %436, %v387
      %v438 = vpop.permute.xlu0 %437
      %441 = vset.pattern.permute.xlu0 0
      %442 = vperm.xlu0 %441, %v388
      %v443 = vpop.permute.xlu0 %442
      %446 = vset.pattern.permute.xlu0 0
      %447 = vperm.xlu0 %446, %v389
      %v448 = vpop.permute.xlu0 %447
      %451 = vset.pattern.permute.xlu0 0
      %452 = vperm.xlu0 %451, %v390
      %v453 = vpop.permute.xlu0 %452
      %456 = vset.pattern.permute.xlu0 0
      %457 = vperm.xlu0 %456, %v391
      %v458 = vpop.permute.xlu0 %457
      %461 = vset.pattern.permute.xlu0 0
      %462 = vperm.xlu0 %461, %v392
      %v463 = vpop.permute.xlu0 %462
      %466 = vset.pattern.permute.xlu0 0
      %467 = vperm.xlu0 %466, %v393
      %v468 = vpop.permute.xlu0 %467
      %471 = vset.pattern.permute.xlu0 0
      %472 = vperm.xlu0 %471, %v394
      %v473 = vpop.permute.xlu0 %472
      %v491 = vunpack.c.l.b16 %v359
      %v492 = vunpack.c.l.b16 %v360
      %v493 = vunpack.c.l.b16 %v361
      %v494 = vunpack.c.l.b16 %v362
      %v495 = vunpack.c.l.b16 %v363
      %v496 = vunpack.c.l.b16 %v364
      %v497 = vunpack.c.l.b16 %v365
      %v498 = vunpack.c.l.b16 %v366
      %v499 = vunpack.c.l.b16 %v367
      %v500 = vunpack.c.l.b16 %v368
      %v501 = vunpack.c.l.b16 %v369
      %v502 = vunpack.c.l.b16 %v370
      %v503 = vunpack.c.l.b16 %v371
      %v504 = vunpack.c.l.b16 %v372
      %v505 = vunpack.c.l.b16 %v373
      %v506 = vunpack.c.l.b16 %v374
      %v507 = vpack.c.b16 %v492, %v491
      %v508 = vpack.c.b16 %v494, %v493
      %v509 = vpack.c.b16 %v496, %v495
      %v510 = vpack.c.b16 %v498, %v497
      %v511 = vpack.c.b16 %v500, %v499
      %v512 = vpack.c.b16 %v502, %v501
      %v513 = vpack.c.b16 %v504, %v503
      %v514 = vpack.c.b16 %v506, %v505
      %v519 = vunpack.c.l.b16 %v375
      %v520 = vunpack.c.h.b16 %v375
      %v521 = vunpack.c.l.b16 %v376
      %v522 = vunpack.c.h.b16 %v376
      %v523 = vunpack.c.l.b16 %v377
      %v524 = vunpack.c.h.b16 %v377
      %v525 = vunpack.c.l.b16 %v378
      %v526 = vunpack.c.h.b16 %v378
      %v527 = vpack.c.b16 %v519, %v519
      %v528 = vpack.c.b16 %v520, %v520
      %v529 = vpack.c.b16 %v521, %v521
      %v530 = vpack.c.b16 %v522, %v522
      %v531 = vpack.c.b16 %v523, %v523
      %v532 = vpack.c.b16 %v524, %v524
      %v533 = vpack.c.b16 %v525, %v525
      %v534 = vpack.c.b16 %v526, %v526
      %vm535 = vcmask 64512
      %v537 = vsel %vm535, %v507, 0
      %v540 = vsel %vm535, %v508, 0
      %v543 = vsel %vm535, %v509, 0
      %v546 = vsel %vm535, %v510, 0
      %v549 = vsel %vm535, %v511, 0
      %v552 = vsel %vm535, %v512, 0
      %v555 = vsel %vm535, %v513, 0
      %v558 = vsel %vm535, %v514, 0
      %vm560 = vcmask 1043456
      %v562 = vsel %vm560, %v527, 0
      %v565 = vsel %vm560, %v528, 0
      %v568 = vsel %vm560, %v529, 0
      %v571 = vsel %vm560, %v530, 0
      %v574 = vsel %vm560, %v531, 0
      %v577 = vsel %vm560, %v532, 0
      %v580 = vsel %vm560, %v533, 0
      %v583 = vsel %vm560, %v534, 0
      %585 = vmatprep.subr.bf16.mxu0 0
      %586 = vmatpush1.bf16.msra.mxu0 0
      %587 = vmatprep.subr.bf16.mxu0 0
      %588 = vmatpush1.bf16.msra.mxu0 0
      %589 = vmatprep.subr.bf16.mxu0 0
      %590 = vmatpush1.bf16.msra.mxu0 0
      %591 = vmatprep.subr.bf16.mxu0 0
      %592 = vmatpush1.bf16.msra.mxu0 0
      %593 = vmatprep.subr.bf16.mxu0 0
      %594 = vmatpush1.bf16.msra.mxu0 0
      %595 = vmatprep.subr.bf16.mxu0 0
      %596 = vmatpush1.bf16.msra.mxu0 0
      %597 = vmatprep.subr.bf16.mxu0 0
      %598 = vmatpush1.bf16.msra.mxu0 0
      %599 = vmatprep.subr.bf16.mxu0 %v565
      %600 = vmatpush1.bf16.msra.mxu0 %v562
      %601 = vmatprep.subr.bf16.mxu0 0
      %602 = vmatpush2.bf16.msra.mxu0 0
      %603 = vmatprep.subr.bf16.mxu0 0
      %604 = vmatpush2.bf16.msra.mxu0 0
      %605 = vmatprep.subr.bf16.mxu0 0
      %606 = vmatpush2.bf16.msra.mxu0 0
      %607 = vmatprep.subr.bf16.mxu0 0
      %608 = vmatpush2.bf16.msra.mxu0 0
      %609 = vmatprep.subr.bf16.mxu0 0
      %610 = vmatpush2.bf16.msra.mxu0 0
      %611 = vmatprep.subr.bf16.mxu0 0
      %612 = vmatpush2.bf16.msra.mxu0 0
      %613 = vmatprep.subr.bf16.mxu0 0
      %614 = vmatpush2.bf16.msra.mxu0 0
      %615 = vmatprep.subr.bf16.mxu0 0
      %616 = vmatpush2.bf16.msra.mxu0 0
      %617 = vmatprep.mubr.bf16.mxu0 0
      %618 = vmatmul.mubr.bf16.gmra.mxu0 %v537
      %v619 = vpop.f32.mrf.mxu0
      %v620 = vadd.f32 %v398, %v619
      %v621 = vpop.f32.mrf.mxu0
      %v622 = vadd.f32 %v398, %v621
      %v623 = vpop.f32.mrf.mxu0
      %v624 = vadd.f32 %v403, %v623
      %v625 = vpop.f32.mrf.mxu0
      %v626 = vadd.f32 %v403, %v625
      %627 = vmatprep.mubr.bf16.mxu0 0
      %628 = vmatmul.mubr.bf16.gmra.mxu0 %v540
      %v629 = vpop.f32.mrf.mxu0
      %v630 = vadd.f32 %v408, %v629
      %v631 = vpop.f32.mrf.mxu0
      %v632 = vadd.f32 %v408, %v631
      %v633 = vpop.f32.mrf.mxu0
      %v634 = vadd.f32 %v413, %v633
      %v635 = vpop.f32.mrf.mxu0
      %v636 = vadd.f32 %v413, %v635
      %637 = vmatprep.mubr.bf16.mxu0 0
      %638 = vmatmul.mubr.bf16.gmra.mxu0 %v543
      %v639 = vpop.f32.mrf.mxu0
      %v640 = vadd.f32 %v418, %v639
      %v641 = vpop.f32.mrf.mxu0
      %v642 = vadd.f32 %v418, %v641
      %v643 = vpop.f32.mrf.mxu0
      %v644 = vadd.f32 %v423, %v643
      %v645 = vpop.f32.mrf.mxu0
      %v646 = vadd.f32 %v423, %v645
      %647 = vmatprep.mubr.bf16.mxu0 0
      %648 = vmatmul.mubr.bf16.gmra.mxu0 %v546
      %v649 = vpop.f32.mrf.mxu0
      %v650 = vadd.f32 %v428, %v649
      %v651 = vpop.f32.mrf.mxu0
      %v652 = vadd.f32 %v428, %v651
      %v653 = vpop.f32.mrf.mxu0
      %v654 = vadd.f32 %v433, %v653
      %v655 = vpop.f32.mrf.mxu0
      %v656 = vadd.f32 %v433, %v655
      %657 = vmatprep.mubr.bf16.mxu0 0
      %658 = vmatmul.mubr.bf16.gmra.mxu0 %v549
      %v659 = vpop.f32.mrf.mxu0
      %v660 = vadd.f32 %v438, %v659
      %v661 = vpop.f32.mrf.mxu0
      %v662 = vadd.f32 %v438, %v661
      %v663 = vpop.f32.mrf.mxu0
      %v664 = vadd.f32 %v443, %v663
      %v665 = vpop.f32.mrf.mxu0
      %v666 = vadd.f32 %v443, %v665
      %667 = vmatprep.mubr.bf16.mxu0 0
      %668 = vmatmul.mubr.bf16.gmra.mxu0 %v552
      %v669 = vpop.f32.mrf.mxu0
      %v670 = vadd.f32 %v448, %v669
      %v671 = vpop.f32.mrf.mxu0
      %v672 = vadd.f32 %v448, %v671
      %v673 = vpop.f32.mrf.mxu0
      %v674 = vadd.f32 %v453, %v673
      %v675 = vpop.f32.mrf.mxu0
      %v676 = vadd.f32 %v453, %v675
      %677 = vmatprep.mubr.bf16.mxu0 0
      %678 = vmatmul.mubr.bf16.gmra.mxu0 %v555
      %v679 = vpop.f32.mrf.mxu0
      %v680 = vadd.f32 %v458, %v679
      %v681 = vpop.f32.mrf.mxu0
      %v682 = vadd.f32 %v458, %v681
      %v683 = vpop.f32.mrf.mxu0
      %v684 = vadd.f32 %v463, %v683
      %v685 = vpop.f32.mrf.mxu0
      %v686 = vadd.f32 %v463, %v685
      %687 = vmatprep.mubr.bf16.mxu0 0
      %688 = vmatmul.mubr.bf16.gmra.mxu0 %v558
      %v689 = vpop.f32.mrf.mxu0
      %v690 = vadd.f32 %v468, %v689
      %v691 = vpop.f32.mrf.mxu0
      %v692 = vadd.f32 %v468, %v691
      %v693 = vpop.f32.mrf.mxu0
      %v694 = vadd.f32 %v473, %v693
      %v695 = vpop.f32.mrf.mxu0
      %v696 = vadd.f32 %v473, %v695
      %697 = vdwg.mxu0
      %698 = vmatprep.subr.bf16.mxu0 0
      %699 = vmatpush1.bf16.msra.mxu0 0
      %700 = vmatprep.subr.bf16.mxu0 0
      %701 = vmatpush1.bf16.msra.mxu0 0
      %702 = vmatprep.subr.bf16.mxu0 0
      %703 = vmatpush1.bf16.msra.mxu0 0
      %704 = vmatprep.subr.bf16.mxu0 0
      %705 = vmatpush1.bf16.msra.mxu0 0
      %706 = vmatprep.subr.bf16.mxu0 0
      %707 = vmatpush1.bf16.msra.mxu0 0
      %708 = vmatprep.subr.bf16.mxu0 0
      %709 = vmatpush1.bf16.msra.mxu0 0
      %710 = vmatprep.subr.bf16.mxu0 0
      %711 = vmatpush1.bf16.msra.mxu0 0
      %712 = vmatprep.subr.bf16.mxu0 %v571
      %713 = vmatpush1.bf16.msra.mxu0 %v568
      %714 = vmatprep.subr.bf16.mxu0 0
      %715 = vmatpush2.bf16.msra.mxu0 0
      %716 = vmatprep.subr.bf16.mxu0 0
      %717 = vmatpush2.bf16.msra.mxu0 0
      %718 = vmatprep.subr.bf16.mxu0 0
      %719 = vmatpush2.bf16.msra.mxu0 0
      %720 = vmatprep.subr.bf16.mxu0 0
      %721 = vmatpush2.bf16.msra.mxu0 0
      %722 = vmatprep.subr.bf16.mxu0 0
      %723 = vmatpush2.bf16.msra.mxu0 0
      %724 = vmatprep.subr.bf16.mxu0 0
      %725 = vmatpush2.bf16.msra.mxu0 0
      %726 = vmatprep.subr.bf16.mxu0 0
      %727 = vmatpush2.bf16.msra.mxu0 0
      %728 = vmatprep.subr.bf16.mxu0 0
      %729 = vmatpush2.bf16.msra.mxu0 0
      %730 = vmatprep.mubr.bf16.mxu0 0
      %731 = vmatmul.mubr.bf16.gmra.mxu0 %v537
      %v732 = vpop.f32.mrf.mxu0
      %v733 = vadd.f32 %v398, %v732
      %v734 = vpop.f32.mrf.mxu0
      %v735 = vadd.f32 %v398, %v734
      %v736 = vpop.f32.mrf.mxu0
      %v737 = vadd.f32 %v403, %v736
      %v738 = vpop.f32.mrf.mxu0
      %v739 = vadd.f32 %v403, %v738
      %740 = vmatprep.mubr.bf16.mxu0 0
      %741 = vmatmul.mubr.bf16.gmra.mxu0 %v540
      %v742 = vpop.f32.mrf.mxu0
      %v743 = vadd.f32 %v408, %v742
      %v744 = vpop.f32.mrf.mxu0
      %v745 = vadd.f32 %v408, %v744
      %v746 = vpop.f32.mrf.mxu0
      %v747 = vadd.f32 %v413, %v746
      %v748 = vpop.f32.mrf.mxu0
      %v749 = vadd.f32 %v413, %v748
      %750 = vmatprep.mubr.bf16.mxu0 0
      %751 = vmatmul.mubr.bf16.gmra.mxu0 %v543
      %v752 = vpop.f32.mrf.mxu0
      %v753 = vadd.f32 %v418, %v752
      %v754 = vpop.f32.mrf.mxu0
      %v755 = vadd.f32 %v418, %v754
      %v756 = vpop.f32.mrf.mxu0
      %v757 = vadd.f32 %v423, %v756
      %v758 = vpop.f32.mrf.mxu0
      %v759 = vadd.f32 %v423, %v758
      %760 = vmatprep.mubr.bf16.mxu0 0
      %761 = vmatmul.mubr.bf16.gmra.mxu0 %v546
      %v762 = vpop.f32.mrf.mxu0
      %v763 = vadd.f32 %v428, %v762
      %v764 = vpop.f32.mrf.mxu0
      %v765 = vadd.f32 %v428, %v764
      %v766 = vpop.f32.mrf.mxu0
      %v767 = vadd.f32 %v433, %v766
      %v768 = vpop.f32.mrf.mxu0
      %v769 = vadd.f32 %v433, %v768
      %770 = vmatprep.mubr.bf16.mxu0 0
      %771 = vmatmul.mubr.bf16.gmra.mxu0 %v549
      %v772 = vpop.f32.mrf.mxu0
      %v773 = vadd.f32 %v438, %v772
      %v774 = vpop.f32.mrf.mxu0
      %v775 = vadd.f32 %v438, %v774
      %v776 = vpop.f32.mrf.mxu0
      %v777 = vadd.f32 %v443, %v776
      %v778 = vpop.f32.mrf.mxu0
      %v779 = vadd.f32 %v443, %v778
      %780 = vmatprep.mubr.bf16.mxu0 0
      %781 = vmatmul.mubr.bf16.gmra.mxu0 %v552
      %v782 = vpop.f32.mrf.mxu0
      %v783 = vadd.f32 %v448, %v782
      %v784 = vpop.f32.mrf.mxu0
      %v785 = vadd.f32 %v448, %v784
      %v786 = vpop.f32.mrf.mxu0
      %v787 = vadd.f32 %v453, %v786
      %v788 = vpop.f32.mrf.mxu0
      %v789 = vadd.f32 %v453, %v788
      %790 = vmatprep.mubr.bf16.mxu0 0
      %791 = vmatmul.mubr.bf16.gmra.mxu0 %v555
      %v792 = vpop.f32.mrf.mxu0
      %v793 = vadd.f32 %v458, %v792
      %v794 = vpop.f32.mrf.mxu0
      %v795 = vadd.f32 %v458, %v794
      %v796 = vpop.f32.mrf.mxu0
      %v797 = vadd.f32 %v463, %v796
      %v798 = vpop.f32.mrf.mxu0
      %v799 = vadd.f32 %v463, %v798
      %800 = vmatprep.mubr.bf16.mxu0 0
      %801 = vmatmul.mubr.bf16.gmra.mxu0 %v558
      %v802 = vpop.f32.mrf.mxu0
      %v803 = vadd.f32 %v468, %v802
      %v804 = vpop.f32.mrf.mxu0
      %v805 = vadd.f32 %v468, %v804
      %v806 = vpop.f32.mrf.mxu0
      %v807 = vadd.f32 %v473, %v806
      %v808 = vpop.f32.mrf.mxu0
      %v809 = vadd.f32 %v473, %v808
      %810 = vdwg.mxu0
      %811 = vmatprep.subr.bf16.mxu0 0
      %812 = vmatpush1.bf16.msra.mxu0 0
      %813 = vmatprep.subr.bf16.mxu0 0
      %814 = vmatpush1.bf16.msra.mxu0 0
      %815 = vmatprep.subr.bf16.mxu0 0
      %816 = vmatpush1.bf16.msra.mxu0 0
      %817 = vmatprep.subr.bf16.mxu0 0
      %818 = vmatpush1.bf16.msra.mxu0 0
      %819 = vmatprep.subr.bf16.mxu0 0
      %820 = vmatpush1.bf16.msra.mxu0 0
      %821 = vmatprep.subr.bf16.mxu0 0
      %822 = vmatpush1.bf16.msra.mxu0 0
      %823 = vmatprep.subr.bf16.mxu0 0
      %824 = vmatpush1.bf16.msra.mxu0 0
      %825 = vmatprep.subr.bf16.mxu0 %v577
      %826 = vmatpush1.bf16.msra.mxu0 %v574
      %827 = vmatprep.subr.bf16.mxu0 0
      %828 = vmatpush2.bf16.msra.mxu0 0
      %829 = vmatprep.subr.bf16.mxu0 0
      %830 = vmatpush2.bf16.msra.mxu0 0
      %831 = vmatprep.subr.bf16.mxu0 0
      %832 = vmatpush2.bf16.msra.mxu0 0
      %833 = vmatprep.subr.bf16.mxu0 0
      %834 = vmatpush2.bf16.msra.mxu0 0
      %835 = vmatprep.subr.bf16.mxu0 0
      %836 = vmatpush2.bf16.msra.mxu0 0
      %837 = vmatprep.subr.bf16.mxu0 0
      %838 = vmatpush2.bf16.msra.mxu0 0
      %839 = vmatprep.subr.bf16.mxu0 0
      %840 = vmatpush2.bf16.msra.mxu0 0
      %841 = vmatprep.subr.bf16.mxu0 0
      %842 = vmatpush2.bf16.msra.mxu0 0
      %843 = vmatprep.mubr.bf16.mxu0 0
      %844 = vmatmul.mubr.bf16.gmra.mxu0 %v537
      %v845 = vpop.f32.mrf.mxu0
      %v846 = vadd.f32 %v398, %v845
      %v847 = vpop.f32.mrf.mxu0
      %v848 = vadd.f32 %v398, %v847
      %v849 = vpop.f32.mrf.mxu0
      %v850 = vadd.f32 %v403, %v849
      %v851 = vpop.f32.mrf.mxu0
      %v852 = vadd.f32 %v403, %v851
      %853 = vmatprep.mubr.bf16.mxu0 0
      %854 = vmatmul.mubr.bf16.gmra.mxu0 %v540
      %v855 = vpop.f32.mrf.mxu0
      %v856 = vadd.f32 %v408, %v855
      %v857 = vpop.f32.mrf.mxu0
      %v858 = vadd.f32 %v408, %v857
      %v859 = vpop.f32.mrf.mxu0
      %v860 = vadd.f32 %v413, %v859
      %v861 = vpop.f32.mrf.mxu0
      %v862 = vadd.f32 %v413, %v861
      %863 = vmatprep.mubr.bf16.mxu0 0
      %864 = vmatmul.mubr.bf16.gmra.mxu0 %v543
      %v865 = vpop.f32.mrf.mxu0
      %v866 = vadd.f32 %v418, %v865
      %v867 = vpop.f32.mrf.mxu0
      %v868 = vadd.f32 %v418, %v867
      %v869 = vpop.f32.mrf.mxu0
      %v870 = vadd.f32 %v423, %v869
      %v871 = vpop.f32.mrf.mxu0
      %v872 = vadd.f32 %v423, %v871
      %873 = vmatprep.mubr.bf16.mxu0 0
      %874 = vmatmul.mubr.bf16.gmra.mxu0 %v546
      %v875 = vpop.f32.mrf.mxu0
      %v876 = vadd.f32 %v428, %v875
      %v877 = vpop.f32.mrf.mxu0
      %v878 = vadd.f32 %v428, %v877
      %v879 = vpop.f32.mrf.mxu0
      %v880 = vadd.f32 %v433, %v879
      %v881 = vpop.f32.mrf.mxu0
      %v882 = vadd.f32 %v433, %v881
      %883 = vmatprep.mubr.bf16.mxu0 0
      %884 = vmatmul.mubr.bf16.gmra.mxu0 %v549
      %v885 = vpop.f32.mrf.mxu0
      %v886 = vadd.f32 %v438, %v885
      %v887 = vpop.f32.mrf.mxu0
      %v888 = vadd.f32 %v438, %v887
      %v889 = vpop.f32.mrf.mxu0
      %v890 = vadd.f32 %v443, %v889
      %v891 = vpop.f32.mrf.mxu0
      %v892 = vadd.f32 %v443, %v891
      %893 = vmatprep.mubr.bf16.mxu0 0
      %894 = vmatmul.mubr.bf16.gmra.mxu0 %v552
      %v895 = vpop.f32.mrf.mxu0
      %v896 = vadd.f32 %v448, %v895
      %v897 = vpop.f32.mrf.mxu0
      %v898 = vadd.f32 %v448, %v897
      %v899 = vpop.f32.mrf.mxu0
      %v900 = vadd.f32 %v453, %v899
      %v901 = vpop.f32.mrf.mxu0
      %v902 = vadd.f32 %v453, %v901
      %903 = vmatprep.mubr.bf16.mxu0 0
      %904 = vmatmul.mubr.bf16.gmra.mxu0 %v555
      %v905 = vpop.f32.mrf.mxu0
      %v906 = vadd.f32 %v458, %v905
      %v907 = vpop.f32.mrf.mxu0
      %v908 = vadd.f32 %v458, %v907
      %v909 = vpop.f32.mrf.mxu0
      %v910 = vadd.f32 %v463, %v909
      %v911 = vpop.f32.mrf.mxu0
      %v912 = vadd.f32 %v463, %v911
      %913 = vmatprep.mubr.bf16.mxu0 0
      %914 = vmatmul.mubr.bf16.gmra.mxu0 %v558
      %v915 = vpop.f32.mrf.mxu0
      %v916 = vadd.f32 %v468, %v915
      %v917 = vpop.f32.mrf.mxu0
      %v918 = vadd.f32 %v468, %v917
      %v919 = vpop.f32.mrf.mxu0
      %v920 = vadd.f32 %v473, %v919
      %v921 = vpop.f32.mrf.mxu0
      %v922 = vadd.f32 %v473, %v921
      %923 = vdwg.mxu0
      %924 = vmatprep.subr.bf16.mxu0 0
      %925 = vmatpush1.bf16.msra.mxu0 0
      %926 = vmatprep.subr.bf16.mxu0 0
      %927 = vmatpush1.bf16.msra.mxu0 0
      %928 = vmatprep.subr.bf16.mxu0 0
      %929 = vmatpush1.bf16.msra.mxu0 0
      %930 = vmatprep.subr.bf16.mxu0 0
      %931 = vmatpush1.bf16.msra.mxu0 0
      %932 = vmatprep.subr.bf16.mxu0 0
      %933 = vmatpush1.bf16.msra.mxu0 0
      %934 = vmatprep.subr.bf16.mxu0 0
      %935 = vmatpush1.bf16.msra.mxu0 0
      %936 = vmatprep.subr.bf16.mxu0 0
      %937 = vmatpush1.bf16.msra.mxu0 0
      %938 = vmatprep.subr.bf16.mxu0 %v583
      %939 = vmatpush1.bf16.msra.mxu0 %v580
      %940 = vmatprep.subr.bf16.mxu0 0
      %941 = vmatpush2.bf16.msra.mxu0 0
      %942 = vmatprep.subr.bf16.mxu0 0
      %943 = vmatpush2.bf16.msra.mxu0 0
      %944 = vmatprep.subr.bf16.mxu0 0
      %945 = vmatpush2.bf16.msra.mxu0 0
      %946 = vmatprep.subr.bf16.mxu0 0
      %947 = vmatpush2.bf16.msra.mxu0 0
      %948 = vmatprep.subr.bf16.mxu0 0
      %949 = vmatpush2.bf16.msra.mxu0 0
      %950 = vmatprep.subr.bf16.mxu0 0
      %951 = vmatpush2.bf16.msra.mxu0 0
      %952 = vmatprep.subr.bf16.mxu0 0
      %953 = vmatpush2.bf16.msra.mxu0 0
      %954 = vmatprep.subr.bf16.mxu0 0
      %955 = vmatpush2.bf16.msra.mxu0 0
      %956 = vmatprep.mubr.bf16.mxu0 0
      %957 = vmatmul.mubr.bf16.gmra.mxu0 %v537
      %v958 = vpop.f32.mrf.mxu0
      %v959 = vadd.f32 %v398, %v958
      %v960 = vpop.f32.mrf.mxu0
      %v961 = vadd.f32 %v398, %v960
      %v962 = vpop.f32.mrf.mxu0
      %v963 = vadd.f32 %v403, %v962
      %v964 = vpop.f32.mrf.mxu0
      %v965 = vadd.f32 %v403, %v964
      %966 = vmatprep.mubr.bf16.mxu0 0
      %967 = vmatmul.mubr.bf16.gmra.mxu0 %v540
      %v968 = vpop.f32.mrf.mxu0
      %v969 = vadd.f32 %v408, %v968
      %v970 = vpop.f32.mrf.mxu0
      %v971 = vadd.f32 %v408, %v970
      %v972 = vpop.f32.mrf.mxu0
      %v973 = vadd.f32 %v413, %v972
      %v974 = vpop.f32.mrf.mxu0
      %v975 = vadd.f32 %v413, %v974
      %976 = vmatprep.mubr.bf16.mxu0 0
      %977 = vmatmul.mubr.bf16.gmra.mxu0 %v543
      %v978 = vpop.f32.mrf.mxu0
      %v979 = vadd.f32 %v418, %v978
      %v980 = vpop.f32.mrf.mxu0
      %v981 = vadd.f32 %v418, %v980
      %v982 = vpop.f32.mrf.mxu0
      %v983 = vadd.f32 %v423, %v982
      %v984 = vpop.f32.mrf.mxu0
      %v985 = vadd.f32 %v423, %v984
      %986 = vmatprep.mubr.bf16.mxu0 0
      %987 = vmatmul.mubr.bf16.gmra.mxu0 %v546
      %v988 = vpop.f32.mrf.mxu0
      %v989 = vadd.f32 %v428, %v988
      %v990 = vpop.f32.mrf.mxu0
      %v991 = vadd.f32 %v428, %v990
      %v992 = vpop.f32.mrf.mxu0
      %v993 = vadd.f32 %v433, %v992
      %v994 = vpop.f32.mrf.mxu0
      %v995 = vadd.f32 %v433, %v994
      %996 = vmatprep.mubr.bf16.mxu0 0
      %997 = vmatmul.mubr.bf16.gmra.mxu0 %v549
      %v998 = vpop.f32.mrf.mxu0
      %v999 = vadd.f32 %v438, %v998
      %v1000 = vpop.f32.mrf.mxu0
      %v1001 = vadd.f32 %v438, %v1000
      %v1002 = vpop.f32.mrf.mxu0
      %v1003 = vadd.f32 %v443, %v1002
      %v1004 = vpop.f32.mrf.mxu0
      %v1005 = vadd.f32 %v443, %v1004
      %1006 = vmatprep.mubr.bf16.mxu0 0
      %1007 = vmatmul.mubr.bf16.gmra.mxu0 %v552
      %v1008 = vpop.f32.mrf.mxu0
      %v1009 = vadd.f32 %v448, %v1008
      %v1010 = vpop.f32.mrf.mxu0
      %v1011 = vadd.f32 %v448, %v1010
      %v1012 = vpop.f32.mrf.mxu0
      %v1013 = vadd.f32 %v453, %v1012
      %v1014 = vpop.f32.mrf.mxu0
      %v1015 = vadd.f32 %v453, %v1014
      %1016 = vmatprep.mubr.bf16.mxu0 0
      %1017 = vmatmul.mubr.bf16.gmra.mxu0 %v555
      %v1018 = vpop.f32.mrf.mxu0
      %v1019 = vadd.f32 %v458, %v1018
      %v1020 = vpop.f32.mrf.mxu0
      %v1021 = vadd.f32 %v458, %v1020
      %v1022 = vpop.f32.mrf.mxu0
      %v1023 = vadd.f32 %v463, %v1022
      %v1024 = vpop.f32.mrf.mxu0
      %v1025 = vadd.f32 %v463, %v1024
      %1026 = vmatprep.mubr.bf16.mxu0 0
      %1027 = vmatmul.mubr.bf16.gmra.mxu0 %v558
      %v1028 = vpop.f32.mrf.mxu0
      %v1029 = vadd.f32 %v468, %v1028
      %v1030 = vpop.f32.mrf.mxu0
      %v1031 = vadd.f32 %v468, %v1030
      %v1032 = vpop.f32.mrf.mxu0
      %v1033 = vadd.f32 %v473, %v1032
      %v1034 = vpop.f32.mrf.mxu0
      %v1035 = vadd.f32 %v473, %v1034
      %1036 = vdwg.mxu0
      %v1037 = vld [vmem:[%s342] sm:$0xff]
      %v1038 = vld [vmem:[%s342 + $0x8] sm:$0xff]
      %v1039 = vld [vmem:[%s342 + $0x10] sm:$0xff]
      %v1040 = vld [vmem:[%s342 + $0x18] sm:$0xff]
      %v1041 = vld [vmem:[%s342 + $0x20] sm:$0xff]
      %v1042 = vld [vmem:[%s342 + $0x28] sm:$0xff]
      %v1043 = vld [vmem:[%s342 + $0x30] sm:$0xff]
      %v1044 = vld [vmem:[%s342 + $0x38] sm:$0xff]
      %v1045 = vld [vmem:[%s342 + $0x40] sm:$0xff]
      %v1046 = vld [vmem:[%s342 + $0x48] sm:$0xff]
      %v1047 = vld [vmem:[%s342 + $0x50] sm:$0xff]
      %v1048 = vld [vmem:[%s342 + $0x58] sm:$0xff]
      %v1049 = vld [vmem:[%s342 + $0x60] sm:$0xff]
      %v1050 = vld [vmem:[%s342 + $0x68] sm:$0xff]
      %v1051 = vld [vmem:[%s342 + $0x70] sm:$0xff]
      %v1052 = vld [vmem:[%s342 + $0x78] sm:$0xff]
      %v1053 = vadd.f32 %v1037, 1.0
      %v1054 = vadd.f32 %v1038, 1.0
      %v1055 = vadd.f32 %v1039, 1.0
      %v1056 = vadd.f32 %v1040, 1.0
      %v1057 = vadd.f32 %v1041, 1.0
      %v1058 = vadd.f32 %v1042, 1.0
      %v1059 = vadd.f32 %v1043, 1.0
      %v1060 = vadd.f32 %v1044, 1.0
      %v1061 = vadd.f32 %v1045, 1.0
      %v1062 = vadd.f32 %v1046, 1.0
      %v1063 = vadd.f32 %v1047, 1.0
      %v1064 = vadd.f32 %v1048, 1.0
      %v1065 = vadd.f32 %v1049, 1.0
      %v1066 = vadd.f32 %v1050, 1.0
      %v1067 = vadd.f32 %v1051, 1.0
      %v1068 = vadd.f32 %v1052, 1.0
      %1070 = vset.pattern.permute.xlu0 0
      %1071 = vperm.xlu0 %1070, %v1053
      %v1072 = vpop.permute.xlu0 %1071
      %1075 = vset.pattern.permute.xlu0 0
      %1076 = vperm.xlu0 %1075, %v1054
      %v1077 = vpop.permute.xlu0 %1076
      %1080 = vset.pattern.permute.xlu0 0
      %1081 = vperm.xlu0 %1080, %v1055
      %v1082 = vpop.permute.xlu0 %1081
      %1085 = vset.pattern.permute.xlu0 0
      %1086 = vperm.xlu0 %1085, %v1056
      %v1087 = vpop.permute.xlu0 %1086
      %1090 = vset.pattern.permute.xlu0 0
      %1091 = vperm.xlu0 %1090, %v1057
      %v1092 = vpop.permute.xlu0 %1091
      %1095 = vset.pattern.permute.xlu0 0
      %1096 = vperm.xlu0 %1095, %v1058
      %v1097 = vpop.permute.xlu0 %1096
      %1100 = vset.pattern.permute.xlu0 0
      %1101 = vperm.xlu0 %1100, %v1059
      %v1102 = vpop.permute.xlu0 %1101
      %1105 = vset.pattern.permute.xlu0 0
      %1106 = vperm.xlu0 %1105, %v1060
      %v1107 = vpop.permute.xlu0 %1106
      %1110 = vset.pattern.permute.xlu0 0
      %1111 = vperm.xlu0 %1110, %v1061
      %v1112 = vpop.permute.xlu0 %1111
      %1115 = vset.pattern.permute.xlu0 0
      %1116 = vperm.xlu0 %1115, %v1062
      %v1117 = vpop.permute.xlu0 %1116
      %1120 = vset.pattern.permute.xlu0 0
      %1121 = vperm.xlu0 %1120, %v1063
      %v1122 = vpop.permute.xlu0 %1121
      %1125 = vset.pattern.permute.xlu0 0
      %1126 = vperm.xlu0 %1125, %v1064
      %v1127 = vpop.permute.xlu0 %1126
      %1130 = vset.pattern.permute.xlu0 0
      %1131 = vperm.xlu0 %1130, %v1065
      %v1132 = vpop.permute.xlu0 %1131
      %1135 = vset.pattern.permute.xlu0 0
      %1136 = vperm.xlu0 %1135, %v1066
      %v1137 = vpop.permute.xlu0 %1136
      %1140 = vset.pattern.permute.xlu0 0
      %1141 = vperm.xlu0 %1140, %v1067
      %v1142 = vpop.permute.xlu0 %1141
      %1145 = vset.pattern.permute.xlu0 0
      %1146 = vperm.xlu0 %1145, %v1068
      %v1147 = vpop.permute.xlu0 %1146
      %v1149 = vmul.f32 %v620, %v1072
      %v1150 = vmul.f32 %v622, %v1072
      %v1151 = vmul.f32 %v733, %v1072
      %v1152 = vmul.f32 %v735, %v1072
      %v1153 = vmul.f32 %v846, %v1072
      %v1154 = vmul.f32 %v848, %v1072
      %v1155 = vmul.f32 %v959, %v1072
      %v1156 = vmul.f32 %v961, %v1072
      %v1157 = vmul.f32 %v624, %v1077
      %v1158 = vmul.f32 %v626, %v1077
      %v1159 = vmul.f32 %v737, %v1077
      %v1160 = vmul.f32 %v739, %v1077
      %v1161 = vmul.f32 %v850, %v1077
      %v1162 = vmul.f32 %v852, %v1077
      %v1163 = vmul.f32 %v963, %v1077
      %v1164 = vmul.f32 %v965, %v1077
      %v1165 = vmul.f32 %v630, %v1082
      %v1166 = vmul.f32 %v632, %v1082
      %v1167 = vmul.f32 %v743, %v1082
      %v1168 = vmul.f32 %v745, %v1082
      %v1169 = vmul.f32 %v856, %v1082
      %v1170 = vmul.f32 %v858, %v1082
      %v1171 = vmul.f32 %v969, %v1082
      %v1172 = vmul.f32 %v971, %v1082
      %v1173 = vmul.f32 %v634, %v1087
      %v1174 = vmul.f32 %v636, %v1087
      %v1175 = vmul.f32 %v747, %v1087
      %v1176 = vmul.f32 %v749, %v1087
      %v1177 = vmul.f32 %v860, %v1087
      %v1178 = vmul.f32 %v862, %v1087
      %v1179 = vmul.f32 %v973, %v1087
      %v1180 = vmul.f32 %v975, %v1087
      %v1181 = vmul.f32 %v640, %v1092
      %v1182 = vmul.f32 %v642, %v1092
      %v1183 = vmul.f32 %v753, %v1092
      %v1184 = vmul.f32 %v755, %v1092
      %v1185 = vmul.f32 %v866, %v1092
      %v1186 = vmul.f32 %v868, %v1092
      %v1187 = vmul.f32 %v979, %v1092
      %v1188 = vmul.f32 %v981, %v1092
      %v1189 = vmul.f32 %v644, %v1097
      %v1190 = vmul.f32 %v646, %v1097
      %v1191 = vmul.f32 %v757, %v1097
      %v1192 = vmul.f32 %v759, %v1097
      %v1193 = vmul.f32 %v870, %v1097
      %v1194 = vmul.f32 %v872, %v1097
      %v1195 = vmul.f32 %v983, %v1097
      %v1196 = vmul.f32 %v985, %v1097
      %v1197 = vmul.f32 %v650, %v1102
      %v1198 = vmul.f32 %v652, %v1102
      %v1199 = vmul.f32 %v763, %v1102
      %v1200 = vmul.f32 %v765, %v1102
      %v1201 = vmul.f32 %v876, %v1102
      %v1202 = vmul.f32 %v878, %v1102
      %v1203 = vmul.f32 %v989, %v1102
      %v1204 = vmul.f32 %v991, %v1102
      %v1205 = vmul.f32 %v654, %v1107
      %v1206 = vmul.f32 %v656, %v1107
      %v1207 = vmul.f32 %v767, %v1107
      %v1208 = vmul.f32 %v769, %v1107
      %v1209 = vmul.f32 %v880, %v1107
      %v1210 = vmul.f32 %v882, %v1107
      %v1211 = vmul.f32 %v993, %v1107
      %v1212 = vmul.f32 %v995, %v1107
      %v1213 = vmul.f32 %v660, %v1112
      %v1214 = vmul.f32 %v662, %v1112
      %v1215 = vmul.f32 %v773, %v1112
      %v1216 = vmul.f32 %v775, %v1112
      %v1217 = vmul.f32 %v886, %v1112
      %v1218 = vmul.f32 %v888, %v1112
      %v1219 = vmul.f32 %v999, %v1112
      %v1220 = vmul.f32 %v1001, %v1112
      %v1221 = vmul.f32 %v664, %v1117
      %v1222 = vmul.f32 %v666, %v1117
      %v1223 = vmul.f32 %v777, %v1117
      %v1224 = vmul.f32 %v779, %v1117
      %v1225 = vmul.f32 %v890, %v1117
      %v1226 = vmul.f32 %v892, %v1117
      %v1227 = vmul.f32 %v1003, %v1117
      %v1228 = vmul.f32 %v1005, %v1117
      %v1229 = vmul.f32 %v670, %v1122
      %v1230 = vmul.f32 %v672, %v1122
      %v1231 = vmul.f32 %v783, %v1122
      %v1232 = vmul.f32 %v785, %v1122
      %v1233 = vmul.f32 %v896, %v1122
      %v1234 = vmul.f32 %v898, %v1122
      %v1235 = vmul.f32 %v1009, %v1122
      %v1236 = vmul.f32 %v1011, %v1122
      %v1237 = vmul.f32 %v674, %v1127
      %v1238 = vmul.f32 %v676, %v1127
      %v1239 = vmul.f32 %v787, %v1127
      %v1240 = vmul.f32 %v789, %v1127
      %v1241 = vmul.f32 %v900, %v1127
      %v1242 = vmul.f32 %v902, %v1127
      %v1243 = vmul.f32 %v1013, %v1127
      %v1244 = vmul.f32 %v1015, %v1127
      %v1245 = vmul.f32 %v680, %v1132
      %v1246 = vmul.f32 %v682, %v1132
      %v1247 = vmul.f32 %v793, %v1132
      %v1248 = vmul.f32 %v795, %v1132
      %v1249 = vmul.f32 %v906, %v1132
      %v1250 = vmul.f32 %v908, %v1132
      %v1251 = vmul.f32 %v1019, %v1132
      %v1252 = vmul.f32 %v1021, %v1132
      %v1253 = vmul.f32 %v684, %v1137
      %v1254 = vmul.f32 %v686, %v1137
      %v1255 = vmul.f32 %v797, %v1137
      %v1256 = vmul.f32 %v799, %v1137
      %v1257 = vmul.f32 %v910, %v1137
      %v1258 = vmul.f32 %v912, %v1137
      %v1259 = vmul.f32 %v1023, %v1137
      %v1260 = vmul.f32 %v1025, %v1137
      %v1261 = vmul.f32 %v690, %v1142
      %v1262 = vmul.f32 %v692, %v1142
      %v1263 = vmul.f32 %v803, %v1142
      %v1264 = vmul.f32 %v805, %v1142
      %v1265 = vmul.f32 %v916, %v1142
      %v1266 = vmul.f32 %v918, %v1142
      %v1267 = vmul.f32 %v1029, %v1142
      %v1268 = vmul.f32 %v1031, %v1142
      %v1269 = vmul.f32 %v694, %v1147
      %v1270 = vmul.f32 %v696, %v1147
      %v1271 = vmul.f32 %v807, %v1147
      %v1272 = vmul.f32 %v809, %v1147
      %v1273 = vmul.f32 %v920, %v1147
      %v1274 = vmul.f32 %v922, %v1147
      %v1275 = vmul.f32 %v1033, %v1147
      %v1276 = vmul.f32 %v1035, %v1147
      %v1277 = vld [vmem:[%s347] sm:$0xff]
      %v1278 = vld [vmem:[%s347 + $0x8] sm:$0xff]
      %v1279 = vld [vmem:[%s347 + $0x10] sm:$0xff]
      %v1280 = vld [vmem:[%s347 + $0x18] sm:$0xff]
      %v1281 = vld [vmem:[%s347 + $0x20] sm:$0xff]
      %v1282 = vld [vmem:[%s347 + $0x28] sm:$0xff]
      %v1283 = vld [vmem:[%s347 + $0x30] sm:$0xff]
      %v1284 = vld [vmem:[%s347 + $0x38] sm:$0xff]
      %v1285 = vld [vmem:[%s347 + $0x40] sm:$0xff]
      %v1286 = vld [vmem:[%s347 + $0x48] sm:$0xff]
      %v1287 = vld [vmem:[%s347 + $0x50] sm:$0xff]
      %v1288 = vld [vmem:[%s347 + $0x58] sm:$0xff]
      %v1289 = vld [vmem:[%s347 + $0x60] sm:$0xff]
      %v1290 = vld [vmem:[%s347 + $0x68] sm:$0xff]
      %v1291 = vld [vmem:[%s347 + $0x70] sm:$0xff]
      %v1292 = vld [vmem:[%s347 + $0x78] sm:$0xff]
      %1294 = vset.pattern.permute.xlu0 0
      %1295 = vperm.xlu0 %1294, %v1277
      %v1296 = vpop.permute.xlu0 %1295
      %1299 = vset.pattern.permute.xlu0 0
      %1300 = vperm.xlu0 %1299, %v1278
      %v1301 = vpop.permute.xlu0 %1300
      %1304 = vset.pattern.permute.xlu0 0
      %1305 = vperm.xlu0 %1304, %v1279
      %v1306 = vpop.permute.xlu0 %1305
      %1309 = vset.pattern.permute.xlu0 0
      %1310 = vperm.xlu0 %1309, %v1280
      %v1311 = vpop.permute.xlu0 %1310
      %1314 = vset.pattern.permute.xlu0 0
      %1315 = vperm.xlu0 %1314, %v1281
      %v1316 = vpop.permute.xlu0 %1315
      %1319 = vset.pattern.permute.xlu0 0
      %1320 = vperm.xlu0 %1319, %v1282
      %v1321 = vpop.permute.xlu0 %1320
      %1324 = vset.pattern.permute.xlu0 0
      %1325 = vperm.xlu0 %1324, %v1283
      %v1326 = vpop.permute.xlu0 %1325
      %1329 = vset.pattern.permute.xlu0 0
      %1330 = vperm.xlu0 %1329, %v1284
      %v1331 = vpop.permute.xlu0 %1330
      %1334 = vset.pattern.permute.xlu0 0
      %1335 = vperm.xlu0 %1334, %v1285
      %v1336 = vpop.permute.xlu0 %1335
      %1339 = vset.pattern.permute.xlu0 0
      %1340 = vperm.xlu0 %1339, %v1286
      %v1341 = vpop.permute.xlu0 %1340
      %1344 = vset.pattern.permute.xlu0 0
      %1345 = vperm.xlu0 %1344, %v1287
      %v1346 = vpop.permute.xlu0 %1345
      %1349 = vset.pattern.permute.xlu0 0
      %1350 = vperm.xlu0 %1349, %v1288
      %v1351 = vpop.permute.xlu0 %1350
      %1354 = vset.pattern.permute.xlu0 0
      %1355 = vperm.xlu0 %1354, %v1289
      %v1356 = vpop.permute.xlu0 %1355
      %1359 = vset.pattern.permute.xlu0 0
      %1360 = vperm.xlu0 %1359, %v1290
      %v1361 = vpop.permute.xlu0 %1360
      %1364 = vset.pattern.permute.xlu0 0
      %1365 = vperm.xlu0 %1364, %v1291
      %v1366 = vpop.permute.xlu0 %1365
      %1369 = vset.pattern.permute.xlu0 0
      %1370 = vperm.xlu0 %1369, %v1292
      %v1371 = vpop.permute.xlu0 %1370
      %v1373 = vadd.f32 %v1149, %v1296
      %v1374 = vadd.f32 %v1150, %v1296
      %v1375 = vadd.f32 %v1151, %v1296
      %v1376 = vadd.f32 %v1152, %v1296
      %v1377 = vadd.f32 %v1153, %v1296
      %v1378 = vadd.f32 %v1154, %v1296
      %v1379 = vadd.f32 %v1155, %v1296
      %v1380 = vadd.f32 %v1156, %v1296
      %v1381 = vadd.f32 %v1157, %v1301
      %v1382 = vadd.f32 %v1158, %v1301
      %v1383 = vadd.f32 %v1159, %v1301
      %v1384 = vadd.f32 %v1160, %v1301
      %v1385 = vadd.f32 %v1161, %v1301
      %v1386 = vadd.f32 %v1162, %v1301
      %v1387 = vadd.f32 %v1163, %v1301
      %v1388 = vadd.f32 %v1164, %v1301
      %v1389 = vadd.f32 %v1165, %v1306
      %v1390 = vadd.f32 %v1166, %v1306
      %v1391 = vadd.f32 %v1167, %v1306
      %v1392 = vadd.f32 %v1168, %v1306
      %v1393 = vadd.f32 %v1169, %v1306
      %v1394 = vadd.f32 %v1170, %v1306
      %v1395 = vadd.f32 %v1171, %v1306
      %v1396 = vadd.f32 %v1172, %v1306
      %v1397 = vadd.f32 %v1173, %v1311
      %v1398 = vadd.f32 %v1174, %v1311
      %v1399 = vadd.f32 %v1175, %v1311
      %v1400 = vadd.f32 %v1176, %v1311
      %v1401 = vadd.f32 %v1177, %v1311
      %v1402 = vadd.f32 %v1178, %v1311
      %v1403 = vadd.f32 %v1179, %v1311
      %v1404 = vadd.f32 %v1180, %v1311
      %v1405 = vadd.f32 %v1181, %v1316
      %v1406 = vadd.f32 %v1182, %v1316
      %v1407 = vadd.f32 %v1183, %v1316
      %v1408 = vadd.f32 %v1184, %v1316
      %v1409 = vadd.f32 %v1185, %v1316
      %v1410 = vadd.f32 %v1186, %v1316
      %v1411 = vadd.f32 %v1187, %v1316
      %v1412 = vadd.f32 %v1188, %v1316
      %v1413 = vadd.f32 %v1189, %v1321
      %v1414 = vadd.f32 %v1190, %v1321
      %v1415 = vadd.f32 %v1191, %v1321
      %v1416 = vadd.f32 %v1192, %v1321
      %v1417 = vadd.f32 %v1193, %v1321
      %v1418 = vadd.f32 %v1194, %v1321
      %v1419 = vadd.f32 %v1195, %v1321
      %v1420 = vadd.f32 %v1196, %v1321
      %v1421 = vadd.f32 %v1197, %v1326
      %v1422 = vadd.f32 %v1198, %v1326
      %v1423 = vadd.f32 %v1199, %v1326
      %v1424 = vadd.f32 %v1200, %v1326
      %v1425 = vadd.f32 %v1201, %v1326
      %v1426 = vadd.f32 %v1202, %v1326
      %v1427 = vadd.f32 %v1203, %v1326
      %v1428 = vadd.f32 %v1204, %v1326
      %v1429 = vadd.f32 %v1205, %v1331
      %v1430 = vadd.f32 %v1206, %v1331
      %v1431 = vadd.f32 %v1207, %v1331
      %v1432 = vadd.f32 %v1208, %v1331
      %v1433 = vadd.f32 %v1209, %v1331
      %v1434 = vadd.f32 %v1210, %v1331
      %v1435 = vadd.f32 %v1211, %v1331
      %v1436 = vadd.f32 %v1212, %v1331
      %v1437 = vadd.f32 %v1213, %v1336
      %v1438 = vadd.f32 %v1214, %v1336
      %v1439 = vadd.f32 %v1215, %v1336
      %v1440 = vadd.f32 %v1216, %v1336
      %v1441 = vadd.f32 %v1217, %v1336
      %v1442 = vadd.f32 %v1218, %v1336
      %v1443 = vadd.f32 %v1219, %v1336
      %v1444 = vadd.f32 %v1220, %v1336
      %v1445 = vadd.f32 %v1221, %v1341
      %v1446 = vadd.f32 %v1222, %v1341
      %v1447 = vadd.f32 %v1223, %v1341
      %v1448 = vadd.f32 %v1224, %v1341
      %v1449 = vadd.f32 %v1225, %v1341
      %v1450 = vadd.f32 %v1226, %v1341
      %v1451 = vadd.f32 %v1227, %v1341
      %v1452 = vadd.f32 %v1228, %v1341
      %v1453 = vadd.f32 %v1229, %v1346
      %v1454 = vadd.f32 %v1230, %v1346
      %v1455 = vadd.f32 %v1231, %v1346
      %v1456 = vadd.f32 %v1232, %v1346
      %v1457 = vadd.f32 %v1233, %v1346
      %v1458 = vadd.f32 %v1234, %v1346
      %v1459 = vadd.f32 %v1235, %v1346
      %v1460 = vadd.f32 %v1236, %v1346
      %v1461 = vadd.f32 %v1237, %v1351
      %v1462 = vadd.f32 %v1238, %v1351
      %v1463 = vadd.f32 %v1239, %v1351
      %v1464 = vadd.f32 %v1240, %v1351
      %v1465 = vadd.f32 %v1241, %v1351
      %v1466 = vadd.f32 %v1242, %v1351
      %v1467 = vadd.f32 %v1243, %v1351
      %v1468 = vadd.f32 %v1244, %v1351
      %v1469 = vadd.f32 %v1245, %v1356
      %v1470 = vadd.f32 %v1246, %v1356
      %v1471 = vadd.f32 %v1247, %v1356
      %v1472 = vadd.f32 %v1248, %v1356
      %v1473 = vadd.f32 %v1249, %v1356
      %v1474 = vadd.f32 %v1250, %v1356
      %v1475 = vadd.f32 %v1251, %v1356
      %v1476 = vadd.f32 %v1252, %v1356
      %v1477 = vadd.f32 %v1253, %v1361
      %v1478 = vadd.f32 %v1254, %v1361
      %v1479 = vadd.f32 %v1255, %v1361
      %v1480 = vadd.f32 %v1256, %v1361
      %v1481 = vadd.f32 %v1257, %v1361
      %v1482 = vadd.f32 %v1258, %v1361
      %v1483 = vadd.f32 %v1259, %v1361
      %v1484 = vadd.f32 %v1260, %v1361
      %v1485 = vadd.f32 %v1261, %v1366
      %v1486 = vadd.f32 %v1262, %v1366
      %v1487 = vadd.f32 %v1263, %v1366
      %v1488 = vadd.f32 %v1264, %v1366
      %v1489 = vadd.f32 %v1265, %v1366
      %v1490 = vadd.f32 %v1266, %v1366
      %v1491 = vadd.f32 %v1267, %v1366
      %v1492 = vadd.f32 %v1268, %v1366
      %v1493 = vadd.f32 %v1269, %v1371
      %v1494 = vadd.f32 %v1270, %v1371
      %v1495 = vadd.f32 %v1271, %v1371
      %v1496 = vadd.f32 %v1272, %v1371
      %v1497 = vadd.f32 %v1273, %v1371
      %v1498 = vadd.f32 %v1274, %v1371
      %v1499 = vadd.f32 %v1275, %v1371
      %v1500 = vadd.f32 %v1276, %v1371
      %v1501 = vxor.u32 %v1373, 2147483648
      %v1502 = vxor.u32 %v1374, 2147483648
      %v1503 = vxor.u32 %v1375, 2147483648
      %v1504 = vxor.u32 %v1376, 2147483648
      %v1505 = vxor.u32 %v1377, 2147483648
      %v1506 = vxor.u32 %v1378, 2147483648
      %v1507 = vxor.u32 %v1379, 2147483648
      %v1508 = vxor.u32 %v1380, 2147483648
      %v1509 = vxor.u32 %v1381, 2147483648
      %v1510 = vxor.u32 %v1382, 2147483648
      %v1511 = vxor.u32 %v1383, 2147483648
      %v1512 = vxor.u32 %v1384, 2147483648
      %v1513 = vxor.u32 %v1385, 2147483648
      %v1514 = vxor.u32 %v1386, 2147483648
      %v1515 = vxor.u32 %v1387, 2147483648
      %v1516 = vxor.u32 %v1388, 2147483648
      %v1517 = vxor.u32 %v1389, 2147483648
      %v1518 = vxor.u32 %v1390, 2147483648
      %v1519 = vxor.u32 %v1391, 2147483648
      %v1520 = vxor.u32 %v1392, 2147483648
      %v1521 = vxor.u32 %v1393, 2147483648
      %v1522 = vxor.u32 %v1394, 2147483648
      %v1523 = vxor.u32 %v1395, 2147483648
      %v1524 = vxor.u32 %v1396, 2147483648
      %v1525 = vxor.u32 %v1397, 2147483648
      %v1526 = vxor.u32 %v1398, 2147483648
      %v1527 = vxor.u32 %v1399, 2147483648
      %v1528 = vxor.u32 %v1400, 2147483648
      %v1529 = vxor.u32 %v1401, 2147483648
      %v1530 = vxor.u32 %v1402, 2147483648
      %v1531 = vxor.u32 %v1403, 2147483648
      %v1532 = vxor.u32 %v1404, 2147483648
      %v1533 = vxor.u32 %v1405, 2147483648
      %v1534 = vxor.u32 %v1406, 2147483648
      %v1535 = vxor.u32 %v1407, 2147483648
      %v1536 = vxor.u32 %v1408, 2147483648
      %v1537 = vxor.u32 %v1409, 2147483648
      %v1538 = vxor.u32 %v1410, 2147483648
      %v1539 = vxor.u32 %v1411, 2147483648
      %v1540 = vxor.u32 %v1412, 2147483648
      %v1541 = vxor.u32 %v1413, 2147483648
      %v1542 = vxor.u32 %v1414, 2147483648
      %v1543 = vxor.u32 %v1415, 2147483648
      %v1544 = vxor.u32 %v1416, 2147483648
      %v1545 = vxor.u32 %v1417, 2147483648
      %v1546 = vxor.u32 %v1418, 2147483648
      %v1547 = vxor.u32 %v1419, 2147483648
      %v1548 = vxor.u32 %v1420, 2147483648
      %v1549 = vxor.u32 %v1421, 2147483648
      %v1550 = vxor.u32 %v1422, 2147483648
      %v1551 = vxor.u32 %v1423, 2147483648
      %v1552 = vxor.u32 %v1424, 2147483648
      %v1553 = vxor.u32 %v1425, 2147483648
      %v1554 = vxor.u32 %v1426, 2147483648
      %v1555 = vxor.u32 %v1427, 2147483648
      %v1556 = vxor.u32 %v1428, 2147483648
      %v1557 = vxor.u32 %v1429, 2147483648
      %v1558 = vxor.u32 %v1430, 2147483648
      %v1559 = vxor.u32 %v1431, 2147483648
      %v1560 = vxor.u32 %v1432, 2147483648
      %v1561 = vxor.u32 %v1433, 2147483648
      %v1562 = vxor.u32 %v1434, 2147483648
      %v1563 = vxor.u32 %v1435, 2147483648
      %v1564 = vxor.u32 %v1436, 2147483648
      %v1565 = vxor.u32 %v1437, 2147483648
      %v1566 = vxor.u32 %v1438, 2147483648
      %v1567 = vxor.u32 %v1439, 2147483648
      %v1568 = vxor.u32 %v1440, 2147483648
      %v1569 = vxor.u32 %v1441, 2147483648
      %v1570 = vxor.u32 %v1442, 2147483648
      %v1571 = vxor.u32 %v1443, 2147483648
      %v1572 = vxor.u32 %v1444, 2147483648
      %v1573 = vxor.u32 %v1445, 2147483648
      %v1574 = vxor.u32 %v1446, 2147483648
      %v1575 = vxor.u32 %v1447, 2147483648
      %v1576 = vxor.u32 %v1448, 2147483648
      %v1577 = vxor.u32 %v1449, 2147483648
      %v1578 = vxor.u32 %v1450, 2147483648
      %v1579 = vxor.u32 %v1451, 2147483648
      %v1580 = vxor.u32 %v1452, 2147483648
      %v1581 = vxor.u32 %v1453, 2147483648
      %v1582 = vxor.u32 %v1454, 2147483648
      %v1583 = vxor.u32 %v1455, 2147483648
      %v1584 = vxor.u32 %v1456, 2147483648
      %v1585 = vxor.u32 %v1457, 2147483648
      %v1586 = vxor.u32 %v1458, 2147483648
      %v1587 = vxor.u32 %v1459, 2147483648
      %v1588 = vxor.u32 %v1460, 2147483648
      %v1589 = vxor.u32 %v1461, 2147483648
      %v1590 = vxor.u32 %v1462, 2147483648
      %v1591 = vxor.u32 %v1463, 2147483648
      %v1592 = vxor.u32 %v1464, 2147483648
      %v1593 = vxor.u32 %v1465, 2147483648
      %v1594 = vxor.u32 %v1466, 2147483648
      %v1595 = vxor.u32 %v1467, 2147483648
      %v1596 = vxor.u32 %v1468, 2147483648
      %v1597 = vxor.u32 %v1469, 2147483648
      %v1598 = vxor.u32 %v1470, 2147483648
      %v1599 = vxor.u32 %v1471, 2147483648
      %v1600 = vxor.u32 %v1472, 2147483648
      %v1601 = vxor.u32 %v1473, 2147483648
      %v1602 = vxor.u32 %v1474, 2147483648
      %v1603 = vxor.u32 %v1475, 2147483648
      %v1604 = vxor.u32 %v1476, 2147483648
      %v1605 = vxor.u32 %v1477, 2147483648
      %v1606 = vxor.u32 %v1478, 2147483648
      %v1607 = vxor.u32 %v1479, 2147483648
      %v1608 = vxor.u32 %v1480, 2147483648
      %v1609 = vxor.u32 %v1481, 2147483648
      %v1610 = vxor.u32 %v1482, 2147483648
      %v1611 = vxor.u32 %v1483, 2147483648
      %v1612 = vxor.u32 %v1484, 2147483648
      %v1613 = vxor.u32 %v1485, 2147483648
      %v1614 = vxor.u32 %v1486, 2147483648
      %v1615 = vxor.u32 %v1487, 2147483648
      %v1616 = vxor.u32 %v1488, 2147483648
      %v1617 = vxor.u32 %v1489, 2147483648
      %v1618 = vxor.u32 %v1490, 2147483648
      %v1619 = vxor.u32 %v1491, 2147483648
      %v1620 = vxor.u32 %v1492, 2147483648
      %v1621 = vxor.u32 %v1493, 2147483648
      %v1622 = vxor.u32 %v1494, 2147483648
      %v1623 = vxor.u32 %v1495, 2147483648
      %v1624 = vxor.u32 %v1496, 2147483648
      %v1625 = vxor.u32 %v1497, 2147483648
      %v1626 = vxor.u32 %v1498, 2147483648
      %v1627 = vxor.u32 %v1499, 2147483648
      %v1628 = vxor.u32 %v1500, 2147483648
      %v1629 = vmul.f32 %v1501, 1.442695
      %v1630 = vpow.pop %v1629
      %v1631 = vmul.f32 %v1502, 1.442695
      %v1632 = vpow.pop %v1631
      %v1633 = vmul.f32 %v1503, 1.442695
      %v1634 = vpow.pop %v1633
      %v1635 = vmul.f32 %v1504, 1.442695
      %v1636 = vpow.pop %v1635
      %v1637 = vmul.f32 %v1505, 1.442695
      %v1638 = vpow.pop %v1637
      %v1639 = vmul.f32 %v1506, 1.442695
      %v1640 = vpow.pop %v1639
      %v1641 = vmul.f32 %v1507, 1.442695
      %v1642 = vpow.pop %v1641
      %v1643 = vmul.f32 %v1508, 1.442695
      %v1644 = vpow.pop %v1643
      %v1645 = vmul.f32 %v1509, 1.442695
      %v1646 = vpow.pop %v1645
      %v1647 = vmul.f32 %v1510, 1.442695
      %v1648 = vpow.pop %v1647
      %v1649 = vmul.f32 %v1511, 1.442695
      %v1650 = vpow.pop %v1649
      %v1651 = vmul.f32 %v1512, 1.442695
      %v1652 = vpow.pop %v1651
      %v1653 = vmul.f32 %v1513, 1.442695
      %v1654 = vpow.pop %v1653
      %v1655 = vmul.f32 %v1514, 1.442695
      %v1656 = vpow.pop %v1655
      %v1657 = vmul.f32 %v1515, 1.442695
      %v1658 = vpow.pop %v1657
      %v1659 = vmul.f32 %v1516, 1.442695
      %v1660 = vpow.pop %v1659
      %v1661 = vmul.f32 %v1517, 1.442695
      %v1662 = vpow.pop %v1661
      %v1663 = vmul.f32 %v1518, 1.442695
      %v1664 = vpow.pop %v1663
      %v1665 = vmul.f32 %v1519, 1.442695
      %v1666 = vpow.pop %v1665
      %v1667 = vmul.f32 %v1520, 1.442695
      %v1668 = vpow.pop %v1667
      %v1669 = vmul.f32 %v1521, 1.442695
      %v1670 = vpow.pop %v1669
      %v1671 = vmul.f32 %v1522, 1.442695
      %v1672 = vpow.pop %v1671
      %v1673 = vmul.f32 %v1523, 1.442695
      %v1674 = vpow.pop %v1673
      %v1675 = vmul.f32 %v1524, 1.442695
      %v1676 = vpow.pop %v1675
      %v1677 = vmul.f32 %v1525, 1.442695
      %v1678 = vpow.pop %v1677
      %v1679 = vmul.f32 %v1526, 1.442695
      %v1680 = vpow.pop %v1679
      %v1681 = vmul.f32 %v1527, 1.442695
      %v1682 = vpow.pop %v1681
      %v1683 = vmul.f32 %v1528, 1.442695
      %v1684 = vpow.pop %v1683
      %v1685 = vmul.f32 %v1529, 1.442695
      %v1686 = vpow.pop %v1685
      %v1687 = vmul.f32 %v1530, 1.442695
      %v1688 = vpow.pop %v1687
      %v1689 = vmul.f32 %v1531, 1.442695
      %v1690 = vpow.pop %v1689
      %v1691 = vmul.f32 %v1532, 1.442695
      %v1692 = vpow.pop %v1691
      %v1693 = vmul.f32 %v1533, 1.442695
      %v1694 = vpow.pop %v1693
      %v1695 = vmul.f32 %v1534, 1.442695
      %v1696 = vpow.pop %v1695
      %v1697 = vmul.f32 %v1535, 1.442695
      %v1698 = vpow.pop %v1697
      %v1699 = vmul.f32 %v1536, 1.442695
      %v1700 = vpow.pop %v1699
      %v1701 = vmul.f32 %v1537, 1.442695
      %v1702 = vpow.pop %v1701
      %v1703 = vmul.f32 %v1538, 1.442695
      %v1704 = vpow.pop %v1703
      %v1705 = vmul.f32 %v1539, 1.442695
      %v1706 = vpow.pop %v1705
      %v1707 = vmul.f32 %v1540, 1.442695
      %v1708 = vpow.pop %v1707
      %v1709 = vmul.f32 %v1541, 1.442695
      %v1710 = vpow.pop %v1709
      %v1711 = vmul.f32 %v1542, 1.442695
      %v1712 = vpow.pop %v1711
      %v1713 = vmul.f32 %v1543, 1.442695
      %v1714 = vpow.pop %v1713
      %v1715 = vmul.f32 %v1544, 1.442695
      %v1716 = vpow.pop %v1715
      %v1717 = vmul.f32 %v1545, 1.442695
      %v1718 = vpow.pop %v1717
      %v1719 = vmul.f32 %v1546, 1.442695
      %v1720 = vpow.pop %v1719
      %v1721 = vmul.f32 %v1547, 1.442695
      %v1722 = vpow.pop %v1721
      %v1723 = vmul.f32 %v1548, 1.442695
      %v1724 = vpow.pop %v1723
      %v1725 = vmul.f32 %v1549, 1.442695
      %v1726 = vpow.pop %v1725
      %v1727 = vmul.f32 %v1550, 1.442695
      %v1728 = vpow.pop %v1727
      %v1729 = vmul.f32 %v1551, 1.442695
      %v1730 = vpow.pop %v1729
      %v1731 = vmul.f32 %v1552, 1.442695
      %v1732 = vpow.pop %v1731
      %v1733 = vmul.f32 %v1553, 1.442695
      %v1734 = vpow.pop %v1733
      %v1735 = vmul.f32 %v1554, 1.442695
      %v1736 = vpow.pop %v1735
      %v1737 = vmul.f32 %v1555, 1.442695
      %v1738 = vpow.pop %v1737
      %v1739 = vmul.f32 %v1556, 1.442695
      %v1740 = vpow.pop %v1739
      %v1741 = vmul.f32 %v1557, 1.442695
      %v1742 = vpow.pop %v1741
      %v1743 = vmul.f32 %v1558, 1.442695
      %v1744 = vpow.pop %v1743
      %v1745 = vmul.f32 %v1559, 1.442695
      %v1746 = vpow.pop %v1745
      %v1747 = vmul.f32 %v1560, 1.442695
      %v1748 = vpow.pop %v1747
      %v1749 = vmul.f32 %v1561, 1.442695
      %v1750 = vpow.pop %v1749
      %v1751 = vmul.f32 %v1562, 1.442695
      %v1752 = vpow.pop %v1751
      %v1753 = vmul.f32 %v1563, 1.442695
      %v1754 = vpow.pop %v1753
      %v1755 = vmul.f32 %v1564, 1.442695
      %v1756 = vpow.pop %v1755
      %v1757 = vmul.f32 %v1565, 1.442695
      %v1758 = vpow.pop %v1757
      %v1759 = vmul.f32 %v1566, 1.442695
      %v1760 = vpow.pop %v1759
      %v1761 = vmul.f32 %v1567, 1.442695
      %v1762 = vpow.pop %v1761
      %v1763 = vmul.f32 %v1568, 1.442695
      %v1764 = vpow.pop %v1763
      %v1765 = vmul.f32 %v1569, 1.442695
      %v1766 = vpow.pop %v1765
      %v1767 = vmul.f32 %v1570, 1.442695
      %v1768 = vpow.pop %v1767
      %v1769 = vmul.f32 %v1571, 1.442695
      %v1770 = vpow.pop %v1769
      %v1771 = vmul.f32 %v1572, 1.442695
      %v1772 = vpow.pop %v1771
      %v1773 = vmul.f32 %v1573, 1.442695
      %v1774 = vpow.pop %v1773
      %v1775 = vmul.f32 %v1574, 1.442695
      %v1776 = vpow.pop %v1775
      %v1777 = vmul.f32 %v1575, 1.442695
      %v1778 = vpow.pop %v1777
      %v1779 = vmul.f32 %v1576, 1.442695
      %v1780 = vpow.pop %v1779
      %v1781 = vmul.f32 %v1577, 1.442695
      %v1782 = vpow.pop %v1781
      %v1783 = vmul.f32 %v1578, 1.442695
      %v1784 = vpow.pop %v1783
      %v1785 = vmul.f32 %v1579, 1.442695
      %v1786 = vpow.pop %v1785
      %v1787 = vmul.f32 %v1580, 1.442695
      %v1788 = vpow.pop %v1787
      %v1789 = vmul.f32 %v1581, 1.442695
      %v1790 = vpow.pop %v1789
      %v1791 = vmul.f32 %v1582, 1.442695
      %v1792 = vpow.pop %v1791
      %v1793 = vmul.f32 %v1583, 1.442695
      %v1794 = vpow.pop %v1793
      %v1795 = vmul.f32 %v1584, 1.442695
      %v1796 = vpow.pop %v1795
      %v1797 = vmul.f32 %v1585, 1.442695
      %v1798 = vpow.pop %v1797
      %v1799 = vmul.f32 %v1586, 1.442695
      %v1800 = vpow.pop %v1799
      %v1801 = vmul.f32 %v1587, 1.442695
      %v1802 = vpow.pop %v1801
      %v1803 = vmul.f32 %v1588, 1.442695
      %v1804 = vpow.pop %v1803
      %v1805 = vmul.f32 %v1589, 1.442695
      %v1806 = vpow.pop %v1805
      %v1807 = vmul.f32 %v1590, 1.442695
      %v1808 = vpow.pop %v1807
      %v1809 = vmul.f32 %v1591, 1.442695
      %v1810 = vpow.pop %v1809
      %v1811 = vmul.f32 %v1592, 1.442695
      %v1812 = vpow.pop %v1811
      %v1813 = vmul.f32 %v1593, 1.442695
      %v1814 = vpow.pop %v1813
      %v1815 = vmul.f32 %v1594, 1.442695
      %v1816 = vpow.pop %v1815
      %v1817 = vmul.f32 %v1595, 1.442695
      %v1818 = vpow.pop %v1817
      %v1819 = vmul.f32 %v1596, 1.442695
      %v1820 = vpow.pop %v1819
      %v1821 = vmul.f32 %v1597, 1.442695
      %v1822 = vpow.pop %v1821
      %v1823 = vmul.f32 %v1598, 1.442695
      %v1824 = vpow.pop %v1823
      %v1825 = vmul.f32 %v1599, 1.442695
      %v1826 = vpow.pop %v1825
      %v1827 = vmul.f32 %v1600, 1.442695
      %v1828 = vpow.pop %v1827
      %v1829 = vmul.f32 %v1601, 1.442695
      %v1830 = vpow.pop %v1829
      %v1831 = vmul.f32 %v1602, 1.442695
      %v1832 = vpow.pop %v1831
      %v1833 = vmul.f32 %v1603, 1.442695
      %v1834 = vpow.pop %v1833
      %v1835 = vmul.f32 %v1604, 1.442695
      %v1836 = vpow.pop %v1835
      %v1837 = vmul.f32 %v1605, 1.442695
      %v1838 = vpow.pop %v1837
      %v1839 = vmul.f32 %v1606, 1.442695
      %v1840 = vpow.pop %v1839
      %v1841 = vmul.f32 %v1607, 1.442695
      %v1842 = vpow.pop %v1841
      %v1843 = vmul.f32 %v1608, 1.442695
      %v1844 = vpow.pop %v1843
      %v1845 = vmul.f32 %v1609, 1.442695
      %v1846 = vpow.pop %v1845
      %v1847 = vmul.f32 %v1610, 1.442695
      %v1848 = vpow.pop %v1847
      %v1849 = vmul.f32 %v1611, 1.442695
      %v1850 = vpow.pop %v1849
      %v1851 = vmul.f32 %v1612, 1.442695
      %v1852 = vpow.pop %v1851
      %v1853 = vmul.f32 %v1613, 1.442695
      %v1854 = vpow.pop %v1853
      %v1855 = vmul.f32 %v1614, 1.442695
      %v1856 = vpow.pop %v1855
      %v1857 = vmul.f32 %v1615, 1.442695
      %v1858 = vpow.pop %v1857
      %v1859 = vmul.f32 %v1616, 1.442695
      %v1860 = vpow.pop %v1859
      %v1861 = vmul.f32 %v1617, 1.442695
      %v1862 = vpow.pop %v1861
      %v1863 = vmul.f32 %v1618, 1.442695
      %v1864 = vpow.pop %v1863
      %v1865 = vmul.f32 %v1619, 1.442695
      %v1866 = vpow.pop %v1865
      %v1867 = vmul.f32 %v1620, 1.442695
      %v1868 = vpow.pop %v1867
      %v1869 = vmul.f32 %v1621, 1.442695
      %v1870 = vpow.pop %v1869
      %v1871 = vmul.f32 %v1622, 1.442695
      %v1872 = vpow.pop %v1871
      %v1873 = vmul.f32 %v1623, 1.442695
      %v1874 = vpow.pop %v1873
      %v1875 = vmul.f32 %v1624, 1.442695
      %v1876 = vpow.pop %v1875
      %v1877 = vmul.f32 %v1625, 1.442695
      %v1878 = vpow.pop %v1877
      %v1879 = vmul.f32 %v1626, 1.442695
      %v1880 = vpow.pop %v1879
      %v1881 = vmul.f32 %v1627, 1.442695
      %v1882 = vpow.pop %v1881
      %v1883 = vmul.f32 %v1628, 1.442695
      %v1884 = vpow.pop %v1883
      %v1885 = vadd.f32 %v1630, 1.0
      %v1886 = vadd.f32 %v1632, 1.0
      %v1887 = vadd.f32 %v1634, 1.0
      %v1888 = vadd.f32 %v1636, 1.0
      %v1889 = vadd.f32 %v1638, 1.0
      %v1890 = vadd.f32 %v1640, 1.0
      %v1891 = vadd.f32 %v1642, 1.0
      %v1892 = vadd.f32 %v1644, 1.0
      %v1893 = vadd.f32 %v1646, 1.0
      %v1894 = vadd.f32 %v1648, 1.0
      %v1895 = vadd.f32 %v1650, 1.0
      %v1896 = vadd.f32 %v1652, 1.0
      %v1897 = vadd.f32 %v1654, 1.0
      %v1898 = vadd.f32 %v1656, 1.0
      %v1899 = vadd.f32 %v1658, 1.0
      %v1900 = vadd.f32 %v1660, 1.0
      %v1901 = vadd.f32 %v1662, 1.0
      %v1902 = vadd.f32 %v1664, 1.0
      %v1903 = vadd.f32 %v1666, 1.0
      %v1904 = vadd.f32 %v1668, 1.0
      %v1905 = vadd.f32 %v1670, 1.0
      %v1906 = vadd.f32 %v1672, 1.0
      %v1907 = vadd.f32 %v1674, 1.0
      %v1908 = vadd.f32 %v1676, 1.0
      %v1909 = vadd.f32 %v1678, 1.0
      %v1910 = vadd.f32 %v1680, 1.0
      %v1911 = vadd.f32 %v1682, 1.0
      %v1912 = vadd.f32 %v1684, 1.0
      %v1913 = vadd.f32 %v1686, 1.0
      %v1914 = vadd.f32 %v1688, 1.0
      %v1915 = vadd.f32 %v1690, 1.0
      %v1916 = vadd.f32 %v1692, 1.0
      %v1917 = vadd.f32 %v1694, 1.0
      %v1918 = vadd.f32 %v1696, 1.0
      %v1919 = vadd.f32 %v1698, 1.0
      %v1920 = vadd.f32 %v1700, 1.0
      %v1921 = vadd.f32 %v1702, 1.0
      %v1922 = vadd.f32 %v1704, 1.0
      %v1923 = vadd.f32 %v1706, 1.0
      %v1924 = vadd.f32 %v1708, 1.0
      %v1925 = vadd.f32 %v1710, 1.0
      %v1926 = vadd.f32 %v1712, 1.0
      %v1927 = vadd.f32 %v1714, 1.0
      %v1928 = vadd.f32 %v1716, 1.0
      %v1929 = vadd.f32 %v1718, 1.0
      %v1930 = vadd.f32 %v1720, 1.0
      %v1931 = vadd.f32 %v1722, 1.0
      %v1932 = vadd.f32 %v1724, 1.0
      %v1933 = vadd.f32 %v1726, 1.0
      %v1934 = vadd.f32 %v1728, 1.0
      %v1935 = vadd.f32 %v1730, 1.0
      %v1936 = vadd.f32 %v1732, 1.0
      %v1937 = vadd.f32 %v1734, 1.0
      %v1938 = vadd.f32 %v1736, 1.0
      %v1939 = vadd.f32 %v1738, 1.0
      %v1940 = vadd.f32 %v1740, 1.0
      %v1941 = vadd.f32 %v1742, 1.0
      %v1942 = vadd.f32 %v1744, 1.0
      %v1943 = vadd.f32 %v1746, 1.0
      %v1944 = vadd.f32 %v1748, 1.0
      %v1945 = vadd.f32 %v1750, 1.0
      %v1946 = vadd.f32 %v1752, 1.0
      %v1947 = vadd.f32 %v1754, 1.0
      %v1948 = vadd.f32 %v1756, 1.0
      %v1949 = vadd.f32 %v1758, 1.0
      %v1950 = vadd.f32 %v1760, 1.0
      %v1951 = vadd.f32 %v1762, 1.0
      %v1952 = vadd.f32 %v1764, 1.0
      %v1953 = vadd.f32 %v1766, 1.0
      %v1954 = vadd.f32 %v1768, 1.0
      %v1955 = vadd.f32 %v1770, 1.0
      %v1956 = vadd.f32 %v1772, 1.0
      %v1957 = vadd.f32 %v1774, 1.0
      %v1958 = vadd.f32 %v1776, 1.0
      %v1959 = vadd.f32 %v1778, 1.0
      %v1960 = vadd.f32 %v1780, 1.0
      %v1961 = vadd.f32 %v1782, 1.0
      %v1962 = vadd.f32 %v1784, 1.0
      %v1963 = vadd.f32 %v1786, 1.0
      %v1964 = vadd.f32 %v1788, 1.0
      %v1965 = vadd.f32 %v1790, 1.0
      %v1966 = vadd.f32 %v1792, 1.0
      %v1967 = vadd.f32 %v1794, 1.0
      %v1968 = vadd.f32 %v1796, 1.0
      %v1969 = vadd.f32 %v1798, 1.0
      %v1970 = vadd.f32 %v1800, 1.0
      %v1971 = vadd.f32 %v1802, 1.0
      %v1972 = vadd.f32 %v1804, 1.0
      %v1973 = vadd.f32 %v1806, 1.0
      %v1974 = vadd.f32 %v1808, 1.0
      %v1975 = vadd.f32 %v1810, 1.0
      %v1976 = vadd.f32 %v1812, 1.0
      %v1977 = vadd.f32 %v1814, 1.0
      %v1978 = vadd.f32 %v1816, 1.0
      %v1979 = vadd.f32 %v1818, 1.0
      %v1980 = vadd.f32 %v1820, 1.0
      %v1981 = vadd.f32 %v1822, 1.0
      %v1982 = vadd.f32 %v1824, 1.0
      %v1983 = vadd.f32 %v1826, 1.0
      %v1984 = vadd.f32 %v1828, 1.0
      %v1985 = vadd.f32 %v1830, 1.0
      %v1986 = vadd.f32 %v1832, 1.0
      %v1987 = vadd.f32 %v1834, 1.0
      %v1988 = vadd.f32 %v1836, 1.0
      %v1989 = vadd.f32 %v1838, 1.0
      %v1990 = vadd.f32 %v1840, 1.0
      %v1991 = vadd.f32 %v1842, 1.0
      %v1992 = vadd.f32 %v1844, 1.0
      %v1993 = vadd.f32 %v1846, 1.0
      %v1994 = vadd.f32 %v1848, 1.0
      %v1995 = vadd.f32 %v1850, 1.0
      %v1996 = vadd.f32 %v1852, 1.0
      %v1997 = vadd.f32 %v1854, 1.0
      %v1998 = vadd.f32 %v1856, 1.0
      %v1999 = vadd.f32 %v1858, 1.0
      %v2000 = vadd.f32 %v1860, 1.0
      %v2001 = vadd.f32 %v1862, 1.0
      %v2002 = vadd.f32 %v1864, 1.0
      %v2003 = vadd.f32 %v1866, 1.0
      %v2004 = vadd.f32 %v1868, 1.0
      %v2005 = vadd.f32 %v1870, 1.0
      %v2006 = vadd.f32 %v1872, 1.0
      %v2007 = vadd.f32 %v1874, 1.0
      %v2008 = vadd.f32 %v1876, 1.0
      %v2009 = vadd.f32 %v1878, 1.0
      %v2010 = vadd.f32 %v1880, 1.0
      %v2011 = vadd.f32 %v1882, 1.0
      %v2012 = vadd.f32 %v1884, 1.0
      %v2013 = vrcp.pop %v1885
      %v2014 = vmul.f32 1.0, %v2013
      %v2015 = vrcp.pop %v1886
      %v2016 = vmul.f32 1.0, %v2015
      %v2017 = vrcp.pop %v1887
      %v2018 = vmul.f32 1.0, %v2017
      %v2019 = vrcp.pop %v1888
      %v2020 = vmul.f32 1.0, %v2019
      %v2021 = vrcp.pop %v1889
      %v2022 = vmul.f32 1.0, %v2021
      %v2023 = vrcp.pop %v1890
      %v2024 = vmul.f32 1.0, %v2023
      %v2025 = vrcp.pop %v1891
      %v2026 = vmul.f32 1.0, %v2025
      %v2027 = vrcp.pop %v1892
      %v2028 = vmul.f32 1.0, %v2027
      %v2029 = vrcp.pop %v1893
      %v2030 = vmul.f32 1.0, %v2029
      %v2031 = vrcp.pop %v1894
      %v2032 = vmul.f32 1.0, %v2031
      %v2033 = vrcp.pop %v1895
      %v2034 = vmul.f32 1.0, %v2033
      %v2035 = vrcp.pop %v1896
      %v2036 = vmul.f32 1.0, %v2035
      %v2037 = vrcp.pop %v1897
      %v2038 = vmul.f32 1.0, %v2037
      %v2039 = vrcp.pop %v1898
      %v2040 = vmul.f32 1.0, %v2039
      %v2041 = vrcp.pop %v1899
      %v2042 = vmul.f32 1.0, %v2041
      %v2043 = vrcp.pop %v1900
      %v2044 = vmul.f32 1.0, %v2043
      %v2045 = vrcp.pop %v1901
      %v2046 = vmul.f32 1.0, %v2045
      %v2047 = vrcp.pop %v1902
      %v2048 = vmul.f32 1.0, %v2047
      %v2049 = vrcp.pop %v1903
      %v2050 = vmul.f32 1.0, %v2049
      %v2051 = vrcp.pop %v1904
      %v2052 = vmul.f32 1.0, %v2051
      %v2053 = vrcp.pop %v1905
      %v2054 = vmul.f32 1.0, %v2053
      %v2055 = vrcp.pop %v1906
      %v2056 = vmul.f32 1.0, %v2055
      %v2057 = vrcp.pop %v1907
      %v2058 = vmul.f32 1.0, %v2057
      %v2059 = vrcp.pop %v1908
      %v2060 = vmul.f32 1.0, %v2059
      %v2061 = vrcp.pop %v1909
      %v2062 = vmul.f32 1.0, %v2061
      %v2063 = vrcp.pop %v1910
      %v2064 = vmul.f32 1.0, %v2063
      %v2065 = vrcp.pop %v1911
      %v2066 = vmul.f32 1.0, %v2065
      %v2067 = vrcp.pop %v1912
      %v2068 = vmul.f32 1.0, %v2067
      %v2069 = vrcp.pop %v1913
      %v2070 = vmul.f32 1.0, %v2069
      %v2071 = vrcp.pop %v1914
      %v2072 = vmul.f32 1.0, %v2071
      %v2073 = vrcp.pop %v1915
      %v2074 = vmul.f32 1.0, %v2073
      %v2075 = vrcp.pop %v1916
      %v2076 = vmul.f32 1.0, %v2075
      %v2077 = vrcp.pop %v1917
      %v2078 = vmul.f32 1.0, %v2077
      %v2079 = vrcp.pop %v1918
      %v2080 = vmul.f32 1.0, %v2079
      %v2081 = vrcp.pop %v1919
      %v2082 = vmul.f32 1.0, %v2081
      %v2083 = vrcp.pop %v1920
      %v2084 = vmul.f32 1.0, %v2083
      %v2085 = vrcp.pop %v1921
      %v2086 = vmul.f32 1.0, %v2085
      %v2087 = vrcp.pop %v1922
      %v2088 = vmul.f32 1.0, %v2087
      %v2089 = vrcp.pop %v1923
      %v2090 = vmul.f32 1.0, %v2089
      %v2091 = vrcp.pop %v1924
      %v2092 = vmul.f32 1.0, %v2091
      %v2093 = vrcp.pop %v1925
      %v2094 = vmul.f32 1.0, %v2093
      %v2095 = vrcp.pop %v1926
      %v2096 = vmul.f32 1.0, %v2095
      %v2097 = vrcp.pop %v1927
      %v2098 = vmul.f32 1.0, %v2097
      %v2099 = vrcp.pop %v1928
      %v2100 = vmul.f32 1.0, %v2099
      %v2101 = vrcp.pop %v1929
      %v2102 = vmul.f32 1.0, %v2101
      %v2103 = vrcp.pop %v1930
      %v2104 = vmul.f32 1.0, %v2103
      %v2105 = vrcp.pop %v1931
      %v2106 = vmul.f32 1.0, %v2105
      %v2107 = vrcp.pop %v1932
      %v2108 = vmul.f32 1.0, %v2107
      %v2109 = vrcp.pop %v1933
      %v2110 = vmul.f32 1.0, %v2109
      %v2111 = vrcp.pop %v1934
      %v2112 = vmul.f32 1.0, %v2111
      %v2113 = vrcp.pop %v1935
      %v2114 = vmul.f32 1.0, %v2113
      %v2115 = vrcp.pop %v1936
      %v2116 = vmul.f32 1.0, %v2115
      %v2117 = vrcp.pop %v1937
      %v2118 = vmul.f32 1.0, %v2117
      %v2119 = vrcp.pop %v1938
      %v2120 = vmul.f32 1.0, %v2119
      %v2121 = vrcp.pop %v1939
      %v2122 = vmul.f32 1.0, %v2121
      %v2123 = vrcp.pop %v1940
      %v2124 = vmul.f32 1.0, %v2123
      %v2125 = vrcp.pop %v1941
      %v2126 = vmul.f32 1.0, %v2125
      %v2127 = vrcp.pop %v1942
      %v2128 = vmul.f32 1.0, %v2127
      %v2129 = vrcp.pop %v1943
      %v2130 = vmul.f32 1.0, %v2129
      %v2131 = vrcp.pop %v1944
      %v2132 = vmul.f32 1.0, %v2131
      %v2133 = vrcp.pop %v1945
      %v2134 = vmul.f32 1.0, %v2133
      %v2135 = vrcp.pop %v1946
      %v2136 = vmul.f32 1.0, %v2135
      %v2137 = vrcp.pop %v1947
      %v2138 = vmul.f32 1.0, %v2137
      %v2139 = vrcp.pop %v1948
      %v2140 = vmul.f32 1.0, %v2139
      %v2141 = vrcp.pop %v1949
      %v2142 = vmul.f32 1.0, %v2141
      %v2143 = vrcp.pop %v1950
      %v2144 = vmul.f32 1.0, %v2143
      %v2145 = vrcp.pop %v1951
      %v2146 = vmul.f32 1.0, %v2145
      %v2147 = vrcp.pop %v1952
      %v2148 = vmul.f32 1.0, %v2147
      %v2149 = vrcp.pop %v1953
      %v2150 = vmul.f32 1.0, %v2149
      %v2151 = vrcp.pop %v1954
      %v2152 = vmul.f32 1.0, %v2151
      %v2153 = vrcp.pop %v1955
      %v2154 = vmul.f32 1.0, %v2153
      %v2155 = vrcp.pop %v1956
      %v2156 = vmul.f32 1.0, %v2155
      %v2157 = vrcp.pop %v1957
      %v2158 = vmul.f32 1.0, %v2157
      %v2159 = vrcp.pop %v1958
      %v2160 = vmul.f32 1.0, %v2159
      %v2161 = vrcp.pop %v1959
      %v2162 = vmul.f32 1.0, %v2161
      %v2163 = vrcp.pop %v1960
      %v2164 = vmul.f32 1.0, %v2163
      %v2165 = vrcp.pop %v1961
      %v2166 = vmul.f32 1.0, %v2165
      %v2167 = vrcp.pop %v1962
      %v2168 = vmul.f32 1.0, %v2167
      %v2169 = vrcp.pop %v1963
      %v2170 = vmul.f32 1.0, %v2169
      %v2171 = vrcp.pop %v1964
      %v2172 = vmul.f32 1.0, %v2171
      %v2173 = vrcp.pop %v1965
      %v2174 = vmul.f32 1.0, %v2173
      %v2175 = vrcp.pop %v1966
      %v2176 = vmul.f32 1.0, %v2175
      %v2177 = vrcp.pop %v1967
      %v2178 = vmul.f32 1.0, %v2177
      %v2179 = vrcp.pop %v1968
      %v2180 = vmul.f32 1.0, %v2179
      %v2181 = vrcp.pop %v1969
      %v2182 = vmul.f32 1.0, %v2181
      %v2183 = vrcp.pop %v1970
      %v2184 = vmul.f32 1.0, %v2183
      %v2185 = vrcp.pop %v1971
      %v2186 = vmul.f32 1.0, %v2185
      %v2187 = vrcp.pop %v1972
      %v2188 = vmul.f32 1.0, %v2187
      %v2189 = vrcp.pop %v1973
      %v2190 = vmul.f32 1.0, %v2189
      %v2191 = vrcp.pop %v1974
      %v2192 = vmul.f32 1.0, %v2191
      %v2193 = vrcp.pop %v1975
      %v2194 = vmul.f32 1.0, %v2193
      %v2195 = vrcp.pop %v1976
      %v2196 = vmul.f32 1.0, %v2195
      %v2197 = vrcp.pop %v1977
      %v2198 = vmul.f32 1.0, %v2197
      %v2199 = vrcp.pop %v1978
      %v2200 = vmul.f32 1.0, %v2199
      %v2201 = vrcp.pop %v1979
      %v2202 = vmul.f32 1.0, %v2201
      %v2203 = vrcp.pop %v1980
      %v2204 = vmul.f32 1.0, %v2203
      %v2205 = vrcp.pop %v1981
      %v2206 = vmul.f32 1.0, %v2205
      %v2207 = vrcp.pop %v1982
      %v2208 = vmul.f32 1.0, %v2207
      %v2209 = vrcp.pop %v1983
      %v2210 = vmul.f32 1.0, %v2209
      %v2211 = vrcp.pop %v1984
      %v2212 = vmul.f32 1.0, %v2211
      %v2213 = vrcp.pop %v1985
      %v2214 = vmul.f32 1.0, %v2213
      %v2215 = vrcp.pop %v1986
      %v2216 = vmul.f32 1.0, %v2215
      %v2217 = vrcp.pop %v1987
      %v2218 = vmul.f32 1.0, %v2217
      %v2219 = vrcp.pop %v1988
      %v2220 = vmul.f32 1.0, %v2219
      %v2221 = vrcp.pop %v1989
      %v2222 = vmul.f32 1.0, %v2221
      %v2223 = vrcp.pop %v1990
      %v2224 = vmul.f32 1.0, %v2223
      %v2225 = vrcp.pop %v1991
      %v2226 = vmul.f32 1.0, %v2225
      %v2227 = vrcp.pop %v1992
      %v2228 = vmul.f32 1.0, %v2227
      %v2229 = vrcp.pop %v1993
      %v2230 = vmul.f32 1.0, %v2229
      %v2231 = vrcp.pop %v1994
      %v2232 = vmul.f32 1.0, %v2231
      %v2233 = vrcp.pop %v1995
      %v2234 = vmul.f32 1.0, %v2233
      %v2235 = vrcp.pop %v1996
      %v2236 = vmul.f32 1.0, %v2235
      %v2237 = vrcp.pop %v1997
      %v2238 = vmul.f32 1.0, %v2237
      %v2239 = vrcp.pop %v1998
      %v2240 = vmul.f32 1.0, %v2239
      %v2241 = vrcp.pop %v1999
      %v2242 = vmul.f32 1.0, %v2241
      %v2243 = vrcp.pop %v2000
      %v2244 = vmul.f32 1.0, %v2243
      %v2245 = vrcp.pop %v2001
      %v2246 = vmul.f32 1.0, %v2245
      %v2247 = vrcp.pop %v2002
      %v2248 = vmul.f32 1.0, %v2247
      %v2249 = vrcp.pop %v2003
      %v2250 = vmul.f32 1.0, %v2249
      %v2251 = vrcp.pop %v2004
      %v2252 = vmul.f32 1.0, %v2251
      %v2253 = vrcp.pop %v2005
      %v2254 = vmul.f32 1.0, %v2253
      %v2255 = vrcp.pop %v2006
      %v2256 = vmul.f32 1.0, %v2255
      %v2257 = vrcp.pop %v2007
      %v2258 = vmul.f32 1.0, %v2257
      %v2259 = vrcp.pop %v2008
      %v2260 = vmul.f32 1.0, %v2259
      %v2261 = vrcp.pop %v2009
      %v2262 = vmul.f32 1.0, %v2261
      %v2263 = vrcp.pop %v2010
      %v2264 = vmul.f32 1.0, %v2263
      %v2265 = vrcp.pop %v2011
      %v2266 = vmul.f32 1.0, %v2265
      %v2267 = vrcp.pop %v2012
      %v2268 = vmul.f32 1.0, %v2267
      %v2269 = vmul.f32 %v1373, %v2014
      %v2270 = vmul.f32 %v1374, %v2016
      %v2271 = vmul.f32 %v1375, %v2018
      %v2272 = vmul.f32 %v1376, %v2020
      %v2273 = vmul.f32 %v1377, %v2022
      %v2274 = vmul.f32 %v1378, %v2024
      %v2275 = vmul.f32 %v1379, %v2026
      %v2276 = vmul.f32 %v1380, %v2028
      %v2277 = vmul.f32 %v1381, %v2030
      %v2278 = vmul.f32 %v1382, %v2032
      %v2279 = vmul.f32 %v1383, %v2034
      %v2280 = vmul.f32 %v1384, %v2036
      %v2281 = vmul.f32 %v1385, %v2038
      %v2282 = vmul.f32 %v1386, %v2040
      %v2283 = vmul.f32 %v1387, %v2042
      %v2284 = vmul.f32 %v1388, %v2044
      %v2285 = vmul.f32 %v1389, %v2046
      %v2286 = vmul.f32 %v1390, %v2048
      %v2287 = vmul.f32 %v1391, %v2050
      %v2288 = vmul.f32 %v1392, %v2052
      %v2289 = vmul.f32 %v1393, %v2054
      %v2290 = vmul.f32 %v1394, %v2056
      %v2291 = vmul.f32 %v1395, %v2058
      %v2292 = vmul.f32 %v1396, %v2060
      %v2293 = vmul.f32 %v1397, %v2062
      %v2294 = vmul.f32 %v1398, %v2064
      %v2295 = vmul.f32 %v1399, %v2066
      %v2296 = vmul.f32 %v1400, %v2068
      %v2297 = vmul.f32 %v1401, %v2070
      %v2298 = vmul.f32 %v1402, %v2072
      %v2299 = vmul.f32 %v1403, %v2074
      %v2300 = vmul.f32 %v1404, %v2076
      %v2301 = vmul.f32 %v1405, %v2078
      %v2302 = vmul.f32 %v1406, %v2080
      %v2303 = vmul.f32 %v1407, %v2082
      %v2304 = vmul.f32 %v1408, %v2084
      %v2305 = vmul.f32 %v1409, %v2086
      %v2306 = vmul.f32 %v1410, %v2088
      %v2307 = vmul.f32 %v1411, %v2090
      %v2308 = vmul.f32 %v1412, %v2092
      %v2309 = vmul.f32 %v1413, %v2094
      %v2310 = vmul.f32 %v1414, %v2096
      %v2311 = vmul.f32 %v1415, %v2098
      %v2312 = vmul.f32 %v1416, %v2100
      %v2313 = vmul.f32 %v1417, %v2102
      %v2314 = vmul.f32 %v1418, %v2104
      %v2315 = vmul.f32 %v1419, %v2106
      %v2316 = vmul.f32 %v1420, %v2108
      %v2317 = vmul.f32 %v1421, %v2110
      %v2318 = vmul.f32 %v1422, %v2112
      %v2319 = vmul.f32 %v1423, %v2114
      %v2320 = vmul.f32 %v1424, %v2116
      %v2321 = vmul.f32 %v1425, %v2118
      %v2322 = vmul.f32 %v1426, %v2120
      %v2323 = vmul.f32 %v1427, %v2122
      %v2324 = vmul.f32 %v1428, %v2124
      %v2325 = vmul.f32 %v1429, %v2126
      %v2326 = vmul.f32 %v1430, %v2128
      %v2327 = vmul.f32 %v1431, %v2130
      %v2328 = vmul.f32 %v1432, %v2132
      %v2329 = vmul.f32 %v1433, %v2134
      %v2330 = vmul.f32 %v1434, %v2136
      %v2331 = vmul.f32 %v1435, %v2138
      %v2332 = vmul.f32 %v1436, %v2140
      %v2333 = vmul.f32 %v1437, %v2142
      %v2334 = vmul.f32 %v1438, %v2144
      %v2335 = vmul.f32 %v1439, %v2146
      %v2336 = vmul.f32 %v1440, %v2148
      %v2337 = vmul.f32 %v1441, %v2150
      %v2338 = vmul.f32 %v1442, %v2152
      %v2339 = vmul.f32 %v1443, %v2154
      %v2340 = vmul.f32 %v1444, %v2156
      %v2341 = vmul.f32 %v1445, %v2158
      %v2342 = vmul.f32 %v1446, %v2160
      %v2343 = vmul.f32 %v1447, %v2162
      %v2344 = vmul.f32 %v1448, %v2164
      %v2345 = vmul.f32 %v1449, %v2166
      %v2346 = vmul.f32 %v1450, %v2168
      %v2347 = vmul.f32 %v1451, %v2170
      %v2348 = vmul.f32 %v1452, %v2172
      %v2349 = vmul.f32 %v1453, %v2174
      %v2350 = vmul.f32 %v1454, %v2176
      %v2351 = vmul.f32 %v1455, %v2178
      %v2352 = vmul.f32 %v1456, %v2180
      %v2353 = vmul.f32 %v1457, %v2182
      %v2354 = vmul.f32 %v1458, %v2184
      %v2355 = vmul.f32 %v1459, %v2186
      %v2356 = vmul.f32 %v1460, %v2188
      %v2357 = vmul.f32 %v1461, %v2190
      %v2358 = vmul.f32 %v1462, %v2192
      %v2359 = vmul.f32 %v1463, %v2194
      %v2360 = vmul.f32 %v1464, %v2196
      %v2361 = vmul.f32 %v1465, %v2198
      %v2362 = vmul.f32 %v1466, %v2200
      %v2363 = vmul.f32 %v1467, %v2202
      %v2364 = vmul.f32 %v1468, %v2204
      %v2365 = vmul.f32 %v1469, %v2206
      %v2366 = vmul.f32 %v1470, %v2208
      %v2367 = vmul.f32 %v1471, %v2210
      %v2368 = vmul.f32 %v1472, %v2212
      %v2369 = vmul.f32 %v1473, %v2214
      %v2370 = vmul.f32 %v1474, %v2216
      %v2371 = vmul.f32 %v1475, %v2218
      %v2372 = vmul.f32 %v1476, %v2220
      %v2373 = vmul.f32 %v1477, %v2222
      %v2374 = vmul.f32 %v1478, %v2224
      %v2375 = vmul.f32 %v1479, %v2226
      %v2376 = vmul.f32 %v1480, %v2228
      %v2377 = vmul.f32 %v1481, %v2230
      %v2378 = vmul.f32 %v1482, %v2232
      %v2379 = vmul.f32 %v1483, %v2234
      %v2380 = vmul.f32 %v1484, %v2236
      %v2381 = vmul.f32 %v1485, %v2238
      %v2382 = vmul.f32 %v1486, %v2240
      %v2383 = vmul.f32 %v1487, %v2242
      %v2384 = vmul.f32 %v1488, %v2244
      %v2385 = vmul.f32 %v1489, %v2246
      %v2386 = vmul.f32 %v1490, %v2248
      %v2387 = vmul.f32 %v1491, %v2250
      %v2388 = vmul.f32 %v1492, %v2252
      %v2389 = vmul.f32 %v1493, %v2254
      %v2390 = vmul.f32 %v1494, %v2256
      %v2391 = vmul.f32 %v1495, %v2258
      %v2392 = vmul.f32 %v1496, %v2260
      %v2393 = vmul.f32 %v1497, %v2262
      %v2394 = vmul.f32 %v1498, %v2264
      %v2395 = vmul.f32 %v1499, %v2266
      %v2396 = vmul.f32 %v1500, %v2268
      %v2397 = vld [vmem:[%s5] sm:$0x7]
      %v2398 = vld [vmem:[%s6] sm:$0x7]
      %2400 = vset.pattern.permute.xlu0 0
      %2401 = vperm.xlu0 %2400, %v2398
      %v2402 = vpop.permute.xlu0 %2401
      %2404 = vmatprep.subr.mxu0 %v2390
      %2405 = vmatpush1.msra.mxu0 %v2389
      %2406 = vmatprep.subr.mxu0 %v2382
      %2407 = vmatpush1.msra.mxu0 %v2381
      %2408 = vmatprep.subr.mxu0 %v2374
      %2409 = vmatpush1.msra.mxu0 %v2373
      %2410 = vmatprep.subr.mxu0 %v2366
      %2411 = vmatpush1.msra.mxu0 %v2365
      %2412 = vmatprep.subr.mxu0 %v2358
      %2413 = vmatpush1.msra.mxu0 %v2357
      %2414 = vmatprep.subr.mxu0 %v2350
      %2415 = vmatpush1.msra.mxu0 %v2349
      %2416 = vmatprep.subr.mxu0 %v2342
      %2417 = vmatpush1.msra.mxu0 %v2341
      %2418 = vmatprep.subr.mxu0 %v2334
      %2419 = vmatpush1.msra.mxu0 %v2333
      %2420 = vmatprep.subr.mxu0 %v2326
      %2421 = vmatpush1.msra.mxu0 %v2325
      %2422 = vmatprep.subr.mxu0 %v2318
      %2423 = vmatpush1.msra.mxu0 %v2317
      %2424 = vmatprep.subr.mxu0 %v2310
      %2425 = vmatpush1.msra.mxu0 %v2309
      %2426 = vmatprep.subr.mxu0 %v2302
      %2427 = vmatpush1.msra.mxu0 %v2301
      %2428 = vmatprep.subr.mxu0 %v2294
      %2429 = vmatpush1.msra.mxu0 %v2293
      %2430 = vmatprep.subr.mxu0 %v2286
      %2431 = vmatpush1.msra.mxu0 %v2285
      %2432 = vmatprep.subr.mxu0 %v2278
      %2433 = vmatpush1.msra.mxu0 %v2277
      %2434 = vmatprep.subr.mxu0 %v2270
      %2435 = vmatpush1.msra.mxu0 %v2269
      %2436 = vmatprep.subr.mxu0 0.0
      %2437 = vmatpush2.msra.mxu0 0.0
      %2438 = vmatprep.subr.mxu0 0.0
      %2439 = vmatpush2.msra.mxu0 0.0
      %2440 = vmatprep.subr.mxu0 0.0
      %2441 = vmatpush2.msra.mxu0 0.0
      %2442 = vmatprep.subr.mxu0 0.0
      %2443 = vmatpush2.msra.mxu0 0.0
      %2444 = vmatprep.subr.mxu0 0.0
      %2445 = vmatpush2.msra.mxu0 0.0
      %2446 = vmatprep.subr.mxu0 0.0
      %2447 = vmatpush2.msra.mxu0 0.0
      %2448 = vmatprep.subr.mxu0 0.0
      %2449 = vmatpush2.msra.mxu0 0.0
      %2450 = vmatprep.subr.mxu0 0.0
      %2451 = vmatpush2.msra.mxu0 0.0
      %2452 = vmatprep.subr.mxu0 0.0
      %2453 = vmatpush2.msra.mxu0 0.0
      %2454 = vmatprep.subr.mxu0 0.0
      %2455 = vmatpush2.msra.mxu0 0.0
      %2456 = vmatprep.subr.mxu0 0.0
      %2457 = vmatpush2.msra.mxu0 0.0
      %2458 = vmatprep.subr.mxu0 0.0
      %2459 = vmatpush2.msra.mxu0 0.0
      %2460 = vmatprep.subr.mxu0 0.0
      %2461 = vmatpush2.msra.mxu0 0.0
      %2462 = vmatprep.subr.mxu0 0.0
      %2463 = vmatpush2.msra.mxu0 0.0
      %2464 = vmatprep.subr.mxu0 0.0
      %2465 = vmatpush2.msra.mxu0 0.0
      %2466 = vmatprep.subr.mxu0 0.0
      %2467 = vmatpush2.msra.mxu0 0.0
      %2468 = vmatprep.mubr.f32.mxu0 0.0
      %2469 = vmatmul.mubr.f32.gmra.mxu0 %v2397
      %v2470 = vpop.f32.mrf.mxu0
      %v2471 = vadd.f32 %v2402, %v2470
      %v2472 = vpop.f32.mrf.mxu0
      %v2473 = vadd.f32 %v2402, %v2472
      %2474 = vdwg.mxu0
      %2475 = vmatprep.subr.mxu0 %v2392
      %2476 = vmatpush1.msra.mxu0 %v2391
      %2477 = vmatprep.subr.mxu0 %v2384
      %2478 = vmatpush1.msra.mxu0 %v2383
      %2479 = vmatprep.subr.mxu0 %v2376
      %2480 = vmatpush1.msra.mxu0 %v2375
      %2481 = vmatprep.subr.mxu0 %v2368
      %2482 = vmatpush1.msra.mxu0 %v2367
      %2483 = vmatprep.subr.mxu0 %v2360
      %2484 = vmatpush1.msra.mxu0 %v2359
      %2485 = vmatprep.subr.mxu0 %v2352
      %2486 = vmatpush1.msra.mxu0 %v2351
      %2487 = vmatprep.subr.mxu0 %v2344
      %2488 = vmatpush1.msra.mxu0 %v2343
      %2489 = vmatprep.subr.mxu0 %v2336
      %2490 = vmatpush1.msra.mxu0 %v2335
      %2491 = vmatprep.subr.mxu0 %v2328
      %2492 = vmatpush1.msra.mxu0 %v2327
      %2493 = vmatprep.subr.mxu0 %v2320
      %2494 = vmatpush1.msra.mxu0 %v2319
      %2495 = vmatprep.subr.mxu0 %v2312
      %2496 = vmatpush1.msra.mxu0 %v2311
      %2497 = vmatprep.subr.mxu0 %v2304
      %2498 = vmatpush1.msra.mxu0 %v2303
      %2499 = vmatprep.subr.mxu0 %v2296
      %2500 = vmatpush1.msra.mxu0 %v2295
      %2501 = vmatprep.subr.mxu0 %v2288
      %2502 = vmatpush1.msra.mxu0 %v2287
      %2503 = vmatprep.subr.mxu0 %v2280
      %2504 = vmatpush1.msra.mxu0 %v2279
      %2505 = vmatprep.subr.mxu0 %v2272
      %2506 = vmatpush1.msra.mxu0 %v2271
      %2507 = vmatprep.subr.mxu0 0.0
      %2508 = vmatpush2.msra.mxu0 0.0
      %2509 = vmatprep.subr.mxu0 0.0
      %2510 = vmatpush2.msra.mxu0 0.0
      %2511 = vmatprep.subr.mxu0 0.0
      %2512 = vmatpush2.msra.mxu0 0.0
      %2513 = vmatprep.subr.mxu0 0.0
      %2514 = vmatpush2.msra.mxu0 0.0
      %2515 = vmatprep.subr.mxu0 0.0
      %2516 = vmatpush2.msra.mxu0 0.0
      %2517 = vmatprep.subr.mxu0 0.0
      %2518 = vmatpush2.msra.mxu0 0.0
      %2519 = vmatprep.subr.mxu0 0.0
      %2520 = vmatpush2.msra.mxu0 0.0
      %2521 = vmatprep.subr.mxu0 0.0
      %2522 = vmatpush2.msra.mxu0 0.0
      %2523 = vmatprep.subr.mxu0 0.0
      %2524 = vmatpush2.msra.mxu0 0.0
      %2525 = vmatprep.subr.mxu0 0.0
      %2526 = vmatpush2.msra.mxu0 0.0
      %2527 = vmatprep.subr.mxu0 0.0
      %2528 = vmatpush2.msra.mxu0 0.0
      %2529 = vmatprep.subr.mxu0 0.0
      %2530 = vmatpush2.msra.mxu0 0.0
      %2531 = vmatprep.subr.mxu0 0.0
      %2532 = vmatpush2.msra.mxu0 0.0
      %2533 = vmatprep.subr.mxu0 0.0
      %2534 = vmatpush2.msra.mxu0 0.0
      %2535 = vmatprep.subr.mxu0 0.0
      %2536 = vmatpush2.msra.mxu0 0.0
      %2537 = vmatprep.subr.mxu0 0.0
      %2538 = vmatpush2.msra.mxu0 0.0
      %2539 = vmatprep.mubr.f32.mxu0 0.0
      %2540 = vmatmul.mubr.f32.gmra.mxu0 %v2397
      %v2541 = vpop.f32.mrf.mxu0
      %v2542 = vadd.f32 %v2402, %v2541
      %v2543 = vpop.f32.mrf.mxu0
      %v2544 = vadd.f32 %v2402, %v2543
      %2545 = vdwg.mxu0
      %2546 = vmatprep.subr.mxu0 %v2394
      %2547 = vmatpush1.msra.mxu0 %v2393
      %2548 = vmatprep.subr.mxu0 %v2386
      %2549 = vmatpush1.msra.mxu0 %v2385
      %2550 = vmatprep.subr.mxu0 %v2378
      %2551 = vmatpush1.msra.mxu0 %v2377
      %2552 = vmatprep.subr.mxu0 %v2370
      %2553 = vmatpush1.msra.mxu0 %v2369
      %2554 = vmatprep.subr.mxu0 %v2362
      %2555 = vmatpush1.msra.mxu0 %v2361
      %2556 = vmatprep.subr.mxu0 %v2354
      %2557 = vmatpush1.msra.mxu0 %v2353
      %2558 = vmatprep.subr.mxu0 %v2346
      %2559 = vmatpush1.msra.mxu0 %v2345
      %2560 = vmatprep.subr.mxu0 %v2338
      %2561 = vmatpush1.msra.mxu0 %v2337
      %2562 = vmatprep.subr.mxu0 %v2330
      %2563 = vmatpush1.msra.mxu0 %v2329
      %2564 = vmatprep.subr.mxu0 %v2322
      %2565 = vmatpush1.msra.mxu0 %v2321
      %2566 = vmatprep.subr.mxu0 %v2314
      %2567 = vmatpush1.msra.mxu0 %v2313
      %2568 = vmatprep.subr.mxu0 %v2306
      %2569 = vmatpush1.msra.mxu0 %v2305
      %2570 = vmatprep.subr.mxu0 %v2298
      %2571 = vmatpush1.msra.mxu0 %v2297
      %2572 = vmatprep.subr.mxu0 %v2290
      %2573 = vmatpush1.msra.mxu0 %v2289
      %2574 = vmatprep.subr.mxu0 %v2282
      %2575 = vmatpush1.msra.mxu0 %v2281
      %2576 = vmatprep.subr.mxu0 %v2274
      %2577 = vmatpush1.msra.mxu0 %v2273
      %2578 = vmatprep.subr.mxu0 0.0
      %2579 = vmatpush2.msra.mxu0 0.0
      %2580 = vmatprep.subr.mxu0 0.0
      %2581 = vmatpush2.msra.mxu0 0.0
      %2582 = vmatprep.subr.mxu0 0.0
      %2583 = vmatpush2.msra.mxu0 0.0
      %2584 = vmatprep.subr.mxu0 0.0
      %2585 = vmatpush2.msra.mxu0 0.0
      %2586 = vmatprep.subr.mxu0 0.0
      %2587 = vmatpush2.msra.mxu0 0.0
      %2588 = vmatprep.subr.mxu0 0.0
      %2589 = vmatpush2.msra.mxu0 0.0
      %2590 = vmatprep.subr.mxu0 0.0
      %2591 = vmatpush2.msra.mxu0 0.0
      %2592 = vmatprep.subr.mxu0 0.0
      %2593 = vmatpush2.msra.mxu0 0.0
      %2594 = vmatprep.subr.mxu0 0.0
      %2595 = vmatpush2.msra.mxu0 0.0
      %2596 = vmatprep.subr.mxu0 0.0
      %2597 = vmatpush2.msra.mxu0 0.0
      %2598 = vmatprep.subr.mxu0 0.0
      %2599 = vmatpush2.msra.mxu0 0.0
      %2600 = vmatprep.subr.mxu0 0.0
      %2601 = vmatpush2.msra.mxu0 0.0
      %2602 = vmatprep.subr.mxu0 0.0
      %2603 = vmatpush2.msra.mxu0 0.0
      %2604 = vmatprep.subr.mxu0 0.0
      %2605 = vmatpush2.msra.mxu0 0.0
      %2606 = vmatprep.subr.mxu0 0.0
      %2607 = vmatpush2.msra.mxu0 0.0
      %2608 = vmatprep.subr.mxu0 0.0
      %2609 = vmatpush2.msra.mxu0 0.0
      %2610 = vmatprep.mubr.f32.mxu0 0.0
      %2611 = vmatmul.mubr.f32.gmra.mxu0 %v2397
      %v2612 = vpop.f32.mrf.mxu0
      %v2613 = vadd.f32 %v2402, %v2612
      %v2614 = vpop.f32.mrf.mxu0
      %v2615 = vadd.f32 %v2402, %v2614
      %2616 = vdwg.mxu0
      %2617 = vmatprep.subr.mxu0 %v2396
      %2618 = vmatpush1.msra.mxu0 %v2395
      %2619 = vmatprep.subr.mxu0 %v2388
      %2620 = vmatpush1.msra.mxu0 %v2387
      %2621 = vmatprep.subr.mxu0 %v2380
      %2622 = vmatpush1.msra.mxu0 %v2379
      %2623 = vmatprep.subr.mxu0 %v2372
      %2624 = vmatpush1.msra.mxu0 %v2371
      %2625 = vmatprep.subr.mxu0 %v2364
      %2626 = vmatpush1.msra.mxu0 %v2363
      %2627 = vmatprep.subr.mxu0 %v2356
      %2628 = vmatpush1.msra.mxu0 %v2355
      %2629 = vmatprep.subr.mxu0 %v2348
      %2630 = vmatpush1.msra.mxu0 %v2347
      %2631 = vmatprep.subr.mxu0 %v2340
      %2632 = vmatpush1.msra.mxu0 %v2339
      %2633 = vmatprep.subr.mxu0 %v2332
      %2634 = vmatpush1.msra.mxu0 %v2331
      %2635 = vmatprep.subr.mxu0 %v2324
      %2636 = vmatpush1.msra.mxu0 %v2323
      %2637 = vmatprep.subr.mxu0 %v2316
      %2638 = vmatpush1.msra.mxu0 %v2315
      %2639 = vmatprep.subr.mxu0 %v2308
      %2640 = vmatpush1.msra.mxu0 %v2307
      %2641 = vmatprep.subr.mxu0 %v2300
      %2642 = vmatpush1.msra.mxu0 %v2299
      %2643 = vmatprep.subr.mxu0 %v2292
      %2644 = vmatpush1.msra.mxu0 %v2291
      %2645 = vmatprep.subr.mxu0 %v2284
      %2646 = vmatpush1.msra.mxu0 %v2283
      %2647 = vmatprep.subr.mxu0 %v2276
      %2648 = vmatpush1.msra.mxu0 %v2275
      %2649 = vmatprep.subr.mxu0 0.0
      %2650 = vmatpush2.msra.mxu0 0.0
      %2651 = vmatprep.subr.mxu0 0.0
      %2652 = vmatpush2.msra.mxu0 0.0
      %2653 = vmatprep.subr.mxu0 0.0
      %2654 = vmatpush2.msra.mxu0 0.0
      %2655 = vmatprep.subr.mxu0 0.0
      %2656 = vmatpush2.msra.mxu0 0.0
      %2657 = vmatprep.subr.mxu0 0.0
      %2658 = vmatpush2.msra.mxu0 0.0
      %2659 = vmatprep.subr.mxu0 0.0
      %2660 = vmatpush2.msra.mxu0 0.0
      %2661 = vmatprep.subr.mxu0 0.0
      %2662 = vmatpush2.msra.mxu0 0.0
      %2663 = vmatprep.subr.mxu0 0.0
      %2664 = vmatpush2.msra.mxu0 0.0
      %2665 = vmatprep.subr.mxu0 0.0
      %2666 = vmatpush2.msra.mxu0 0.0
      %2667 = vmatprep.subr.mxu0 0.0
      %2668 = vmatpush2.msra.mxu0 0.0
      %2669 = vmatprep.subr.mxu0 0.0
      %2670 = vmatpush2.msra.mxu0 0.0
      %2671 = vmatprep.subr.mxu0 0.0
      %2672 = vmatpush2.msra.mxu0 0.0
      %2673 = vmatprep.subr.mxu0 0.0
      %2674 = vmatpush2.msra.mxu0 0.0
      %2675 = vmatprep.subr.mxu0 0.0
      %2676 = vmatpush2.msra.mxu0 0.0
      %2677 = vmatprep.subr.mxu0 0.0
      %2678 = vmatpush2.msra.mxu0 0.0
      %2679 = vmatprep.subr.mxu0 0.0
      %2680 = vmatpush2.msra.mxu0 0.0
      %2681 = vmatprep.mubr.f32.mxu0 0.0
      %2682 = vmatmul.mubr.f32.gmra.mxu0 %v2397
      %v2683 = vpop.f32.mrf.mxu0
      %v2684 = vadd.f32 %v2402, %v2683
      %v2685 = vpop.f32.mrf.mxu0
      %v2686 = vadd.f32 %v2402, %v2685
      %2687 = vdwg.mxu0
      %v2696 = vcombine.low %v2471, %v2473
      %v2697 = vcombine.low %v2542, %v2544
      %v2698 = vcombine.low %v2613, %v2615
      %v2699 = vcombine.low %v2684, %v2686
      %2704 = vst [vmem:[%s356] sm:$0x77] %v2696
      %2705 = vst [vmem:[%s356 + $0x8] sm:$0x77] %v2697
      %2706 = vst [vmem:[%s356 + $0x10] sm:$0x77] %v2698
      %2707 = vst [vmem:[%s356 + $0x18] sm:$0x77] %v2699
      %s2708 = smul.u32 8, %s23
      %p2709 = scmp.lt.s32.totalorder %s22, 1
      %s2710 = scalar_select %p2709, %s22, 1
      %p2711 = scmp.lt.s32.totalorder %s2708, 15
      %s2712 = scalar_select %p2711, %s2708, 15
      %s2713 = smul.addr %s2710, 16
      %s2714 = sadd.s32 %s2712, %s2713
      %s2715 = smul.addr %s2714, 4
      %s2716 = scalar_lea.vmem %s7, %s2715
      // Predicated region
      $region49: #{forward.3} parent=47 // pred_check
        %p2717 = pneg %p214
      $region50: #{forward.3} parent=47 // pred_check_branch
        %2719 = sbr.rel (%p2717) target = $region52
      $region51: #{forward.3} parent=47 // pred_region
        %s2720 = smul.u32 8, %s23
      $region52: #{forward.3} parent=47 // pred_fallthru
        _
    $region48: #{forward.3} parent=5 // pred_fallthru
      _
    %p2721 = scmp.le.s32.totalorder 2, %s13
    // Predicated region
    $region53: #{forward.3} parent=5 // pred_check
      %p2722 = pneg %p2721
    $region54: #{forward.3} parent=5 // pred_check_branch
      %2724 = sbr.rel (%p2722) target = $region56
    $region55: #{forward.3} parent=5 // pred_region
      %s2725 = ssub.s32 %s13, 2
      // Predicated region
      $region57: #{forward.3} parent=55 // pred_check
        %p2726 = pneg %p220
      $region58: #{forward.3} parent=55 // pred_check_branch
        %2728 = sbr.rel (%p2726) target = $region60
      $region59: #{forward.3} parent=55 // pred_region
        %s2729 = smul.u32 8, %s25
        %p2730 = scmp.lt.s32.totalorder %s24, 1
        %s2731 = scalar_select %p2730, %s24, 1
        %p2732 = scmp.lt.s32.totalorder %s2729, 15
        %s2733 = scalar_select %p2732, %s2729, 15
        %s2734 = smul.addr %s2731, 16
        %s2735 = sadd.s32 %s2733, %s2734
        %s2736 = smul.addr %s2735, 4
        %s2737 = scalar_lea.vmem %s7, %s2736
      $region60: #{forward.3} parent=55 // pred_fallthru
        _
    $region56: #{forward.3} parent=5 // pred_fallthru
      _
  $region6: #{forward.3} parent=0 // loop_footer
    %s17 = sadd.s32 1, %s13
  $region7: #{forward.3} parent=0 // loop_footer_branch
    %12 = sbr.rel target = $region3
  $region8: #{forward.3} parent=0 // loop_exit
    _

// kernel: forward.2
$region0: #{forward.2}
  #allocation0 [shape = 'u32[]', space=smem, size = 0x4, offset = 0x4, fixed_abs, tag = 'smem constant byte address 0x4 - core index']
  #allocation1 [shape = 'u32[144,128]{1,0:T(1,128)}', space=vmem, size = 0x12000, scoped, tag = 'internal scratch']
  %s0 = inlined_call_operand.vmem [shape: f32[8,128], index: 0, kind: input, shape index: {}]
  %s1 = inlined_call_operand.vmem [shape: f32[8,512], index: 1, kind: input, shape index: {}]
  %s2 = inlined_call_operand.hbm [shape: f32[128,512], index: 2, kind: input, shape index: {}]
  %s3 = inlined_call_operand.vmem [shape: f32[1,512], index: 3, kind: input, shape index: {}]
  %s4 = inlined_call_operand.hbm [shape: f32[512,512], index: 4, kind: input, shape index: {}]
  %s5 = inlined_call_operand.vmem [shape: f32[1,512], index: 5, kind: input, shape index: {}]
  %s6 = inlined_call_operand.hbm [shape: f32[512,512], index: 6, kind: input, shape index: {}]
  %s7 = inlined_call_operand.vmem [shape: f32[1,512], index: 7, kind: input, shape index: {}]
  %s8 = inlined_call_operand.hbm [shape: f32[512,256], index: 8, kind: input, shape index: {}]
  %s9 = inlined_call_operand.vmem [shape: f32[1,256], index: 9, kind: input, shape index: {}]
  %s10 = inlined_call_operand.vmem [shape: f32[8,256], index: 10, kind: output, shape index: {}]
  %s11 = sld [smem:[#allocation0]]
  $region66: #{forward.2} parent=0
    _
  %s13 = ssub.s32 1, %s11
  %s14 = scalar_select 0, %s13, %s11
  $region1: #{forward.2} parent=0
    #allocation2 [shape = 'u8[262144]{0}', space=vmem, size = 0x40000, scoped, tag = 'input window, operand 2, single buffered']
    #allocation3 [shape = 's32[1]{0}', space=sflag, size = 0x4, scoped, tag = 'scoped memory for forward.2']
    #allocation4 [shape = 'u8[1048576]{0}', space=vmem, size = 0x100000, scoped, tag = 'input window, operand 4, single buffered']
    #allocation5 [shape = 's32[1]{0}', space=sflag, size = 0x4, scoped, tag = 'scoped memory for forward.2']
    #allocation6 [shape = 'u8[1048576]{0}', space=vmem, size = 0x100000, scoped, tag = 'input window, operand 6, single buffered']
    #allocation7 [shape = 'u8[524288]{0}', space=vmem, size = 0x80000, scoped, tag = 'input window, operand 8, single buffered']
    #allocation8 [shape = 's32[1]{0}', space=sflag, size = 0x4, scoped, tag = 'scoped memory for forward.2']
    %15 = vsyncpa [#allocation3], 0
    %16 = vsyncpa [#allocation5], 0
    %17 = vsyncpa [#allocation8], 0
    // Predicated region
    $region2: #{forward.2} parent=1 // pred_check
      _
    $region3: #{forward.2} parent=1 // pred_check_branch
      %19 = sbr.rel (0) target = $region5
    $region4: #{forward.2} parent=1 // pred_region
      _
    $region5: #{forward.2} parent=1 // pred_fallthru
      _
    // Predicated region
    $region6: #{forward.2} parent=1 // pred_check
      _
    $region7: #{forward.2} parent=1 // pred_check_branch
      %21 = sbr.rel (0) target = $region9
    $region8: #{forward.2} parent=1 // pred_region
      _
    $region9: #{forward.2} parent=1 // pred_fallthru
      _
    // Predicated region
    $region10: #{forward.2} parent=1 // pred_check
      _
    $region11: #{forward.2} parent=1 // pred_check_branch
      %23 = sbr.rel (0) target = $region13
    $region12: #{forward.2} parent=1 // pred_region
      %s25 = ssub.s32 8192, 8192
      %26 = vsyncadd [#allocation3], %s25
      %s27 = sshll.u32 [#allocation2], 4
      %s28 = int_to_ptr.vmem [resolvable:$true] %s27
      %33 = dma.hbm_to_vmem [thread:$0]  %s2, 8192, %s28, [#allocation3], 512, 512, 32
    $region13: #{forward.2} parent=1 // pred_fallthru
      _
    // Predicated region
    $region14: #{forward.2} parent=1 // pred_check
      _
    $region15: #{forward.2} parent=1 // pred_check_branch
      %35 = sbr.rel (0) target = $region17
    $region16: #{forward.2} parent=1 // pred_region
      _
    $region17: #{forward.2} parent=1 // pred_fallthru
      _
    // Predicated region
    $region18: #{forward.2} parent=1 // pred_check
      _
    $region19: #{forward.2} parent=1 // pred_check_branch
      %37 = sbr.rel (0) target = $region21
    $region20: #{forward.2} parent=1 // pred_region
      %s39 = ssub.s32 32768, 32768
      %40 = vsyncadd [#allocation5], %s39
      %s41 = sshll.u32 [#allocation4], 4
      %s42 = int_to_ptr.vmem [resolvable:$true] %s41
      %47 = dma.hbm_to_vmem [thread:$0]  %s4, 32768, %s42, [#allocation5], 512, 512, 32
    $region21: #{forward.2} parent=1 // pred_fallthru
      _
    // Predicated region
    $region22: #{forward.2} parent=1 // pred_check
      _
    $region23: #{forward.2} parent=1 // pred_check_branch
      %49 = sbr.rel (0) target = $region25
    $region24: #{forward.2} parent=1 // pred_region
      _
    $region25: #{forward.2} parent=1 // pred_fallthru
      _
    // Predicated region
    $region26: #{forward.2} parent=1 // pred_check
      _
    $region27: #{forward.2} parent=1 // pred_check_branch
      %51 = sbr.rel (0) target = $region29
    $region28: #{forward.2} parent=1 // pred_region
      %s53 = ssub.s32 32768, 32768
      %54 = vsyncadd [#allocation5], %s53
      %s55 = sshll.u32 [#allocation6], 4
      %s56 = int_to_ptr.vmem [resolvable:$true] %s55
      %61 = dma.hbm_to_vmem [thread:$0]  %s6, 32768, %s56, [#allocation5], 512, 512, 32
    $region29: #{forward.2} parent=1 // pred_fallthru
      _
    // Predicated region
    $region30: #{forward.2} parent=1 // pred_check
      _
    $region31: #{forward.2} parent=1 // pred_check_branch
      %63 = sbr.rel (0) target = $region33
    $region32: #{forward.2} parent=1 // pred_region
      _
    $region33: #{forward.2} parent=1 // pred_fallthru
      _
    // Predicated region
    $region34: #{forward.2} parent=1 // pred_check
      _
    $region35: #{forward.2} parent=1 // pred_check_branch
      %65 = sbr.rel (0) target = $region37
    $region36: #{forward.2} parent=1 // pred_region
      %s67 = ssub.s32 16384, 16384
      %68 = vsyncadd [#allocation8], %s67
      %s69 = sshll.u32 [#allocation7], 4
      %s70 = int_to_ptr.vmem [resolvable:$true] %s69
      %75 = dma.hbm_to_vmem [thread:$0]  %s8, 16384, %s70, [#allocation8], 256, 256, 16
    $region37: #{forward.2} parent=1 // pred_fallthru
      _
    // Predicated region
    $region38: #{forward.2} parent=1 // pred_check
      _
    $region39: #{forward.2} parent=1 // pred_check_branch
      %77 = sbr.rel (0) target = $region41
    $region40: #{forward.2} parent=1 // pred_region
      _
    $region41: #{forward.2} parent=1 // pred_fallthru
      _
    // Predicated region
    $region42: #{forward.2} parent=1 // pred_check
      _
    $region43: #{forward.2} parent=1 // pred_check_branch
      %79 = sbr.rel (0) target = $region45
    $region44: #{forward.2} parent=1 // pred_region
      %80 = dma.done [#allocation3], 8192
    $region45: #{forward.2} parent=1 // pred_fallthru
      _
    // Predicated region
    $region46: #{forward.2} parent=1 // pred_check
      _
    $region47: #{forward.2} parent=1 // pred_check_branch
      %82 = sbr.rel (0) target = $region49
    $region48: #{forward.2} parent=1 // pred_region
      %83 = dma.done [#allocation5], 32768
    $region49: #{forward.2} parent=1 // pred_fallthru
      _
    // Predicated region
    $region50: #{forward.2} parent=1 // pred_check
      _
    $region51: #{forward.2} parent=1 // pred_check_branch
      %85 = sbr.rel (0) target = $region53
    $region52: #{forward.2} parent=1 // pred_region
      %86 = dma.done [#allocation5], 32768
    $region53: #{forward.2} parent=1 // pred_fallthru
      _
    // Predicated region
    $region54: #{forward.2} parent=1 // pred_check
      _
    $region55: #{forward.2} parent=1 // pred_check_branch
      %88 = sbr.rel (0) target = $region57
    $region56: #{forward.2} parent=1 // pred_region
      %89 = dma.done [#allocation8], 16384
    $region57: #{forward.2} parent=1 // pred_fallthru
      _
    %v90 = vld [vmem:[%s0] sm:$0xff]
    %v91 = vld [vmem:[#allocation2] sm:$0xff]
    %v92 = vld [vmem:[#allocation2 + $0x8] sm:$0xff]
    %v93 = vld [vmem:[#allocation2 + $0x10] sm:$0xff]
    %v94 = vld [vmem:[#allocation2 + $0x18] sm:$0xff]
    %v95 = vld [vmem:[#allocation2 + $0x20] sm:$0xff]
    %v96 = vld [vmem:[#allocation2 + $0x28] sm:$0xff]
    %v97 = vld [vmem:[#allocation2 + $0x30] sm:$0xff]
    %v98 = vld [vmem:[#allocation2 + $0x38] sm:$0xff]
    %v99 = vld [vmem:[#allocation2 + $0x40] sm:$0xff]
    %v100 = vld [vmem:[#allocation2 + $0x48] sm:$0xff]
    %v101 = vld [vmem:[#allocation2 + $0x50] sm:$0xff]
    %v102 = vld [vmem:[#allocation2 + $0x58] sm:$0xff]
    %v103 = vld [vmem:[#allocation2 + $0x60] sm:$0xff]
    %v104 = vld [vmem:[#allocation2 + $0x68] sm:$0xff]
    %v105 = vld [vmem:[#allocation2 + $0x70] sm:$0xff]
    %v106 = vld [vmem:[#allocation2 + $0x78] sm:$0xff]
    %v107 = vld [vmem:[#allocation2 + $0x80] sm:$0xff]
    %v108 = vld [vmem:[#allocation2 + $0x88] sm:$0xff]
    %v109 = vld [vmem:[#allocation2 + $0x90] sm:$0xff]
    %v110 = vld [vmem:[#allocation2 + $0x98] sm:$0xff]
    %v111 = vld [vmem:[#allocation2 + $0xa0] sm:$0xff]
    %v112 = vld [vmem:[#allocation2 + $0xa8] sm:$0xff]
    %v113 = vld [vmem:[#allocation2 + $0xb0] sm:$0xff]
    %v114 = vld [vmem:[#allocation2 + $0xb8] sm:$0xff]
    %v115 = vld [vmem:[#allocation2 + $0xc0] sm:$0xff]
    %v116 = vld [vmem:[#allocation2 + $0xc8] sm:$0xff]
    %v117 = vld [vmem:[#allocation2 + $0xd0] sm:$0xff]
    %v118 = vld [vmem:[#allocation2 + $0xd8] sm:$0xff]
    %v119 = vld [vmem:[#allocation2 + $0xe0] sm:$0xff]
    %v120 = vld [vmem:[#allocation2 + $0xe8] sm:$0xff]
    %v121 = vld [vmem:[#allocation2 + $0xf0] sm:$0xff]
    %v122 = vld [vmem:[#allocation2 + $0xf8] sm:$0xff]
    %v123 = vld [vmem:[#allocation2 + $0x100] sm:$0xff]
    %v124 = vld [vmem:[#allocation2 + $0x108] sm:$0xff]
    %v125 = vld [vmem:[#allocation2 + $0x110] sm:$0xff]
    %v126 = vld [vmem:[#allocation2 + $0x118] sm:$0xff]
    %v127 = vld [vmem:[#allocation2 + $0x120] sm:$0xff]
    %v128 = vld [vmem:[#allocation2 + $0x128] sm:$0xff]
    %v129 = vld [vmem:[#allocation2 + $0x130] sm:$0xff]
    %v130 = vld [vmem:[#allocation2 + $0x138] sm:$0xff]
    %v131 = vld [vmem:[#allocation2 + $0x140] sm:$0xff]
    %v132 = vld [vmem:[#allocation2 + $0x148] sm:$0xff]
    %v133 = vld [vmem:[#allocation2 + $0x150] sm:$0xff]
    %v134 = vld [vmem:[#allocation2 + $0x158] sm:$0xff]
    %v135 = vld [vmem:[#allocation2 + $0x160] sm:$0xff]
    %v136 = vld [vmem:[#allocation2 + $0x168] sm:$0xff]
    %v137 = vld [vmem:[#allocation2 + $0x170] sm:$0xff]
    %v138 = vld [vmem:[#allocation2 + $0x178] sm:$0xff]
    %v139 = vld [vmem:[#allocation2 + $0x180] sm:$0xff]
    %v140 = vld [vmem:[#allocation2 + $0x188] sm:$0xff]
    %v141 = vld [vmem:[#allocation2 + $0x190] sm:$0xff]
    %v142 = vld [vmem:[#allocation2 + $0x198] sm:$0xff]
    %v143 = vld [vmem:[#allocation2 + $0x1a0] sm:$0xff]
    %v144 = vld [vmem:[#allocation2 + $0x1a8] sm:$0xff]
    %v145 = vld [vmem:[#allocation2 + $0x1b0] sm:$0xff]
    %v146 = vld [vmem:[#allocation2 + $0x1b8] sm:$0xff]
    %v147 = vld [vmem:[#allocation2 + $0x1c0] sm:$0xff]
    %v148 = vld [vmem:[#allocation2 + $0x1c8] sm:$0xff]
    %v149 = vld [vmem:[#allocation2 + $0x1d0] sm:$0xff]
    %v150 = vld [vmem:[#allocation2 + $0x1d8] sm:$0xff]
    %v151 = vld [vmem:[#allocation2 + $0x1e0] sm:$0xff]
    %v152 = vld [vmem:[#allocation2 + $0x1e8] sm:$0xff]
    %v153 = vld [vmem:[#allocation2 + $0x1f0] sm:$0xff]
    %v154 = vld [vmem:[#allocation2 + $0x1f8] sm:$0xff]
    %v155 = vld [vmem:[%s3] sm:$0xf]
    %v157 = vlaneseq
    %v158 = vshrl.u32 %v157, 7
    %v159 = vsub.s32 0, %v158
    %v160 = vrot.slane %v155, %v159
    %v161 = vlaneseq
    %v162 = vshrl.u32 %v161, 7
    %v163 = vsub.s32 1, %v162
    %v164 = vrot.slane %v155, %v163
    %v165 = vlaneseq
    %v166 = vshrl.u32 %v165, 7
    %v167 = vsub.s32 2, %v166
    %v168 = vrot.slane %v155, %v167
    %v169 = vlaneseq
    %v170 = vshrl.u32 %v169, 7
    %v171 = vsub.s32 3, %v170
    %v172 = vrot.slane %v155, %v171
    %177 = vmatprep.subr.mxu0 %v152
    %178 = vmatpush1.msra.mxu0 %v151
    %179 = vmatprep.subr.mxu0 %v148
    %180 = vmatpush1.msra.mxu0 %v147
    %181 = vmatprep.subr.mxu0 %v144
    %182 = vmatpush1.msra.mxu0 %v143
    %183 = vmatprep.subr.mxu0 %v140
    %184 = vmatpush1.msra.mxu0 %v139
    %185 = vmatprep.subr.mxu0 %v136
    %186 = vmatpush1.msra.mxu0 %v135
    %187 = vmatprep.subr.mxu0 %v132
    %188 = vmatpush1.msra.mxu0 %v131
    %189 = vmatprep.subr.mxu0 %v128
    %190 = vmatpush1.msra.mxu0 %v127
    %191 = vmatprep.subr.mxu0 %v124
    %192 = vmatpush1.msra.mxu0 %v123
    %193 = vmatprep.subr.mxu0 %v120
    %194 = vmatpush1.msra.mxu0 %v119
    %195 = vmatprep.subr.mxu0 %v116
    %196 = vmatpush1.msra.mxu0 %v115
    %197 = vmatprep.subr.mxu0 %v112
    %198 = vmatpush1.msra.mxu0 %v111
    %199 = vmatprep.subr.mxu0 %v108
    %200 = vmatpush1.msra.mxu0 %v107
    %201 = vmatprep.subr.mxu0 %v104
    %202 = vmatpush1.msra.mxu0 %v103
    %203 = vmatprep.subr.mxu0 %v100
    %204 = vmatpush1.msra.mxu0 %v99
    %205 = vmatprep.subr.mxu0 %v96
    %206 = vmatpush1.msra.mxu0 %v95
    %207 = vmatprep.subr.mxu0 %v92
    %208 = vmatpush1.msra.mxu0 %v91
    %209 = vmatprep.subr.mxu0 0.0
    %210 = vmatpush2.msra.mxu0 0.0
    %211 = vmatprep.subr.mxu0 0.0
    %212 = vmatpush2.msra.mxu0 0.0
    %213 = vmatprep.subr.mxu0 0.0
    %214 = vmatpush2.msra.mxu0 0.0
    %215 = vmatprep.subr.mxu0 0.0
    %216 = vmatpush2.msra.mxu0 0.0
    %217 = vmatprep.subr.mxu0 0.0
    %218 = vmatpush2.msra.mxu0 0.0
    %219 = vmatprep.subr.mxu0 0.0
    %220 = vmatpush2.msra.mxu0 0.0
    %221 = vmatprep.subr.mxu0 0.0
    %222 = vmatpush2.msra.mxu0 0.0
    %223 = vmatprep.subr.mxu0 0.0
    %224 = vmatpush2.msra.mxu0 0.0
    %225 = vmatprep.subr.mxu0 0.0
    %226 = vmatpush2.msra.mxu0 0.0
    %227 = vmatprep.subr.mxu0 0.0
    %228 = vmatpush2.msra.mxu0 0.0
    %229 = vmatprep.subr.mxu0 0.0
    %230 = vmatpush2.msra.mxu0 0.0
    %231 = vmatprep.subr.mxu0 0.0
    %232 = vmatpush2.msra.mxu0 0.0
    %233 = vmatprep.subr.mxu0 0.0
    %234 = vmatpush2.msra.mxu0 0.0
    %235 = vmatprep.subr.mxu0 0.0
    %236 = vmatpush2.msra.mxu0 0.0
    %237 = vmatprep.subr.mxu0 0.0
    %238 = vmatpush2.msra.mxu0 0.0
    %239 = vmatprep.subr.mxu0 0.0
    %240 = vmatpush2.msra.mxu0 0.0
    %241 = vmatprep.mubr.f32.mxu0 0.0
    %242 = vmatmul.mubr.f32.gmra.mxu0 %v90
    %v243 = vpop.f32.mrf.mxu0
    %v244 = vadd.f32 %v160, %v243
    %v245 = vpop.f32.mrf.mxu0
    %v246 = vadd.f32 %v164, %v245
    %247 = vdwg.mxu0
    %248 = vmatprep.subr.mxu0 %v154
    %249 = vmatpush1.msra.mxu0 %v153
    %250 = vmatprep.subr.mxu0 %v150
    %251 = vmatpush1.msra.mxu0 %v149
    %252 = vmatprep.subr.mxu0 %v146
    %253 = vmatpush1.msra.mxu0 %v145
    %254 = vmatprep.subr.mxu0 %v142
    %255 = vmatpush1.msra.mxu0 %v141
    %256 = vmatprep.subr.mxu0 %v138
    %257 = vmatpush1.msra.mxu0 %v137
    %258 = vmatprep.subr.mxu0 %v134
    %259 = vmatpush1.msra.mxu0 %v133
    %260 = vmatprep.subr.mxu0 %v130
    %261 = vmatpush1.msra.mxu0 %v129
    %262 = vmatprep.subr.mxu0 %v126
    %263 = vmatpush1.msra.mxu0 %v125
    %264 = vmatprep.subr.mxu0 %v122
    %265 = vmatpush1.msra.mxu0 %v121
    %266 = vmatprep.subr.mxu0 %v118
    %267 = vmatpush1.msra.mxu0 %v117
    %268 = vmatprep.subr.mxu0 %v114
    %269 = vmatpush1.msra.mxu0 %v113
    %270 = vmatprep.subr.mxu0 %v110
    %271 = vmatpush1.msra.mxu0 %v109
    %272 = vmatprep.subr.mxu0 %v106
    %273 = vmatpush1.msra.mxu0 %v105
    %274 = vmatprep.subr.mxu0 %v102
    %275 = vmatpush1.msra.mxu0 %v101
    %276 = vmatprep.subr.mxu0 %v98
    %277 = vmatpush1.msra.mxu0 %v97
    %278 = vmatprep.subr.mxu0 %v94
    %279 = vmatpush1.msra.mxu0 %v93
    %280 = vmatprep.subr.mxu0 0.0
    %281 = vmatpush2.msra.mxu0 0.0
    %282 = vmatprep.subr.mxu0 0.0
    %283 = vmatpush2.msra.mxu0 0.0
    %284 = vmatprep.subr.mxu0 0.0
    %285 = vmatpush2.msra.mxu0 0.0
    %286 = vmatprep.subr.mxu0 0.0
    %287 = vmatpush2.msra.mxu0 0.0
    %288 = vmatprep.subr.mxu0 0.0
    %289 = vmatpush2.msra.mxu0 0.0
    %290 = vmatprep.subr.mxu0 0.0
    %291 = vmatpush2.msra.mxu0 0.0
    %292 = vmatprep.subr.mxu0 0.0
    %293 = vmatpush2.msra.mxu0 0.0
    %294 = vmatprep.subr.mxu0 0.0
    %295 = vmatpush2.msra.mxu0 0.0
    %296 = vmatprep.subr.mxu0 0.0
    %297 = vmatpush2.msra.mxu0 0.0
    %298 = vmatprep.subr.mxu0 0.0
    %299 = vmatpush2.msra.mxu0 0.0
    %300 = vmatprep.subr.mxu0 0.0
    %301 = vmatpush2.msra.mxu0 0.0
    %302 = vmatprep.subr.mxu0 0.0
    %303 = vmatpush2.msra.mxu0 0.0
    %304 = vmatprep.subr.mxu0 0.0
    %305 = vmatpush2.msra.mxu0 0.0
    %306 = vmatprep.subr.mxu0 0.0
    %307 = vmatpush2.msra.mxu0 0.0
    %308 = vmatprep.subr.mxu0 0.0
    %309 = vmatpush2.msra.mxu0 0.0
    %310 = vmatprep.subr.mxu0 0.0
    %311 = vmatpush2.msra.mxu0 0.0
    %312 = vmatprep.mubr.f32.mxu0 0.0
    %313 = vmatmul.mubr.f32.gmra.mxu0 %v90
    %v314 = vpop.f32.mrf.mxu0
    %v315 = vadd.f32 %v168, %v314
    %v316 = vpop.f32.mrf.mxu0
    %v317 = vadd.f32 %v172, %v316
    %318 = vdwg.mxu0
    %v319 = vxor.u32 %v244, 2147483648
    %v320 = vxor.u32 %v246, 2147483648
    %v321 = vxor.u32 %v315, 2147483648
    %v322 = vxor.u32 %v317, 2147483648
    %v323 = vmul.f32 %v319, 1.442695
    %v324 = vpow.pop %v323
    %v325 = vmul.f32 %v320, 1.442695
    %v326 = vpow.pop %v325
    %v327 = vmul.f32 %v321, 1.442695
    %v328 = vpow.pop %v327
    %v329 = vmul.f32 %v322, 1.442695
    %v330 = vpow.pop %v329
    %v331 = vadd.f32 %v324, 1.0
    %v332 = vadd.f32 %v326, 1.0
    %v333 = vadd.f32 %v328, 1.0
    %v334 = vadd.f32 %v330, 1.0
    %v335 = vrcp.pop %v331
    %v336 = vmul.f32 1.0, %v335
    %v337 = vrcp.pop %v332
    %v338 = vmul.f32 1.0, %v337
    %v339 = vrcp.pop %v333
    %v340 = vmul.f32 1.0, %v339
    %v341 = vrcp.pop %v334
    %v342 = vmul.f32 1.0, %v341
    %v343 = vmul.f32 %v244, %v336
    %v344 = vmul.f32 %v246, %v338
    %v345 = vmul.f32 %v315, %v340
    %v346 = vmul.f32 %v317, %v342
    %v347 = vld [vmem:[#allocation4] sm:$0xff]
    %v348 = vld [vmem:[#allocation4 + $0x8] sm:$0xff]
    %v349 = vld [vmem:[#allocation4 + $0x10] sm:$0xff]
    %v350 = vld [vmem:[#allocation4 + $0x18] sm:$0xff]
    %v351 = vld [vmem:[#allocation4 + $0x20] sm:$0xff]
    %v352 = vld [vmem:[#allocation4 + $0x28] sm:$0xff]
    %v353 = vld [vmem:[#allocation4 + $0x30] sm:$0xff]
    %v354 = vld [vmem:[#allocation4 + $0x38] sm:$0xff]
    %v355 = vld [vmem:[#allocation4 + $0x40] sm:$0xff]
    %v356 = vld [vmem:[#allocation4 + $0x48] sm:$0xff]
    %v357 = vld [vmem:[#allocation4 + $0x50] sm:$0xff]
    %v358 = vld [vmem:[#allocation4 + $0x58] sm:$0xff]
    %v359 = vld [vmem:[#allocation4 + $0x60] sm:$0xff]
    %v360 = vld [vmem:[#allocation4 + $0x68] sm:$0xff]
    %v361 = vld [vmem:[#allocation4 + $0x70] sm:$0xff]
    %v362 = vld [vmem:[#allocation4 + $0x78] sm:$0xff]
    %v363 = vld [vmem:[#allocation4 + $0x80] sm:$0xff]
    %v364 = vld [vmem:[#allocation4 + $0x88] sm:$0xff]
    %v365 = vld [vmem:[#allocation4 + $0x90] sm:$0xff]
    %v366 = vld [vmem:[#allocation4 + $0x98] sm:$0xff]
    %v367 = vld [vmem:[#allocation4 + $0xa0] sm:$0xff]
    %v368 = vld [vmem:[#allocation4 + $0xa8] sm:$0xff]
    %v369 = vld [vmem:[#allocation4 + $0xb0] sm:$0xff]
    %v370 = vld [vmem:[#allocation4 + $0xb8] sm:$0xff]
    %v371 = vld [vmem:[#allocation4 + $0xc0] sm:$0xff]
    %v372 = vld [vmem:[#allocation4 + $0xc8] sm:$0xff]
    %v373 = vld [vmem:[#allocation4 + $0xd0] sm:$0xff]
    %v374 = vld [vmem:[#allocation4 + $0xd8] sm:$0xff]
    %v375 = vld [vmem:[#allocation4 + $0xe0] sm:$0xff]
    %v376 = vld [vmem:[#allocation4 + $0xe8] sm:$0xff]
    %v377 = vld [vmem:[#allocation4 + $0xf0] sm:$0xff]
    %v378 = vld [vmem:[#allocation4 + $0xf8] sm:$0xff]
    %v379 = vld [vmem:[#allocation4 + $0x100] sm:$0xff]
    %v380 = vld [vmem:[#allocation4 + $0x108] sm:$0xff]
    %v381 = vld [vmem:[#allocation4 + $0x110] sm:$0xff]
    %v382 = vld [vmem:[#allocation4 + $0x118] sm:$0xff]
    %v383 = vld [vmem:[#allocation4 + $0x120] sm:$0xff]
    %v384 = vld [vmem:[#allocation4 + $0x128] sm:$0xff]
    %v385 = vld [vmem:[#allocation4 + $0x130] sm:$0xff]
    %v386 = vld [vmem:[#allocation4 + $0x138] sm:$0xff]
    %v387 = vld [vmem:[#allocation4 + $0x140] sm:$0xff]
    %v388 = vld [vmem:[#allocation4 + $0x148] sm:$0xff]
    %v389 = vld [vmem:[#allocation4 + $0x150] sm:$0xff]
    %v390 = vld [vmem:[#allocation4 + $0x158] sm:$0xff]
    %v391 = vld [vmem:[#allocation4 + $0x160] sm:$0xff]
    %v392 = vld [vmem:[#allocation4 + $0x168] sm:$0xff]
    %v393 = vld [vmem:[#allocation4 + $0x170] sm:$0xff]
    %v394 = vld [vmem:[#allocation4 + $0x178] sm:$0xff]
    %v395 = vld [vmem:[#allocation4 + $0x180] sm:$0xff]
    %v396 = vld [vmem:[#allocation4 + $0x188] sm:$0xff]
    %v397 = vld [vmem:[#allocation4 + $0x190] sm:$0xff]
    %v398 = vld [vmem:[#allocation4 + $0x198] sm:$0xff]
    %v399 = vld [vmem:[#allocation4 + $0x1a0] sm:$0xff]
    %v400 = vld [vmem:[#allocation4 + $0x1a8] sm:$0xff]
    %v401 = vld [vmem:[#allocation4 + $0x1b0] sm:$0xff]
    %v402 = vld [vmem:[#allocation4 + $0x1b8] sm:$0xff]
    %v403 = vld [vmem:[#allocation4 + $0x1c0] sm:$0xff]
    %v404 = vld [vmem:[#allocation4 + $0x1c8] sm:$0xff]
    %v405 = vld [vmem:[#allocation4 + $0x1d0] sm:$0xff]
    %v406 = vld [vmem:[#allocation4 + $0x1d8] sm:$0xff]
    %v407 = vld [vmem:[#allocation4 + $0x1e0] sm:$0xff]
    %v408 = vld [vmem:[#allocation4 + $0x1e8] sm:$0xff]
    %v409 = vld [vmem:[#allocation4 + $0x1f0] sm:$0xff]
    %v410 = vld [vmem:[#allocation4 + $0x1f8] sm:$0xff]
    %v411 = vld [vmem:[#allocation4 + $0x200] sm:$0xff]
    %v412 = vld [vmem:[#allocation4 + $0x208] sm:$0xff]
    %v413 = vld [vmem:[#allocation4 + $0x210] sm:$0xff]
    %v414 = vld [vmem:[#allocation4 + $0x218] sm:$0xff]
    %v415 = vld [vmem:[#allocation4 + $0x220] sm:$0xff]
    %v416 = vld [vmem:[#allocation4 + $0x228] sm:$0xff]
    %v417 = vld [vmem:[#allocation4 + $0x230] sm:$0xff]
    %v418 = vld [vmem:[#allocation4 + $0x238] sm:$0xff]
    %v419 = vld [vmem:[#allocation4 + $0x240] sm:$0xff]
    %v420 = vld [vmem:[#allocation4 + $0x248] sm:$0xff]
    %v421 = vld [vmem:[#allocation4 + $0x250] sm:$0xff]
    %v422 = vld [vmem:[#allocation4 + $0x258] sm:$0xff]
    %v423 = vld [vmem:[#allocation4 + $0x260] sm:$0xff]
    %v424 = vld [vmem:[#allocation4 + $0x268] sm:$0xff]
    %v425 = vld [vmem:[#allocation4 + $0x270] sm:$0xff]
    %v426 = vld [vmem:[#allocation4 + $0x278] sm:$0xff]
    %v427 = vld [vmem:[#allocation4 + $0x280] sm:$0xff]
    %v428 = vld [vmem:[#allocation4 + $0x288] sm:$0xff]
    %v429 = vld [vmem:[#allocation4 + $0x290] sm:$0xff]
    %v430 = vld [vmem:[#allocation4 + $0x298] sm:$0xff]
    %v431 = vld [vmem:[#allocation4 + $0x2a0] sm:$0xff]
    %v432 = vld [vmem:[#allocation4 + $0x2a8] sm:$0xff]
    %v433 = vld [vmem:[#allocation4 + $0x2b0] sm:$0xff]
    %v434 = vld [vmem:[#allocation4 + $0x2b8] sm:$0xff]
    %v435 = vld [vmem:[#allocation4 + $0x2c0] sm:$0xff]
    %v436 = vld [vmem:[#allocation4 + $0x2c8] sm:$0xff]
    %v437 = vld [vmem:[#allocation4 + $0x2d0] sm:$0xff]
    %v438 = vld [vmem:[#allocation4 + $0x2d8] sm:$0xff]
    %v439 = vld [vmem:[#allocation4 + $0x2e0] sm:$0xff]
    %v440 = vld [vmem:[#allocation4 + $0x2e8] sm:$0xff]
    %v441 = vld [vmem:[#allocation4 + $0x2f0] sm:$0xff]
    %v442 = vld [vmem:[#allocation4 + $0x2f8] sm:$0xff]
    %v443 = vld [vmem:[#allocation4 + $0x300] sm:$0xff]
    %v444 = vld [vmem:[#allocation4 + $0x308] sm:$0xff]
    %v445 = vld [vmem:[#allocation4 + $0x310] sm:$0xff]
    %v446 = vld [vmem:[#allocation4 + $0x318] sm:$0xff]
    %v447 = vld [vmem:[#allocation4 + $0x320] sm:$0xff]
    %v448 = vld [vmem:[#allocation4 + $0x328] sm:$0xff]
    %v449 = vld [vmem:[#allocation4 + $0x330] sm:$0xff]
    %v450 = vld [vmem:[#allocation4 + $0x338] sm:$0xff]
    %v451 = vld [vmem:[#allocation4 + $0x340] sm:$0xff]
    %v452 = vld [vmem:[#allocation4 + $0x348] sm:$0xff]
    %v453 = vld [vmem:[#allocation4 + $0x350] sm:$0xff]
    %v454 = vld [vmem:[#allocation4 + $0x358] sm:$0xff]
    %v455 = vld [vmem:[#allocation4 + $0x360] sm:$0xff]
    %v456 = vld [vmem:[#allocation4 + $0x368] sm:$0xff]
    %v457 = vld [vmem:[#allocation4 + $0x370] sm:$0xff]
    %v458 = vld [vmem:[#allocation4 + $0x378] sm:$0xff]
    %v459 = vld [vmem:[#allocation4 + $0x380] sm:$0xff]
    %v460 = vld [vmem:[#allocation4 + $0x388] sm:$0xff]
    %v461 = vld [vmem:[#allocation4 + $0x390] sm:$0xff]
    %v462 = vld [vmem:[#allocation4 + $0x398] sm:$0xff]
    %v463 = vld [vmem:[#allocation4 + $0x3a0] sm:$0xff]
    %v464 = vld [vmem:[#allocation4 + $0x3a8] sm:$0xff]
    %v465 = vld [vmem:[#allocation4 + $0x3b0] sm:$0xff]
    %v466 = vld [vmem:[#allocation4 + $0x3b8] sm:$0xff]
    %v467 = vld [vmem:[#allocation4 + $0x3c0] sm:$0xff]
    %v468 = vld [vmem:[#allocation4 + $0x3c8] sm:$0xff]
    %v469 = vld [vmem:[#allocation4 + $0x3d0] sm:$0xff]
    %v470 = vld [vmem:[#allocation4 + $0x3d8] sm:$0xff]
    %v471 = vld [vmem:[#allocation4 + $0x3e0] sm:$0xff]
    %v472 = vld [vmem:[#allocation4 + $0x3e8] sm:$0xff]
    %v473 = vld [vmem:[#allocation4 + $0x3f0] sm:$0xff]
    %v474 = vld [vmem:[#allocation4 + $0x3f8] sm:$0xff]
    %v475 = vld [vmem:[#allocation4 + $0x400] sm:$0xff]
    %v476 = vld [vmem:[#allocation4 + $0x408] sm:$0xff]
    %v477 = vld [vmem:[#allocation4 + $0x410] sm:$0xff]
    %v478 = vld [vmem:[#allocation4 + $0x418] sm:$0xff]
    %v479 = vld [vmem:[#allocation4 + $0x420] sm:$0xff]
    %v480 = vld [vmem:[#allocation4 + $0x428] sm:$0xff]
    %v481 = vld [vmem:[#allocation4 + $0x430] sm:$0xff]
    %v482 = vld [vmem:[#allocation4 + $0x438] sm:$0xff]
    %v483 = vld [vmem:[#allocation4 + $0x440] sm:$0xff]
    %v484 = vld [vmem:[#allocation4 + $0x448] sm:$0xff]
    %v485 = vld [vmem:[#allocation4 + $0x450] sm:$0xff]
    %v486 = vld [vmem:[#allocation4 + $0x458] sm:$0xff]
    %v487 = vld [vmem:[#allocation4 + $0x460] sm:$0xff]
    %v488 = vld [vmem:[#allocation4 + $0x468] sm:$0xff]
    %v489 = vld [vmem:[#allocation4 + $0x470] sm:$0xff]
    %v490 = vld [vmem:[#allocation4 + $0x478] sm:$0xff]
    %v491 = vld [vmem:[#allocation4 + $0x480] sm:$0xff]
    %v492 = vld [vmem:[#allocation4 + $0x488] sm:$0xff]
    %v493 = vld [vmem:[#allocation4 + $0x490] sm:$0xff]
    %v494 = vld [vmem:[#allocation4 + $0x498] sm:$0xff]
    %v495 = vld [vmem:[#allocation4 + $0x4a0] sm:$0xff]
    %v496 = vld [vmem:[#allocation4 + $0x4a8] sm:$0xff]
    %v497 = vld [vmem:[#allocation4 + $0x4b0] sm:$0xff]
    %v498 = vld [vmem:[#allocation4 + $0x4b8] sm:$0xff]
    %v499 = vld [vmem:[#allocation4 + $0x4c0] sm:$0xff]
    %v500 = vld [vmem:[#allocation4 + $0x4c8] sm:$0xff]
    %v501 = vld [vmem:[#allocation4 + $0x4d0] sm:$0xff]
    %v502 = vld [vmem:[#allocation4 + $0x4d8] sm:$0xff]
    %v503 = vld [vmem:[#allocation4 + $0x4e0] sm:$0xff]
    %v504 = vld [vmem:[#allocation4 + $0x4e8] sm:$0xff]
    %v505 = vld [vmem:[#allocation4 + $0x4f0] sm:$0xff]
    %v506 = vld [vmem:[#allocation4 + $0x4f8] sm:$0xff]
    %v507 = vld [vmem:[#allocation4 + $0x500] sm:$0xff]
    %v508 = vld [vmem:[#allocation4 + $0x508] sm:$0xff]
    %v509 = vld [vmem:[#allocation4 + $0x510] sm:$0xff]
    %v510 = vld [vmem:[#allocation4 + $0x518] sm:$0xff]
    %v511 = vld [vmem:[#allocation4 + $0x520] sm:$0xff]
    %v512 = vld [vmem:[#allocation4 + $0x528] sm:$0xff]
    %v513 = vld [vmem:[#allocation4 + $0x530] sm:$0xff]
    %v514 = vld [vmem:[#allocation4 + $0x538] sm:$0xff]
    %v515 = vld [vmem:[#allocation4 + $0x540] sm:$0xff]
    %v516 = vld [vmem:[#allocation4 + $0x548] sm:$0xff]
    %v517 = vld [vmem:[#allocation4 + $0x550] sm:$0xff]
    %v518 = vld [vmem:[#allocation4 + $0x558] sm:$0xff]
    %v519 = vld [vmem:[#allocation4 + $0x560] sm:$0xff]
    %v520 = vld [vmem:[#allocation4 + $0x568] sm:$0xff]
    %v521 = vld [vmem:[#allocation4 + $0x570] sm:$0xff]
    %v522 = vld [vmem:[#allocation4 + $0x578] sm:$0xff]
    %v523 = vld [vmem:[#allocation4 + $0x580] sm:$0xff]
    %v524 = vld [vmem:[#allocation4 + $0x588] sm:$0xff]
    %v525 = vld [vmem:[#allocation4 + $0x590] sm:$0xff]
    %v526 = vld [vmem:[#allocation4 + $0x598] sm:$0xff]
    %v527 = vld [vmem:[#allocation4 + $0x5a0] sm:$0xff]
    %v528 = vld [vmem:[#allocation4 + $0x5a8] sm:$0xff]
    %v529 = vld [vmem:[#allocation4 + $0x5b0] sm:$0xff]
    %v530 = vld [vmem:[#allocation4 + $0x5b8] sm:$0xff]
    %v531 = vld [vmem:[#allocation4 + $0x5c0] sm:$0xff]
    %v532 = vld [vmem:[#allocation4 + $0x5c8] sm:$0xff]
    %v533 = vld [vmem:[#allocation4 + $0x5d0] sm:$0xff]
    %v534 = vld [vmem:[#allocation4 + $0x5d8] sm:$0xff]
    %v535 = vld [vmem:[#allocation4 + $0x5e0] sm:$0xff]
    %v536 = vld [vmem:[#allocation4 + $0x5e8] sm:$0xff]
    %v537 = vld [vmem:[#allocation4 + $0x5f0] sm:$0xff]
    %v538 = vld [vmem:[#allocation4 + $0x5f8] sm:$0xff]
    %v539 = vld [vmem:[#allocation4 + $0x600] sm:$0xff]
    %v540 = vld [vmem:[#allocation4 + $0x608] sm:$0xff]
    %v541 = vld [vmem:[#allocation4 + $0x610] sm:$0xff]
    %v542 = vld [vmem:[#allocation4 + $0x618] sm:$0xff]
    %v543 = vld [vmem:[#allocation4 + $0x620] sm:$0xff]
    %v544 = vld [vmem:[#allocation4 + $0x628] sm:$0xff]
    %v545 = vld [vmem:[#allocation4 + $0x630] sm:$0xff]
    %v546 = vld [vmem:[#allocation4 + $0x638] sm:$0xff]
    %v547 = vld [vmem:[#allocation4 + $0x640] sm:$0xff]
    %v548 = vld [vmem:[#allocation4 + $0x648] sm:$0xff]
    %v549 = vld [vmem:[#allocation4 + $0x650] sm:$0xff]
    %v550 = vld [vmem:[#allocation4 + $0x658] sm:$0xff]
    %v551 = vld [vmem:[#allocation4 + $0x660] sm:$0xff]
    %v552 = vld [vmem:[#allocation4 + $0x668] sm:$0xff]
    %v553 = vld [vmem:[#allocation4 + $0x670] sm:$0xff]
    %v554 = vld [vmem:[#allocation4 + $0x678] sm:$0xff]
    %v555 = vld [vmem:[#allocation4 + $0x680] sm:$0xff]
    %v556 = vld [vmem:[#allocation4 + $0x688] sm:$0xff]
    %v557 = vld [vmem:[#allocation4 + $0x690] sm:$0xff]
    %v558 = vld [vmem:[#allocation4 + $0x698] sm:$0xff]
    %v559 = vld [vmem:[#allocation4 + $0x6a0] sm:$0xff]
    %v560 = vld [vmem:[#allocation4 + $0x6a8] sm:$0xff]
    %v561 = vld [vmem:[#allocation4 + $0x6b0] sm:$0xff]
    %v562 = vld [vmem:[#allocation4 + $0x6b8] sm:$0xff]
    %v563 = vld [vmem:[#allocation4 + $0x6c0] sm:$0xff]
    %v564 = vld [vmem:[#allocation4 + $0x6c8] sm:$0xff]
    %v565 = vld [vmem:[#allocation4 + $0x6d0] sm:$0xff]
    %v566 = vld [vmem:[#allocation4 + $0x6d8] sm:$0xff]
    %v567 = vld [vmem:[#allocation4 + $0x6e0] sm:$0xff]
    %v568 = vld [vmem:[#allocation4 + $0x6e8] sm:$0xff]
    %v569 = vld [vmem:[#allocation4 + $0x6f0] sm:$0xff]
    %v570 = vld [vmem:[#allocation4 + $0x6f8] sm:$0xff]
    %v571 = vld [vmem:[#allocation4 + $0x700] sm:$0xff]
    %v572 = vld [vmem:[#allocation4 + $0x708] sm:$0xff]
    %v573 = vld [vmem:[#allocation4 + $0x710] sm:$0xff]
    %v574 = vld [vmem:[#allocation4 + $0x718] sm:$0xff]
    %v575 = vld [vmem:[#allocation4 + $0x720] sm:$0xff]
    %v576 = vld [vmem:[#allocation4 + $0x728] sm:$0xff]
    %v577 = vld [vmem:[#allocation4 + $0x730] sm:$0xff]
    %v578 = vld [vmem:[#allocation4 + $0x738] sm:$0xff]
    %v579 = vld [vmem:[#allocation4 + $0x740] sm:$0xff]
    %v580 = vld [vmem:[#allocation4 + $0x748] sm:$0xff]
    %v581 = vld [vmem:[#allocation4 + $0x750] sm:$0xff]
    %v582 = vld [vmem:[#allocation4 + $0x758] sm:$0xff]
    %v583 = vld [vmem:[#allocation4 + $0x760] sm:$0xff]
    %v584 = vld [vmem:[#allocation4 + $0x768] sm:$0xff]
    %v585 = vld [vmem:[#allocation4 + $0x770] sm:$0xff]
    %v586 = vld [vmem:[#allocation4 + $0x778] sm:$0xff]
    %v587 = vld [vmem:[#allocation4 + $0x780] sm:$0xff]
    %v588 = vld [vmem:[#allocation4 + $0x788] sm:$0xff]
    %v589 = vld [vmem:[#allocation4 + $0x790] sm:$0xff]
    %v590 = vld [vmem:[#allocation4 + $0x798] sm:$0xff]
    %v591 = vld [vmem:[#allocation4 + $0x7a0] sm:$0xff]
    %v592 = vld [vmem:[#allocation4 + $0x7a8] sm:$0xff]
    %v593 = vld [vmem:[#allocation4 + $0x7b0] sm:$0xff]
    %v594 = vld [vmem:[#allocation4 + $0x7b8] sm:$0xff]
    %v595 = vld [vmem:[#allocation4 + $0x7c0] sm:$0xff]
    %v596 = vld [vmem:[#allocation4 + $0x7c8] sm:$0xff]
    %v597 = vld [vmem:[#allocation4 + $0x7d0] sm:$0xff]
    %v598 = vld [vmem:[#allocation4 + $0x7d8] sm:$0xff]
    %v599 = vld [vmem:[#allocation4 + $0x7e0] sm:$0xff]
    %v600 = vld [vmem:[#allocation4 + $0x7e8] sm:$0xff]
    %v601 = vld [vmem:[#allocation4 + $0x7f0] sm:$0xff]
    %v602 = vld [vmem:[#allocation4 + $0x7f8] sm:$0xff]
    %v603 = vld [vmem:[%s5] sm:$0xf]
    %v605 = vlaneseq
    %v606 = vshrl.u32 %v605, 7
    %v607 = vsub.s32 0, %v606
    %v608 = vrot.slane %v603, %v607
    %v609 = vlaneseq
    %v610 = vshrl.u32 %v609, 7
    %v611 = vsub.s32 1, %v610
    %v612 = vrot.slane %v603, %v611
    %v613 = vlaneseq
    %v614 = vshrl.u32 %v613, 7
    %v615 = vsub.s32 2, %v614
    %v616 = vrot.slane %v603, %v615
    %v617 = vlaneseq
    %v618 = vshrl.u32 %v617, 7
    %v619 = vsub.s32 3, %v618
    %v620 = vrot.slane %v603, %v619
    %625 = vmatprep.subr.mxu0 %v408
    %626 = vmatpush1.msra.mxu0 %v407
    %627 = vmatprep.subr.mxu0 %v404
    %628 = vmatpush1.msra.mxu0 %v403
    %629 = vmatprep.subr.mxu0 %v400
    %630 = vmatpush1.msra.mxu0 %v399
    %631 = vmatprep.subr.mxu0 %v396
    %632 = vmatpush1.msra.mxu0 %v395
    %633 = vmatprep.subr.mxu0 %v392
    %634 = vmatpush1.msra.mxu0 %v391
    %635 = vmatprep.subr.mxu0 %v388
    %636 = vmatpush1.msra.mxu0 %v387
    %637 = vmatprep.subr.mxu0 %v384
    %638 = vmatpush1.msra.mxu0 %v383
    %639 = vmatprep.subr.mxu0 %v380
    %640 = vmatpush1.msra.mxu0 %v379
    %641 = vmatprep.subr.mxu0 %v376
    %642 = vmatpush1.msra.mxu0 %v375
    %643 = vmatprep.subr.mxu0 %v372
    %644 = vmatpush1.msra.mxu0 %v371
    %645 = vmatprep.subr.mxu0 %v368
    %646 = vmatpush1.msra.mxu0 %v367
    %647 = vmatprep.subr.mxu0 %v364
    %648 = vmatpush1.msra.mxu0 %v363
    %649 = vmatprep.subr.mxu0 %v360
    %650 = vmatpush1.msra.mxu0 %v359
    %651 = vmatprep.subr.mxu0 %v356
    %652 = vmatpush1.msra.mxu0 %v355
    %653 = vmatprep.subr.mxu0 %v352
    %654 = vmatpush1.msra.mxu0 %v351
    %655 = vmatprep.subr.mxu0 %v348
    %656 = vmatpush1.msra.mxu0 %v347
    %657 = vmatprep.subr.mxu0 %v472
    %658 = vmatpush2.msra.mxu0 %v471
    %659 = vmatprep.subr.mxu0 %v468
    %660 = vmatpush2.msra.mxu0 %v467
    %661 = vmatprep.subr.mxu0 %v464
    %662 = vmatpush2.msra.mxu0 %v463
    %663 = vmatprep.subr.mxu0 %v460
    %664 = vmatpush2.msra.mxu0 %v459
    %665 = vmatprep.subr.mxu0 %v456
    %666 = vmatpush2.msra.mxu0 %v455
    %667 = vmatprep.subr.mxu0 %v452
    %668 = vmatpush2.msra.mxu0 %v451
    %669 = vmatprep.subr.mxu0 %v448
    %670 = vmatpush2.msra.mxu0 %v447
    %671 = vmatprep.subr.mxu0 %v444
    %672 = vmatpush2.msra.mxu0 %v443
    %673 = vmatprep.subr.mxu0 %v440
    %674 = vmatpush2.msra.mxu0 %v439
    %675 = vmatprep.subr.mxu0 %v436
    %676 = vmatpush2.msra.mxu0 %v435
    %677 = vmatprep.subr.mxu0 %v432
    %678 = vmatpush2.msra.mxu0 %v431
    %679 = vmatprep.subr.mxu0 %v428
    %680 = vmatpush2.msra.mxu0 %v427
    %681 = vmatprep.subr.mxu0 %v424
    %682 = vmatpush2.msra.mxu0 %v423
    %683 = vmatprep.subr.mxu0 %v420
    %684 = vmatpush2.msra.mxu0 %v419
    %685 = vmatprep.subr.mxu0 %v416
    %686 = vmatpush2.msra.mxu0 %v415
    %687 = vmatprep.subr.mxu0 %v412
    %688 = vmatpush2.msra.mxu0 %v411
    %689 = vmatprep.mubr.f32.mxu0 %v344
    %690 = vmatmul.mubr.f32.gmra.mxu0 %v343
    %v691 = vpop.f32.mrf.mxu0
    %v692 = vadd.f32 %v608, %v691
    %v693 = vpop.f32.mrf.mxu0
    %v694 = vadd.f32 %v612, %v693
    %695 = vdwg.mxu0
    %696 = vmatprep.subr.mxu0 %v536
    %697 = vmatpush1.msra.mxu0 %v535
    %698 = vmatprep.subr.mxu0 %v532
    %699 = vmatpush1.msra.mxu0 %v531
    %700 = vmatprep.subr.mxu0 %v528
    %701 = vmatpush1.msra.mxu0 %v527
    %702 = vmatprep.subr.mxu0 %v524
    %703 = vmatpush1.msra.mxu0 %v523
    %704 = vmatprep.subr.mxu0 %v520
    %705 = vmatpush1.msra.mxu0 %v519
    %706 = vmatprep.subr.mxu0 %v516
    %707 = vmatpush1.msra.mxu0 %v515
    %708 = vmatprep.subr.mxu0 %v512
    %709 = vmatpush1.msra.mxu0 %v511
    %710 = vmatprep.subr.mxu0 %v508
    %711 = vmatpush1.msra.mxu0 %v507
    %712 = vmatprep.subr.mxu0 %v504
    %713 = vmatpush1.msra.mxu0 %v503
    %714 = vmatprep.subr.mxu0 %v500
    %715 = vmatpush1.msra.mxu0 %v499
    %716 = vmatprep.subr.mxu0 %v496
    %717 = vmatpush1.msra.mxu0 %v495
    %718 = vmatprep.subr.mxu0 %v492
    %719 = vmatpush1.msra.mxu0 %v491
    %720 = vmatprep.subr.mxu0 %v488
    %721 = vmatpush1.msra.mxu0 %v487
    %722 = vmatprep.subr.mxu0 %v484
    %723 = vmatpush1.msra.mxu0 %v483
    %724 = vmatprep.subr.mxu0 %v480
    %725 = vmatpush1.msra.mxu0 %v479
    %726 = vmatprep.subr.mxu0 %v476
    %727 = vmatpush1.msra.mxu0 %v475
    %728 = vmatprep.subr.mxu0 %v600
    %729 = vmatpush2.msra.mxu0 %v599
    %730 = vmatprep.subr.mxu0 %v596
    %731 = vmatpush2.msra.mxu0 %v595
    %732 = vmatprep.subr.mxu0 %v592
    %733 = vmatpush2.msra.mxu0 %v591
    %734 = vmatprep.subr.mxu0 %v588
    %735 = vmatpush2.msra.mxu0 %v587
    %736 = vmatprep.subr.mxu0 %v584
    %737 = vmatpush2.msra.mxu0 %v583
    %738 = vmatprep.subr.mxu0 %v580
    %739 = vmatpush2.msra.mxu0 %v579
    %740 = vmatprep.subr.mxu0 %v576
    %741 = vmatpush2.msra.mxu0 %v575
    %742 = vmatprep.subr.mxu0 %v572
    %743 = vmatpush2.msra.mxu0 %v571
    %744 = vmatprep.subr.mxu0 %v568
    %745 = vmatpush2.msra.mxu0 %v567
    %746 = vmatprep.subr.mxu0 %v564
    %747 = vmatpush2.msra.mxu0 %v563
    %748 = vmatprep.subr.mxu0 %v560
    %749 = vmatpush2.msra.mxu0 %v559
    %750 = vmatprep.subr.mxu0 %v556
    %751 = vmatpush2.msra.mxu0 %v555
    %752 = vmatprep.subr.mxu0 %v552
    %753 = vmatpush2.msra.mxu0 %v551
    %754 = vmatprep.subr.mxu0 %v548
    %755 = vmatpush2.msra.mxu0 %v547
    %756 = vmatprep.subr.mxu0 %v544
    %757 = vmatpush2.msra.mxu0 %v543
    %758 = vmatprep.subr.mxu0 %v540
    %759 = vmatpush2.msra.mxu0 %v539
    %760 = vmatprep.mubr.f32.mxu0 %v346
    %761 = vmatmul.mubr.f32.gmra.mxu0 %v345
    %v762 = vpop.f32.mrf.mxu0
    %v763 = vadd.f32 %v692, %v762
    %v764 = vpop.f32.mrf.mxu0
    %v765 = vadd.f32 %v694, %v764
    %766 = vdwg.mxu0
    %767 = vmatprep.subr.mxu0 %v410
    %768 = vmatpush1.msra.mxu0 %v409
    %769 = vmatprep.subr.mxu0 %v406
    %770 = vmatpush1.msra.mxu0 %v405
    %771 = vmatprep.subr.mxu0 %v402
    %772 = vmatpush1.msra.mxu0 %v401
    %773 = vmatprep.subr.mxu0 %v398
    %774 = vmatpush1.msra.mxu0 %v397
    %775 = vmatprep.subr.mxu0 %v394
    %776 = vmatpush1.msra.mxu0 %v393
    %777 = vmatprep.subr.mxu0 %v390
    %778 = vmatpush1.msra.mxu0 %v389
    %779 = vmatprep.subr.mxu0 %v386
    %780 = vmatpush1.msra.mxu0 %v385
    %781 = vmatprep.subr.mxu0 %v382
    %782 = vmatpush1.msra.mxu0 %v381
    %783 = vmatprep.subr.mxu0 %v378
    %784 = vmatpush1.msra.mxu0 %v377
    %785 = vmatprep.subr.mxu0 %v374
    %786 = vmatpush1.msra.mxu0 %v373
    %787 = vmatprep.subr.mxu0 %v370
    %788 = vmatpush1.msra.mxu0 %v369
    %789 = vmatprep.subr.mxu0 %v366
    %790 = vmatpush1.msra.mxu0 %v365
    %791 = vmatprep.subr.mxu0 %v362
    %792 = vmatpush1.msra.mxu0 %v361
    %793 = vmatprep.subr.mxu0 %v358
    %794 = vmatpush1.msra.mxu0 %v357
    %795 = vmatprep.subr.mxu0 %v354
    %796 = vmatpush1.msra.mxu0 %v353
    %797 = vmatprep.subr.mxu0 %v350
    %798 = vmatpush1.msra.mxu0 %v349
    %799 = vmatprep.subr.mxu0 %v474
    %800 = vmatpush2.msra.mxu0 %v473
    %801 = vmatprep.subr.mxu0 %v470
    %802 = vmatpush2.msra.mxu0 %v469
    %803 = vmatprep.subr.mxu0 %v466
    %804 = vmatpush2.msra.mxu0 %v465
    %805 = vmatprep.subr.mxu0 %v462
    %806 = vmatpush2.msra.mxu0 %v461
    %807 = vmatprep.subr.mxu0 %v458
    %808 = vmatpush2.msra.mxu0 %v457
    %809 = vmatprep.subr.mxu0 %v454
    %810 = vmatpush2.msra.mxu0 %v453
    %811 = vmatprep.subr.mxu0 %v450
    %812 = vmatpush2.msra.mxu0 %v449
    %813 = vmatprep.subr.mxu0 %v446
    %814 = vmatpush2.msra.mxu0 %v445
    %815 = vmatprep.subr.mxu0 %v442
    %816 = vmatpush2.msra.mxu0 %v441
    %817 = vmatprep.subr.mxu0 %v438
    %818 = vmatpush2.msra.mxu0 %v437
    %819 = vmatprep.subr.mxu0 %v434
    %820 = vmatpush2.msra.mxu0 %v433
    %821 = vmatprep.subr.mxu0 %v430
    %822 = vmatpush2.msra.mxu0 %v429
    %823 = vmatprep.subr.mxu0 %v426
    %824 = vmatpush2.msra.mxu0 %v425
    %825 = vmatprep.subr.mxu0 %v422
    %826 = vmatpush2.msra.mxu0 %v421
    %827 = vmatprep.subr.mxu0 %v418
    %828 = vmatpush2.msra.mxu0 %v417
    %829 = vmatprep.subr.mxu0 %v414
    %830 = vmatpush2.msra.mxu0 %v413
    %831 = vmatprep.mubr.f32.mxu0 %v344
    %832 = vmatmul.mubr.f32.gmra.mxu0 %v343
    %v833 = vpop.f32.mrf.mxu0
    %v834 = vadd.f32 %v616, %v833
    %v835 = vpop.f32.mrf.mxu0
    %v836 = vadd.f32 %v620, %v835
    %837 = vdwg.mxu0
    %838 = vmatprep.subr.mxu0 %v538
    %839 = vmatpush1.msra.mxu0 %v537
    %840 = vmatprep.subr.mxu0 %v534
    %841 = vmatpush1.msra.mxu0 %v533
    %842 = vmatprep.subr.mxu0 %v530
    %843 = vmatpush1.msra.mxu0 %v529
    %844 = vmatprep.subr.mxu0 %v526
    %845 = vmatpush1.msra.mxu0 %v525
    %846 = vmatprep.subr.mxu0 %v522
    %847 = vmatpush1.msra.mxu0 %v521
    %848 = vmatprep.subr.mxu0 %v518
    %849 = vmatpush1.msra.mxu0 %v517
    %850 = vmatprep.subr.mxu0 %v514
    %851 = vmatpush1.msra.mxu0 %v513
    %852 = vmatprep.subr.mxu0 %v510
    %853 = vmatpush1.msra.mxu0 %v509
    %854 = vmatprep.subr.mxu0 %v506
    %855 = vmatpush1.msra.mxu0 %v505
    %856 = vmatprep.subr.mxu0 %v502
    %857 = vmatpush1.msra.mxu0 %v501
    %858 = vmatprep.subr.mxu0 %v498
    %859 = vmatpush1.msra.mxu0 %v497
    %860 = vmatprep.subr.mxu0 %v494
    %861 = vmatpush1.msra.mxu0 %v493
    %862 = vmatprep.subr.mxu0 %v490
    %863 = vmatpush1.msra.mxu0 %v489
    %864 = vmatprep.subr.mxu0 %v486
    %865 = vmatpush1.msra.mxu0 %v485
    %866 = vmatprep.subr.mxu0 %v482
    %867 = vmatpush1.msra.mxu0 %v481
    %868 = vmatprep.subr.mxu0 %v478
    %869 = vmatpush1.msra.mxu0 %v477
    %870 = vmatprep.subr.mxu0 %v602
    %871 = vmatpush2.msra.mxu0 %v601
    %872 = vmatprep.subr.mxu0 %v598
    %873 = vmatpush2.msra.mxu0 %v597
    %874 = vmatprep.subr.mxu0 %v594
    %875 = vmatpush2.msra.mxu0 %v593
    %876 = vmatprep.subr.mxu0 %v590
    %877 = vmatpush2.msra.mxu0 %v589
    %878 = vmatprep.subr.mxu0 %v586
    %879 = vmatpush2.msra.mxu0 %v585
    %880 = vmatprep.subr.mxu0 %v582
    %881 = vmatpush2.msra.mxu0 %v581
    %882 = vmatprep.subr.mxu0 %v578
    %883 = vmatpush2.msra.mxu0 %v577
    %884 = vmatprep.subr.mxu0 %v574
    %885 = vmatpush2.msra.mxu0 %v573
    %886 = vmatprep.subr.mxu0 %v570
    %887 = vmatpush2.msra.mxu0 %v569
    %888 = vmatprep.subr.mxu0 %v566
    %889 = vmatpush2.msra.mxu0 %v565
    %890 = vmatprep.subr.mxu0 %v562
    %891 = vmatpush2.msra.mxu0 %v561
    %892 = vmatprep.subr.mxu0 %v558
    %893 = vmatpush2.msra.mxu0 %v557
    %894 = vmatprep.subr.mxu0 %v554
    %895 = vmatpush2.msra.mxu0 %v553
    %896 = vmatprep.subr.mxu0 %v550
    %897 = vmatpush2.msra.mxu0 %v549
    %898 = vmatprep.subr.mxu0 %v546
    %899 = vmatpush2.msra.mxu0 %v545
    %900 = vmatprep.subr.mxu0 %v542
    %901 = vmatpush2.msra.mxu0 %v541
    %902 = vmatprep.mubr.f32.mxu0 %v346
    %903 = vmatmul.mubr.f32.gmra.mxu0 %v345
    %v904 = vpop.f32.mrf.mxu0
    %v905 = vadd.f32 %v834, %v904
    %v906 = vpop.f32.mrf.mxu0
    %v907 = vadd.f32 %v836, %v906
    %908 = vdwg.mxu0
    %v909 = vld [vmem:[%s1] sm:$0xff]
    %v910 = vld [vmem:[%s1 + $0x8] sm:$0xff]
    %v911 = vld [vmem:[%s1 + $0x10] sm:$0xff]
    %v912 = vld [vmem:[%s1 + $0x18] sm:$0xff]
    %v913 = vld [vmem:[#allocation6] sm:$0xff]
    %v914 = vld [vmem:[#allocation6 + $0x8] sm:$0xff]
    %v915 = vld [vmem:[#allocation6 + $0x10] sm:$0xff]
    %v916 = vld [vmem:[#allocation6 + $0x18] sm:$0xff]
    %v917 = vld [vmem:[#allocation6 + $0x20] sm:$0xff]
    %v918 = vld [vmem:[#allocation6 + $0x28] sm:$0xff]
    %v919 = vld [vmem:[#allocation6 + $0x30] sm:$0xff]
    %v920 = vld [vmem:[#allocation6 + $0x38] sm:$0xff]
    %v921 = vld [vmem:[#allocation6 + $0x40] sm:$0xff]
    %v922 = vld [vmem:[#allocation6 + $0x48] sm:$0xff]
    %v923 = vld [vmem:[#allocation6 + $0x50] sm:$0xff]
    %v924 = vld [vmem:[#allocation6 + $0x58] sm:$0xff]
    %v925 = vld [vmem:[#allocation6 + $0x60] sm:$0xff]
    %v926 = vld [vmem:[#allocation6 + $0x68] sm:$0xff]
    %v927 = vld [vmem:[#allocation6 + $0x70] sm:$0xff]
    %v928 = vld [vmem:[#allocation6 + $0x78] sm:$0xff]
    %v929 = vld [vmem:[#allocation6 + $0x80] sm:$0xff]
    %v930 = vld [vmem:[#allocation6 + $0x88] sm:$0xff]
    %v931 = vld [vmem:[#allocation6 + $0x90] sm:$0xff]
    %v932 = vld [vmem:[#allocation6 + $0x98] sm:$0xff]
    %v933 = vld [vmem:[#allocation6 + $0xa0] sm:$0xff]
    %v934 = vld [vmem:[#allocation6 + $0xa8] sm:$0xff]
    %v935 = vld [vmem:[#allocation6 + $0xb0] sm:$0xff]
    %v936 = vld [vmem:[#allocation6 + $0xb8] sm:$0xff]
    %v937 = vld [vmem:[#allocation6 + $0xc0] sm:$0xff]
    %v938 = vld [vmem:[#allocation6 + $0xc8] sm:$0xff]
    %v939 = vld [vmem:[#allocation6 + $0xd0] sm:$0xff]
    %v940 = vld [vmem:[#allocation6 + $0xd8] sm:$0xff]
    %v941 = vld [vmem:[#allocation6 + $0xe0] sm:$0xff]
    %v942 = vld [vmem:[#allocation6 + $0xe8] sm:$0xff]
    %v943 = vld [vmem:[#allocation6 + $0xf0] sm:$0xff]
    %v944 = vld [vmem:[#allocation6 + $0xf8] sm:$0xff]
    %v945 = vld [vmem:[#allocation6 + $0x100] sm:$0xff]
    %v946 = vld [vmem:[#allocation6 + $0x108] sm:$0xff]
    %v947 = vld [vmem:[#allocation6 + $0x110] sm:$0xff]
    %v948 = vld [vmem:[#allocation6 + $0x118] sm:$0xff]
    %v949 = vld [vmem:[#allocation6 + $0x120] sm:$0xff]
    %v950 = vld [vmem:[#allocation6 + $0x128] sm:$0xff]
    %v951 = vld [vmem:[#allocation6 + $0x130] sm:$0xff]
    %v952 = vld [vmem:[#allocation6 + $0x138] sm:$0xff]
    %v953 = vld [vmem:[#allocation6 + $0x140] sm:$0xff]
    %v954 = vld [vmem:[#allocation6 + $0x148] sm:$0xff]
    %v955 = vld [vmem:[#allocation6 + $0x150] sm:$0xff]
    %v956 = vld [vmem:[#allocation6 + $0x158] sm:$0xff]
    %v957 = vld [vmem:[#allocation6 + $0x160] sm:$0xff]
    %v958 = vld [vmem:[#allocation6 + $0x168] sm:$0xff]
    %v959 = vld [vmem:[#allocation6 + $0x170] sm:$0xff]
    %v960 = vld [vmem:[#allocation6 + $0x178] sm:$0xff]
    %v961 = vld [vmem:[#allocation6 + $0x180] sm:$0xff]
    %v962 = vld [vmem:[#allocation6 + $0x188] sm:$0xff]
    %v963 = vld [vmem:[#allocation6 + $0x190] sm:$0xff]
    %v964 = vld [vmem:[#allocation6 + $0x198] sm:$0xff]
    %v965 = vld [vmem:[#allocation6 + $0x1a0] sm:$0xff]
    %v966 = vld [vmem:[#allocation6 + $0x1a8] sm:$0xff]
    %v967 = vld [vmem:[#allocation6 + $0x1b0] sm:$0xff]
    %v968 = vld [vmem:[#allocation6 + $0x1b8] sm:$0xff]
    %v969 = vld [vmem:[#allocation6 + $0x1c0] sm:$0xff]
    %v970 = vld [vmem:[#allocation6 + $0x1c8] sm:$0xff]
    %v971 = vld [vmem:[#allocation6 + $0x1d0] sm:$0xff]
    %v972 = vld [vmem:[#allocation6 + $0x1d8] sm:$0xff]
    %v973 = vld [vmem:[#allocation6 + $0x1e0] sm:$0xff]
    %v974 = vld [vmem:[#allocation6 + $0x1e8] sm:$0xff]
    %v975 = vld [vmem:[#allocation6 + $0x1f0] sm:$0xff]
    %v976 = vld [vmem:[#allocation6 + $0x1f8] sm:$0xff]
    %v977 = vld [vmem:[#allocation6 + $0x200] sm:$0xff]
    %v978 = vld [vmem:[#allocation6 + $0x208] sm:$0xff]
    %v979 = vld [vmem:[#allocation6 + $0x210] sm:$0xff]
    %v980 = vld [vmem:[#allocation6 + $0x218] sm:$0xff]
    %v981 = vld [vmem:[#allocation6 + $0x220] sm:$0xff]
    %v982 = vld [vmem:[#allocation6 + $0x228] sm:$0xff]
    %v983 = vld [vmem:[#allocation6 + $0x230] sm:$0xff]
    %v984 = vld [vmem:[#allocation6 + $0x238] sm:$0xff]
    %v985 = vld [vmem:[#allocation6 + $0x240] sm:$0xff]
    %v986 = vld [vmem:[#allocation6 + $0x248] sm:$0xff]
    %v987 = vld [vmem:[#allocation6 + $0x250] sm:$0xff]
    %v988 = vld [vmem:[#allocation6 + $0x258] sm:$0xff]
    %v989 = vld [vmem:[#allocation6 + $0x260] sm:$0xff]
    %v990 = vld [vmem:[#allocation6 + $0x268] sm:$0xff]
    %v991 = vld [vmem:[#allocation6 + $0x270] sm:$0xff]
    %v992 = vld [vmem:[#allocation6 + $0x278] sm:$0xff]
    %v993 = vld [vmem:[#allocation6 + $0x280] sm:$0xff]
    %v994 = vld [vmem:[#allocation6 + $0x288] sm:$0xff]
    %v995 = vld [vmem:[#allocation6 + $0x290] sm:$0xff]
    %v996 = vld [vmem:[#allocation6 + $0x298] sm:$0xff]
    %v997 = vld [vmem:[#allocation6 + $0x2a0] sm:$0xff]
    %v998 = vld [vmem:[#allocation6 + $0x2a8] sm:$0xff]
    %v999 = vld [vmem:[#allocation6 + $0x2b0] sm:$0xff]
    %v1000 = vld [vmem:[#allocation6 + $0x2b8] sm:$0xff]
    %v1001 = vld [vmem:[#allocation6 + $0x2c0] sm:$0xff]
    %v1002 = vld [vmem:[#allocation6 + $0x2c8] sm:$0xff]
    %v1003 = vld [vmem:[#allocation6 + $0x2d0] sm:$0xff]
    %v1004 = vld [vmem:[#allocation6 + $0x2d8] sm:$0xff]
    %v1005 = vld [vmem:[#allocation6 + $0x2e0] sm:$0xff]
    %v1006 = vld [vmem:[#allocation6 + $0x2e8] sm:$0xff]
    %v1007 = vld [vmem:[#allocation6 + $0x2f0] sm:$0xff]
    %v1008 = vld [vmem:[#allocation6 + $0x2f8] sm:$0xff]
    %v1009 = vld [vmem:[#allocation6 + $0x300] sm:$0xff]
    %v1010 = vld [vmem:[#allocation6 + $0x308] sm:$0xff]
    %v1011 = vld [vmem:[#allocation6 + $0x310] sm:$0xff]
    %v1012 = vld [vmem:[#allocation6 + $0x318] sm:$0xff]
    %v1013 = vld [vmem:[#allocation6 + $0x320] sm:$0xff]
    %v1014 = vld [vmem:[#allocation6 + $0x328] sm:$0xff]
    %v1015 = vld [vmem:[#allocation6 + $0x330] sm:$0xff]
    %v1016 = vld [vmem:[#allocation6 + $0x338] sm:$0xff]
    %v1017 = vld [vmem:[#allocation6 + $0x340] sm:$0xff]
    %v1018 = vld [vmem:[#allocation6 + $0x348] sm:$0xff]
    %v1019 = vld [vmem:[#allocation6 + $0x350] sm:$0xff]
    %v1020 = vld [vmem:[#allocation6 + $0x358] sm:$0xff]
    %v1021 = vld [vmem:[#allocation6 + $0x360] sm:$0xff]
    %v1022 = vld [vmem:[#allocation6 + $0x368] sm:$0xff]
    %v1023 = vld [vmem:[#allocation6 + $0x370] sm:$0xff]
    %v1024 = vld [vmem:[#allocation6 + $0x378] sm:$0xff]
    %v1025 = vld [vmem:[#allocation6 + $0x380] sm:$0xff]
    %v1026 = vld [vmem:[#allocation6 + $0x388] sm:$0xff]
    %v1027 = vld [vmem:[#allocation6 + $0x390] sm:$0xff]
    %v1028 = vld [vmem:[#allocation6 + $0x398] sm:$0xff]
    %v1029 = vld [vmem:[#allocation6 + $0x3a0] sm:$0xff]
    %v1030 = vld [vmem:[#allocation6 + $0x3a8] sm:$0xff]
    %v1031 = vld [vmem:[#allocation6 + $0x3b0] sm:$0xff]
    %v1032 = vld [vmem:[#allocation6 + $0x3b8] sm:$0xff]
    %v1033 = vld [vmem:[#allocation6 + $0x3c0] sm:$0xff]
    %v1034 = vld [vmem:[#allocation6 + $0x3c8] sm:$0xff]
    %v1035 = vld [vmem:[#allocation6 + $0x3d0] sm:$0xff]
    %v1036 = vld [vmem:[#allocation6 + $0x3d8] sm:$0xff]
    %v1037 = vld [vmem:[#allocation6 + $0x3e0] sm:$0xff]
    %v1038 = vld [vmem:[#allocation6 + $0x3e8] sm:$0xff]
    %v1039 = vld [vmem:[#allocation6 + $0x3f0] sm:$0xff]
    %v1040 = vld [vmem:[#allocation6 + $0x3f8] sm:$0xff]
    %v1041 = vld [vmem:[#allocation6 + $0x400] sm:$0xff]
    %v1042 = vld [vmem:[#allocation6 + $0x408] sm:$0xff]
    %v1043 = vld [vmem:[#allocation6 + $0x410] sm:$0xff]
    %v1044 = vld [vmem:[#allocation6 + $0x418] sm:$0xff]
    %v1045 = vld [vmem:[#allocation6 + $0x420] sm:$0xff]
    %v1046 = vld [vmem:[#allocation6 + $0x428] sm:$0xff]
    %v1047 = vld [vmem:[#allocation6 + $0x430] sm:$0xff]
    %v1048 = vld [vmem:[#allocation6 + $0x438] sm:$0xff]
    %v1049 = vld [vmem:[#allocation6 + $0x440] sm:$0xff]
    %v1050 = vld [vmem:[#allocation6 + $0x448] sm:$0xff]
    %v1051 = vld [vmem:[#allocation6 + $0x450] sm:$0xff]
    %v1052 = vld [vmem:[#allocation6 + $0x458] sm:$0xff]
    %v1053 = vld [vmem:[#allocation6 + $0x460] sm:$0xff]
    %v1054 = vld [vmem:[#allocation6 + $0x468] sm:$0xff]
    %v1055 = vld [vmem:[#allocation6 + $0x470] sm:$0xff]
    %v1056 = vld [vmem:[#allocation6 + $0x478] sm:$0xff]
    %v1057 = vld [vmem:[#allocation6 + $0x480] sm:$0xff]
    %v1058 = vld [vmem:[#allocation6 + $0x488] sm:$0xff]
    %v1059 = vld [vmem:[#allocation6 + $0x490] sm:$0xff]
    %v1060 = vld [vmem:[#allocation6 + $0x498] sm:$0xff]
    %v1061 = vld [vmem:[#allocation6 + $0x4a0] sm:$0xff]
    %v1062 = vld [vmem:[#allocation6 + $0x4a8] sm:$0xff]
    %v1063 = vld [vmem:[#allocation6 + $0x4b0] sm:$0xff]
    %v1064 = vld [vmem:[#allocation6 + $0x4b8] sm:$0xff]
    %v1065 = vld [vmem:[#allocation6 + $0x4c0] sm:$0xff]
    %v1066 = vld [vmem:[#allocation6 + $0x4c8] sm:$0xff]
    %v1067 = vld [vmem:[#allocation6 + $0x4d0] sm:$0xff]
    %v1068 = vld [vmem:[#allocation6 + $0x4d8] sm:$0xff]
    %v1069 = vld [vmem:[#allocation6 + $0x4e0] sm:$0xff]
    %v1070 = vld [vmem:[#allocation6 + $0x4e8] sm:$0xff]
    %v1071 = vld [vmem:[#allocation6 + $0x4f0] sm:$0xff]
    %v1072 = vld [vmem:[#allocation6 + $0x4f8] sm:$0xff]
    %v1073 = vld [vmem:[#allocation6 + $0x500] sm:$0xff]
    %v1074 = vld [vmem:[#allocation6 + $0x508] sm:$0xff]
    %v1075 = vld [vmem:[#allocation6 + $0x510] sm:$0xff]
    %v1076 = vld [vmem:[#allocation6 + $0x518] sm:$0xff]
    %v1077 = vld [vmem:[#allocation6 + $0x520] sm:$0xff]
    %v1078 = vld [vmem:[#allocation6 + $0x528] sm:$0xff]
    %v1079 = vld [vmem:[#allocation6 + $0x530] sm:$0xff]
    %v1080 = vld [vmem:[#allocation6 + $0x538] sm:$0xff]
    %v1081 = vld [vmem:[#allocation6 + $0x540] sm:$0xff]
    %v1082 = vld [vmem:[#allocation6 + $0x548] sm:$0xff]
    %v1083 = vld [vmem:[#allocation6 + $0x550] sm:$0xff]
    %v1084 = vld [vmem:[#allocation6 + $0x558] sm:$0xff]
    %v1085 = vld [vmem:[#allocation6 + $0x560] sm:$0xff]
    %v1086 = vld [vmem:[#allocation6 + $0x568] sm:$0xff]
    %v1087 = vld [vmem:[#allocation6 + $0x570] sm:$0xff]
    %v1088 = vld [vmem:[#allocation6 + $0x578] sm:$0xff]
    %v1089 = vld [vmem:[#allocation6 + $0x580] sm:$0xff]
    %v1090 = vld [vmem:[#allocation6 + $0x588] sm:$0xff]
    %v1091 = vld [vmem:[#allocation6 + $0x590] sm:$0xff]
    %v1092 = vld [vmem:[#allocation6 + $0x598] sm:$0xff]
    %v1093 = vld [vmem:[#allocation6 + $0x5a0] sm:$0xff]
    %v1094 = vld [vmem:[#allocation6 + $0x5a8] sm:$0xff]
    %v1095 = vld [vmem:[#allocation6 + $0x5b0] sm:$0xff]
    %v1096 = vld [vmem:[#allocation6 + $0x5b8] sm:$0xff]
    %v1097 = vld [vmem:[#allocation6 + $0x5c0] sm:$0xff]
    %v1098 = vld [vmem:[#allocation6 + $0x5c8] sm:$0xff]
    %v1099 = vld [vmem:[#allocation6 + $0x5d0] sm:$0xff]
    %v1100 = vld [vmem:[#allocation6 + $0x5d8] sm:$0xff]
    %v1101 = vld [vmem:[#allocation6 + $0x5e0] sm:$0xff]
    %v1102 = vld [vmem:[#allocation6 + $0x5e8] sm:$0xff]
    %v1103 = vld [vmem:[#allocation6 + $0x5f0] sm:$0xff]
    %v1104 = vld [vmem:[#allocation6 + $0x5f8] sm:$0xff]
    %v1105 = vld [vmem:[#allocation6 + $0x600] sm:$0xff]
    %v1106 = vld [vmem:[#allocation6 + $0x608] sm:$0xff]
    %v1107 = vld [vmem:[#allocation6 + $0x610] sm:$0xff]
    %v1108 = vld [vmem:[#allocation6 + $0x618] sm:$0xff]
    %v1109 = vld [vmem:[#allocation6 + $0x620] sm:$0xff]
    %v1110 = vld [vmem:[#allocation6 + $0x628] sm:$0xff]
    %v1111 = vld [vmem:[#allocation6 + $0x630] sm:$0xff]
    %v1112 = vld [vmem:[#allocation6 + $0x638] sm:$0xff]
    %v1113 = vld [vmem:[#allocation6 + $0x640] sm:$0xff]
    %v1114 = vld [vmem:[#allocation6 + $0x648] sm:$0xff]
    %v1115 = vld [vmem:[#allocation6 + $0x650] sm:$0xff]
    %v1116 = vld [vmem:[#allocation6 + $0x658] sm:$0xff]
    %v1117 = vld [vmem:[#allocation6 + $0x660] sm:$0xff]
    %v1118 = vld [vmem:[#allocation6 + $0x668] sm:$0xff]
    %v1119 = vld [vmem:[#allocation6 + $0x670] sm:$0xff]
    %v1120 = vld [vmem:[#allocation6 + $0x678] sm:$0xff]
    %v1121 = vld [vmem:[#allocation6 + $0x680] sm:$0xff]
    %v1122 = vld [vmem:[#allocation6 + $0x688] sm:$0xff]
    %v1123 = vld [vmem:[#allocation6 + $0x690] sm:$0xff]
    %v1124 = vld [vmem:[#allocation6 + $0x698] sm:$0xff]
    %v1125 = vld [vmem:[#allocation6 + $0x6a0] sm:$0xff]
    %v1126 = vld [vmem:[#allocation6 + $0x6a8] sm:$0xff]
    %v1127 = vld [vmem:[#allocation6 + $0x6b0] sm:$0xff]
    %v1128 = vld [vmem:[#allocation6 + $0x6b8] sm:$0xff]
    %v1129 = vld [vmem:[#allocation6 + $0x6c0] sm:$0xff]
    %v1130 = vld [vmem:[#allocation6 + $0x6c8] sm:$0xff]
    %v1131 = vld [vmem:[#allocation6 + $0x6d0] sm:$0xff]
    %v1132 = vld [vmem:[#allocation6 + $0x6d8] sm:$0xff]
    %v1133 = vld [vmem:[#allocation6 + $0x6e0] sm:$0xff]
    %v1134 = vld [vmem:[#allocation6 + $0x6e8] sm:$0xff]
    %v1135 = vld [vmem:[#allocation6 + $0x6f0] sm:$0xff]
    %v1136 = vld [vmem:[#allocation6 + $0x6f8] sm:$0xff]
    %v1137 = vld [vmem:[#allocation6 + $0x700] sm:$0xff]
    %v1138 = vld [vmem:[#allocation6 + $0x708] sm:$0xff]
    %v1139 = vld [vmem:[#allocation6 + $0x710] sm:$0xff]
    %v1140 = vld [vmem:[#allocation6 + $0x718] sm:$0xff]
    %v1141 = vld [vmem:[#allocation6 + $0x720] sm:$0xff]
    %v1142 = vld [vmem:[#allocation6 + $0x728] sm:$0xff]
    %v1143 = vld [vmem:[#allocation6 + $0x730] sm:$0xff]
    %v1144 = vld [vmem:[#allocation6 + $0x738] sm:$0xff]
    %v1145 = vld [vmem:[#allocation6 + $0x740] sm:$0xff]
    %v1146 = vld [vmem:[#allocation6 + $0x748] sm:$0xff]
    %v1147 = vld [vmem:[#allocation6 + $0x750] sm:$0xff]
    %v1148 = vld [vmem:[#allocation6 + $0x758] sm:$0xff]
    %v1149 = vld [vmem:[#allocation6 + $0x760] sm:$0xff]
    %v1150 = vld [vmem:[#allocation6 + $0x768] sm:$0xff]
    %v1151 = vld [vmem:[#allocation6 + $0x770] sm:$0xff]
    %v1152 = vld [vmem:[#allocation6 + $0x778] sm:$0xff]
    %v1153 = vld [vmem:[#allocation6 + $0x780] sm:$0xff]
    %v1154 = vld [vmem:[#allocation6 + $0x788] sm:$0xff]
    %v1155 = vld [vmem:[#allocation6 + $0x790] sm:$0xff]
    %v1156 = vld [vmem:[#allocation6 + $0x798] sm:$0xff]
    %v1157 = vld [vmem:[#allocation6 + $0x7a0] sm:$0xff]
    %v1158 = vld [vmem:[#allocation6 + $0x7a8] sm:$0xff]
    %v1159 = vld [vmem:[#allocation6 + $0x7b0] sm:$0xff]
    %v1160 = vld [vmem:[#allocation6 + $0x7b8] sm:$0xff]
    %v1161 = vld [vmem:[#allocation6 + $0x7c0] sm:$0xff]
    %v1162 = vld [vmem:[#allocation6 + $0x7c8] sm:$0xff]
    %v1163 = vld [vmem:[#allocation6 + $0x7d0] sm:$0xff]
    %v1164 = vld [vmem:[#allocation6 + $0x7d8] sm:$0xff]
    %v1165 = vld [vmem:[#allocation6 + $0x7e0] sm:$0xff]
    %v1166 = vld [vmem:[#allocation6 + $0x7e8] sm:$0xff]
    %v1167 = vld [vmem:[#allocation6 + $0x7f0] sm:$0xff]
    %v1168 = vld [vmem:[#allocation6 + $0x7f8] sm:$0xff]
    %1169 = vmatprep.subr.mxu0 %v974
    %1170 = vmatpush1.msra.mxu0 %v973
    %1171 = vmatprep.subr.mxu0 %v970
    %1172 = vmatpush1.msra.mxu0 %v969
    %1173 = vmatprep.subr.mxu0 %v966
    %1174 = vmatpush1.msra.mxu0 %v965
    %1175 = vmatprep.subr.mxu0 %v962
    %1176 = vmatpush1.msra.mxu0 %v961
    %1177 = vmatprep.subr.mxu0 %v958
    %1178 = vmatpush1.msra.mxu0 %v957
    %1179 = vmatprep.subr.mxu0 %v954
    %1180 = vmatpush1.msra.mxu0 %v953
    %1181 = vmatprep.subr.mxu0 %v950
    %1182 = vmatpush1.msra.mxu0 %v949
    %1183 = vmatprep.subr.mxu0 %v946
    %1184 = vmatpush1.msra.mxu0 %v945
    %1185 = vmatprep.subr.mxu0 %v942
    %1186 = vmatpush1.msra.mxu0 %v941
    %1187 = vmatprep.subr.mxu0 %v938
    %1188 = vmatpush1.msra.mxu0 %v937
    %1189 = vmatprep.subr.mxu0 %v934
    %1190 = vmatpush1.msra.mxu0 %v933
    %1191 = vmatprep.subr.mxu0 %v930
    %1192 = vmatpush1.msra.mxu0 %v929
    %1193 = vmatprep.subr.mxu0 %v926
    %1194 = vmatpush1.msra.mxu0 %v925
    %1195 = vmatprep.subr.mxu0 %v922
    %1196 = vmatpush1.msra.mxu0 %v921
    %1197 = vmatprep.subr.mxu0 %v918
    %1198 = vmatpush1.msra.mxu0 %v917
    %1199 = vmatprep.subr.mxu0 %v914
    %1200 = vmatpush1.msra.mxu0 %v913
    %1201 = vmatprep.subr.mxu0 %v1038
    %1202 = vmatpush2.msra.mxu0 %v1037
    %1203 = vmatprep.subr.mxu0 %v1034
    %1204 = vmatpush2.msra.mxu0 %v1033
    %1205 = vmatprep.subr.mxu0 %v1030
    %1206 = vmatpush2.msra.mxu0 %v1029
    %1207 = vmatprep.subr.mxu0 %v1026
    %1208 = vmatpush2.msra.mxu0 %v1025
    %1209 = vmatprep.subr.mxu0 %v1022
    %1210 = vmatpush2.msra.mxu0 %v1021
    %1211 = vmatprep.subr.mxu0 %v1018
    %1212 = vmatpush2.msra.mxu0 %v1017
    %1213 = vmatprep.subr.mxu0 %v1014
    %1214 = vmatpush2.msra.mxu0 %v1013
    %1215 = vmatprep.subr.mxu0 %v1010
    %1216 = vmatpush2.msra.mxu0 %v1009
    %1217 = vmatprep.subr.mxu0 %v1006
    %1218 = vmatpush2.msra.mxu0 %v1005
    %1219 = vmatprep.subr.mxu0 %v1002
    %1220 = vmatpush2.msra.mxu0 %v1001
    %1221 = vmatprep.subr.mxu0 %v998
    %1222 = vmatpush2.msra.mxu0 %v997
    %1223 = vmatprep.subr.mxu0 %v994
    %1224 = vmatpush2.msra.mxu0 %v993
    %1225 = vmatprep.subr.mxu0 %v990
    %1226 = vmatpush2.msra.mxu0 %v989
    %1227 = vmatprep.subr.mxu0 %v986
    %1228 = vmatpush2.msra.mxu0 %v985
    %1229 = vmatprep.subr.mxu0 %v982
    %1230 = vmatpush2.msra.mxu0 %v981
    %1231 = vmatprep.subr.mxu0 %v978
    %1232 = vmatpush2.msra.mxu0 %v977
    %1233 = vmatprep.mubr.f32.mxu0 %v910
    %1234 = vmatmul.mubr.f32.gmra.mxu0 %v909
    %v1235 = vpop.f32.mrf.mxu0
    %v1236 = vadd.f32 0.0, %v1235
    %v1237 = vpop.f32.mrf.mxu0
    %v1238 = vadd.f32 0.0, %v1237
    %1239 = vdwg.mxu0
    %1240 = vmatprep.subr.mxu0 %v1102
    %1241 = vmatpush1.msra.mxu0 %v1101
    %1242 = vmatprep.subr.mxu0 %v1098
    %1243 = vmatpush1.msra.mxu0 %v1097
    %1244 = vmatprep.subr.mxu0 %v1094
    %1245 = vmatpush1.msra.mxu0 %v1093
    %1246 = vmatprep.subr.mxu0 %v1090
    %1247 = vmatpush1.msra.mxu0 %v1089
    %1248 = vmatprep.subr.mxu0 %v1086
    %1249 = vmatpush1.msra.mxu0 %v1085
    %1250 = vmatprep.subr.mxu0 %v1082
    %1251 = vmatpush1.msra.mxu0 %v1081
    %1252 = vmatprep.subr.mxu0 %v1078
    %1253 = vmatpush1.msra.mxu0 %v1077
    %1254 = vmatprep.subr.mxu0 %v1074
    %1255 = vmatpush1.msra.mxu0 %v1073
    %1256 = vmatprep.subr.mxu0 %v1070
    %1257 = vmatpush1.msra.mxu0 %v1069
    %1258 = vmatprep.subr.mxu0 %v1066
    %1259 = vmatpush1.msra.mxu0 %v1065
    %1260 = vmatprep.subr.mxu0 %v1062
    %1261 = vmatpush1.msra.mxu0 %v1061
    %1262 = vmatprep.subr.mxu0 %v1058
    %1263 = vmatpush1.msra.mxu0 %v1057
    %1264 = vmatprep.subr.mxu0 %v1054
    %1265 = vmatpush1.msra.mxu0 %v1053
    %1266 = vmatprep.subr.mxu0 %v1050
    %1267 = vmatpush1.msra.mxu0 %v1049
    %1268 = vmatprep.subr.mxu0 %v1046
    %1269 = vmatpush1.msra.mxu0 %v1045
    %1270 = vmatprep.subr.mxu0 %v1042
    %1271 = vmatpush1.msra.mxu0 %v1041
    %1272 = vmatprep.subr.mxu0 %v1166
    %1273 = vmatpush2.msra.mxu0 %v1165
    %1274 = vmatprep.subr.mxu0 %v1162
    %1275 = vmatpush2.msra.mxu0 %v1161
    %1276 = vmatprep.subr.mxu0 %v1158
    %1277 = vmatpush2.msra.mxu0 %v1157
    %1278 = vmatprep.subr.mxu0 %v1154
    %1279 = vmatpush2.msra.mxu0 %v1153
    %1280 = vmatprep.subr.mxu0 %v1150
    %1281 = vmatpush2.msra.mxu0 %v1149
    %1282 = vmatprep.subr.mxu0 %v1146
    %1283 = vmatpush2.msra.mxu0 %v1145
    %1284 = vmatprep.subr.mxu0 %v1142
    %1285 = vmatpush2.msra.mxu0 %v1141
    %1286 = vmatprep.subr.mxu0 %v1138
    %1287 = vmatpush2.msra.mxu0 %v1137
    %1288 = vmatprep.subr.mxu0 %v1134
    %1289 = vmatpush2.msra.mxu0 %v1133
    %1290 = vmatprep.subr.mxu0 %v1130
    %1291 = vmatpush2.msra.mxu0 %v1129
    %1292 = vmatprep.subr.mxu0 %v1126
    %1293 = vmatpush2.msra.mxu0 %v1125
    %1294 = vmatprep.subr.mxu0 %v1122
    %1295 = vmatpush2.msra.mxu0 %v1121
    %1296 = vmatprep.subr.mxu0 %v1118
    %1297 = vmatpush2.msra.mxu0 %v1117
    %1298 = vmatprep.subr.mxu0 %v1114
    %1299 = vmatpush2.msra.mxu0 %v1113
    %1300 = vmatprep.subr.mxu0 %v1110
    %1301 = vmatpush2.msra.mxu0 %v1109
    %1302 = vmatprep.subr.mxu0 %v1106
    %1303 = vmatpush2.msra.mxu0 %v1105
    %1304 = vmatprep.mubr.f32.mxu0 %v912
    %1305 = vmatmul.mubr.f32.gmra.mxu0 %v911
    %v1306 = vpop.f32.mrf.mxu0
    %v1307 = vadd.f32 %v1236, %v1306
    %v1308 = vpop.f32.mrf.mxu0
    %v1309 = vadd.f32 %v1238, %v1308
    %1310 = vdwg.mxu0
    %1311 = vmatprep.subr.mxu0 %v976
    %1312 = vmatpush1.msra.mxu0 %v975
    %1313 = vmatprep.subr.mxu0 %v972
    %1314 = vmatpush1.msra.mxu0 %v971
    %1315 = vmatprep.subr.mxu0 %v968
    %1316 = vmatpush1.msra.mxu0 %v967
    %1317 = vmatprep.subr.mxu0 %v964
    %1318 = vmatpush1.msra.mxu0 %v963
    %1319 = vmatprep.subr.mxu0 %v960
    %1320 = vmatpush1.msra.mxu0 %v959
    %1321 = vmatprep.subr.mxu0 %v956
    %1322 = vmatpush1.msra.mxu0 %v955
    %1323 = vmatprep.subr.mxu0 %v952
    %1324 = vmatpush1.msra.mxu0 %v951
    %1325 = vmatprep.subr.mxu0 %v948
    %1326 = vmatpush1.msra.mxu0 %v947
    %1327 = vmatprep.subr.mxu0 %v944
    %1328 = vmatpush1.msra.mxu0 %v943
    %1329 = vmatprep.subr.mxu0 %v940
    %1330 = vmatpush1.msra.mxu0 %v939
    %1331 = vmatprep.subr.mxu0 %v936
    %1332 = vmatpush1.msra.mxu0 %v935
    %1333 = vmatprep.subr.mxu0 %v932
    %1334 = vmatpush1.msra.mxu0 %v931
    %1335 = vmatprep.subr.mxu0 %v928
    %1336 = vmatpush1.msra.mxu0 %v927
    %1337 = vmatprep.subr.mxu0 %v924
    %1338 = vmatpush1.msra.mxu0 %v923
    %1339 = vmatprep.subr.mxu0 %v920
    %1340 = vmatpush1.msra.mxu0 %v919
    %1341 = vmatprep.subr.mxu0 %v916
    %1342 = vmatpush1.msra.mxu0 %v915
    %1343 = vmatprep.subr.mxu0 %v1040
    %1344 = vmatpush2.msra.mxu0 %v1039
    %1345 = vmatprep.subr.mxu0 %v1036
    %1346 = vmatpush2.msra.mxu0 %v1035
    %1347 = vmatprep.subr.mxu0 %v1032
    %1348 = vmatpush2.msra.mxu0 %v1031
    %1349 = vmatprep.subr.mxu0 %v1028
    %1350 = vmatpush2.msra.mxu0 %v1027
    %1351 = vmatprep.subr.mxu0 %v1024
    %1352 = vmatpush2.msra.mxu0 %v1023
    %1353 = vmatprep.subr.mxu0 %v1020
    %1354 = vmatpush2.msra.mxu0 %v1019
    %1355 = vmatprep.subr.mxu0 %v1016
    %1356 = vmatpush2.msra.mxu0 %v1015
    %1357 = vmatprep.subr.mxu0 %v1012
    %1358 = vmatpush2.msra.mxu0 %v1011
    %1359 = vmatprep.subr.mxu0 %v1008
    %1360 = vmatpush2.msra.mxu0 %v1007
    %1361 = vmatprep.subr.mxu0 %v1004
    %1362 = vmatpush2.msra.mxu0 %v1003
    %1363 = vmatprep.subr.mxu0 %v1000
    %1364 = vmatpush2.msra.mxu0 %v999
    %1365 = vmatprep.subr.mxu0 %v996
    %1366 = vmatpush2.msra.mxu0 %v995
    %1367 = vmatprep.subr.mxu0 %v992
    %1368 = vmatpush2.msra.mxu0 %v991
    %1369 = vmatprep.subr.mxu0 %v988
    %1370 = vmatpush2.msra.mxu0 %v987
    %1371 = vmatprep.subr.mxu0 %v984
    %1372 = vmatpush2.msra.mxu0 %v983
    %1373 = vmatprep.subr.mxu0 %v980
    %1374 = vmatpush2.msra.mxu0 %v979
    %1375 = vmatprep.mubr.f32.mxu0 %v910
    %1376 = vmatmul.mubr.f32.gmra.mxu0 %v909
    %v1377 = vpop.f32.mrf.mxu0
    %v1378 = vadd.f32 0.0, %v1377
    %v1379 = vpop.f32.mrf.mxu0
    %v1380 = vadd.f32 0.0, %v1379
    %1381 = vdwg.mxu0
    %1382 = vmatprep.subr.mxu0 %v1104
    %1383 = vmatpush1.msra.mxu0 %v1103
    %1384 = vmatprep.subr.mxu0 %v1100
    %1385 = vmatpush1.msra.mxu0 %v1099
    %1386 = vmatprep.subr.mxu0 %v1096
    %1387 = vmatpush1.msra.mxu0 %v1095
    %1388 = vmatprep.subr.mxu0 %v1092
    %1389 = vmatpush1.msra.mxu0 %v1091
    %1390 = vmatprep.subr.mxu0 %v1088
    %1391 = vmatpush1.msra.mxu0 %v1087
    %1392 = vmatprep.subr.mxu0 %v1084
    %1393 = vmatpush1.msra.mxu0 %v1083
    %1394 = vmatprep.subr.mxu0 %v1080
    %1395 = vmatpush1.msra.mxu0 %v1079
    %1396 = vmatprep.subr.mxu0 %v1076
    %1397 = vmatpush1.msra.mxu0 %v1075
    %1398 = vmatprep.subr.mxu0 %v1072
    %1399 = vmatpush1.msra.mxu0 %v1071
    %1400 = vmatprep.subr.mxu0 %v1068
    %1401 = vmatpush1.msra.mxu0 %v1067
    %1402 = vmatprep.subr.mxu0 %v1064
    %1403 = vmatpush1.msra.mxu0 %v1063
    %1404 = vmatprep.subr.mxu0 %v1060
    %1405 = vmatpush1.msra.mxu0 %v1059
    %1406 = vmatprep.subr.mxu0 %v1056
    %1407 = vmatpush1.msra.mxu0 %v1055
    %1408 = vmatprep.subr.mxu0 %v1052
    %1409 = vmatpush1.msra.mxu0 %v1051
    %1410 = vmatprep.subr.mxu0 %v1048
    %1411 = vmatpush1.msra.mxu0 %v1047
    %1412 = vmatprep.subr.mxu0 %v1044
    %1413 = vmatpush1.msra.mxu0 %v1043
    %1414 = vmatprep.subr.mxu0 %v1168
    %1415 = vmatpush2.msra.mxu0 %v1167
    %1416 = vmatprep.subr.mxu0 %v1164
    %1417 = vmatpush2.msra.mxu0 %v1163
    %1418 = vmatprep.subr.mxu0 %v1160
    %1419 = vmatpush2.msra.mxu0 %v1159
    %1420 = vmatprep.subr.mxu0 %v1156
    %1421 = vmatpush2.msra.mxu0 %v1155
    %1422 = vmatprep.subr.mxu0 %v1152
    %1423 = vmatpush2.msra.mxu0 %v1151
    %1424 = vmatprep.subr.mxu0 %v1148
    %1425 = vmatpush2.msra.mxu0 %v1147
    %1426 = vmatprep.subr.mxu0 %v1144
    %1427 = vmatpush2.msra.mxu0 %v1143
    %1428 = vmatprep.subr.mxu0 %v1140
    %1429 = vmatpush2.msra.mxu0 %v1139
    %1430 = vmatprep.subr.mxu0 %v1136
    %1431 = vmatpush2.msra.mxu0 %v1135
    %1432 = vmatprep.subr.mxu0 %v1132
    %1433 = vmatpush2.msra.mxu0 %v1131
    %1434 = vmatprep.subr.mxu0 %v1128
    %1435 = vmatpush2.msra.mxu0 %v1127
    %1436 = vmatprep.subr.mxu0 %v1124
    %1437 = vmatpush2.msra.mxu0 %v1123
    %1438 = vmatprep.subr.mxu0 %v1120
    %1439 = vmatpush2.msra.mxu0 %v1119
    %1440 = vmatprep.subr.mxu0 %v1116
    %1441 = vmatpush2.msra.mxu0 %v1115
    %1442 = vmatprep.subr.mxu0 %v1112
    %1443 = vmatpush2.msra.mxu0 %v1111
    %1444 = vmatprep.subr.mxu0 %v1108
    %1445 = vmatpush2.msra.mxu0 %v1107
    %1446 = vmatprep.mubr.f32.mxu0 %v912
    %1447 = vmatmul.mubr.f32.gmra.mxu0 %v911
    %v1448 = vpop.f32.mrf.mxu0
    %v1449 = vadd.f32 %v1378, %v1448
    %v1450 = vpop.f32.mrf.mxu0
    %v1451 = vadd.f32 %v1380, %v1450
    %1452 = vdwg.mxu0
    %v1453 = vadd.f32 %v763, %v1307
    %v1454 = vadd.f32 %v765, %v1309
    %v1455 = vadd.f32 %v905, %v1449
    %v1456 = vadd.f32 %v907, %v1451
    %v1457 = vld [vmem:[%s7] sm:$0xf]
    %v1459 = vlaneseq
    %v1460 = vshrl.u32 %v1459, 7
    %v1461 = vsub.s32 0, %v1460
    %v1462 = vrot.slane %v1457, %v1461
    %v1463 = vlaneseq
    %v1464 = vshrl.u32 %v1463, 7
    %v1465 = vsub.s32 1, %v1464
    %v1466 = vrot.slane %v1457, %v1465
    %v1467 = vlaneseq
    %v1468 = vshrl.u32 %v1467, 7
    %v1469 = vsub.s32 2, %v1468
    %v1470 = vrot.slane %v1457, %v1469
    %v1471 = vlaneseq
    %v1472 = vshrl.u32 %v1471, 7
    %v1473 = vsub.s32 3, %v1472
    %v1474 = vrot.slane %v1457, %v1473
    %v1479 = vadd.f32 %v1453, %v1462
    %v1480 = vadd.f32 %v1454, %v1466
    %v1481 = vadd.f32 %v1455, %v1470
    %v1482 = vadd.f32 %v1456, %v1474
    %v1483 = vxor.u32 %v1479, 2147483648
    %v1484 = vxor.u32 %v1480, 2147483648
    %v1485 = vxor.u32 %v1481, 2147483648
    %v1486 = vxor.u32 %v1482, 2147483648
    %v1487 = vmul.f32 %v1483, 1.442695
    %v1488 = vpow.pop %v1487
    %v1489 = vmul.f32 %v1484, 1.442695
    %v1490 = vpow.pop %v1489
    %v1491 = vmul.f32 %v1485, 1.442695
    %v1492 = vpow.pop %v1491
    %v1493 = vmul.f32 %v1486, 1.442695
    %v1494 = vpow.pop %v1493
    %v1495 = vadd.f32 %v1488, 1.0
    %v1496 = vadd.f32 %v1490, 1.0
    %v1497 = vadd.f32 %v1492, 1.0
    %v1498 = vadd.f32 %v1494, 1.0
    %v1499 = vrcp.pop %v1495
    %v1500 = vmul.f32 1.0, %v1499
    %v1501 = vrcp.pop %v1496
    %v1502 = vmul.f32 1.0, %v1501
    %v1503 = vrcp.pop %v1497
    %v1504 = vmul.f32 1.0, %v1503
    %v1505 = vrcp.pop %v1498
    %v1506 = vmul.f32 1.0, %v1505
    %v1507 = vmul.f32 %v1479, %v1500
    %v1508 = vmul.f32 %v1480, %v1502
    %v1509 = vmul.f32 %v1481, %v1504
    %v1510 = vmul.f32 %v1482, %v1506
    %v1511 = vld [vmem:[#allocation7] sm:$0xff]
    %v1512 = vld [vmem:[#allocation7 + $0x8] sm:$0xff]
    %v1513 = vld [vmem:[#allocation7 + $0x10] sm:$0xff]
    %v1514 = vld [vmem:[#allocation7 + $0x18] sm:$0xff]
    %v1515 = vld [vmem:[#allocation7 + $0x20] sm:$0xff]
    %v1516 = vld [vmem:[#allocation7 + $0x28] sm:$0xff]
    %v1517 = vld [vmem:[#allocation7 + $0x30] sm:$0xff]
    %v1518 = vld [vmem:[#allocation7 + $0x38] sm:$0xff]
    %v1519 = vld [vmem:[#allocation7 + $0x40] sm:$0xff]
    %v1520 = vld [vmem:[#allocation7 + $0x48] sm:$0xff]
    %v1521 = vld [vmem:[#allocation7 + $0x50] sm:$0xff]
    %v1522 = vld [vmem:[#allocation7 + $0x58] sm:$0xff]
    %v1523 = vld [vmem:[#allocation7 + $0x60] sm:$0xff]
    %v1524 = vld [vmem:[#allocation7 + $0x68] sm:$0xff]
    %v1525 = vld [vmem:[#allocation7 + $0x70] sm:$0xff]
    %v1526 = vld [vmem:[#allocation7 + $0x78] sm:$0xff]
    %v1527 = vld [vmem:[#allocation7 + $0x80] sm:$0xff]
    %v1528 = vld [vmem:[#allocation7 + $0x88] sm:$0xff]
    %v1529 = vld [vmem:[#allocation7 + $0x90] sm:$0xff]
    %v1530 = vld [vmem:[#allocation7 + $0x98] sm:$0xff]
    %v1531 = vld [vmem:[#allocation7 + $0xa0] sm:$0xff]
    %v1532 = vld [vmem:[#allocation7 + $0xa8] sm:$0xff]
    %v1533 = vld [vmem:[#allocation7 + $0xb0] sm:$0xff]
    %v1534 = vld [vmem:[#allocation7 + $0xb8] sm:$0xff]
    %v1535 = vld [vmem:[#allocation7 + $0xc0] sm:$0xff]
    %v1536 = vld [vmem:[#allocation7 + $0xc8] sm:$0xff]
    %v1537 = vld [vmem:[#allocation7 + $0xd0] sm:$0xff]
    %v1538 = vld [vmem:[#allocation7 + $0xd8] sm:$0xff]
    %v1539 = vld [vmem:[#allocation7 + $0xe0] sm:$0xff]
    %v1540 = vld [vmem:[#allocation7 + $0xe8] sm:$0xff]
    %v1541 = vld [vmem:[#allocation7 + $0xf0] sm:$0xff]
    %v1542 = vld [vmem:[#allocation7 + $0xf8] sm:$0xff]
    %v1543 = vld [vmem:[#allocation7 + $0x100] sm:$0xff]
    %v1544 = vld [vmem:[#allocation7 + $0x108] sm:$0xff]
    %v1545 = vld [vmem:[#allocation7 + $0x110] sm:$0xff]
    %v1546 = vld [vmem:[#allocation7 + $0x118] sm:$0xff]
    %v1547 = vld [vmem:[#allocation7 + $0x120] sm:$0xff]
    %v1548 = vld [vmem:[#allocation7 + $0x128] sm:$0xff]
    %v1549 = vld [vmem:[#allocation7 + $0x130] sm:$0xff]
    %v1550 = vld [vmem:[#allocation7 + $0x138] sm:$0xff]
    %v1551 = vld [vmem:[#allocation7 + $0x140] sm:$0xff]
    %v1552 = vld [vmem:[#allocation7 + $0x148] sm:$0xff]
    %v1553 = vld [vmem:[#allocation7 + $0x150] sm:$0xff]
    %v1554 = vld [vmem:[#allocation7 + $0x158] sm:$0xff]
    %v1555 = vld [vmem:[#allocation7 + $0x160] sm:$0xff]
    %v1556 = vld [vmem:[#allocation7 + $0x168] sm:$0xff]
    %v1557 = vld [vmem:[#allocation7 + $0x170] sm:$0xff]
    %v1558 = vld [vmem:[#allocation7 + $0x178] sm:$0xff]
    %v1559 = vld [vmem:[#allocation7 + $0x180] sm:$0xff]
    %v1560 = vld [vmem:[#allocation7 + $0x188] sm:$0xff]
    %v1561 = vld [vmem:[#allocation7 + $0x190] sm:$0xff]
    %v1562 = vld [vmem:[#allocation7 + $0x198] sm:$0xff]
    %v1563 = vld [vmem:[#allocation7 + $0x1a0] sm:$0xff]
    %v1564 = vld [vmem:[#allocation7 + $0x1a8] sm:$0xff]
    %v1565 = vld [vmem:[#allocation7 + $0x1b0] sm:$0xff]
    %v1566 = vld [vmem:[#allocation7 + $0x1b8] sm:$0xff]
    %v1567 = vld [vmem:[#allocation7 + $0x1c0] sm:$0xff]
    %v1568 = vld [vmem:[#allocation7 + $0x1c8] sm:$0xff]
    %v1569 = vld [vmem:[#allocation7 + $0x1d0] sm:$0xff]
    %v1570 = vld [vmem:[#allocation7 + $0x1d8] sm:$0xff]
    %v1571 = vld [vmem:[#allocation7 + $0x1e0] sm:$0xff]
    %v1572 = vld [vmem:[#allocation7 + $0x1e8] sm:$0xff]
    %v1573 = vld [vmem:[#allocation7 + $0x1f0] sm:$0xff]
    %v1574 = vld [vmem:[#allocation7 + $0x1f8] sm:$0xff]
    %v1575 = vld [vmem:[#allocation7 + $0x200] sm:$0xff]
    %v1576 = vld [vmem:[#allocation7 + $0x208] sm:$0xff]
    %v1577 = vld [vmem:[#allocation7 + $0x210] sm:$0xff]
    %v1578 = vld [vmem:[#allocation7 + $0x218] sm:$0xff]
    %v1579 = vld [vmem:[#allocation7 + $0x220] sm:$0xff]
    %v1580 = vld [vmem:[#allocation7 + $0x228] sm:$0xff]
    %v1581 = vld [vmem:[#allocation7 + $0x230] sm:$0xff]
    %v1582 = vld [vmem:[#allocation7 + $0x238] sm:$0xff]
    %v1583 = vld [vmem:[#allocation7 + $0x240] sm:$0xff]
    %v1584 = vld [vmem:[#allocation7 + $0x248] sm:$0xff]
    %v1585 = vld [vmem:[#allocation7 + $0x250] sm:$0xff]
    %v1586 = vld [vmem:[#allocation7 + $0x258] sm:$0xff]
    %v1587 = vld [vmem:[#allocation7 + $0x260] sm:$0xff]
    %v1588 = vld [vmem:[#allocation7 + $0x268] sm:$0xff]
    %v1589 = vld [vmem:[#allocation7 + $0x270] sm:$0xff]
    %v1590 = vld [vmem:[#allocation7 + $0x278] sm:$0xff]
    %v1591 = vld [vmem:[#allocation7 + $0x280] sm:$0xff]
    %v1592 = vld [vmem:[#allocation7 + $0x288] sm:$0xff]
    %v1593 = vld [vmem:[#allocation7 + $0x290] sm:$0xff]
    %v1594 = vld [vmem:[#allocation7 + $0x298] sm:$0xff]
    %v1595 = vld [vmem:[#allocation7 + $0x2a0] sm:$0xff]
    %v1596 = vld [vmem:[#allocation7 + $0x2a8] sm:$0xff]
    %v1597 = vld [vmem:[#allocation7 + $0x2b0] sm:$0xff]
    %v1598 = vld [vmem:[#allocation7 + $0x2b8] sm:$0xff]
    %v1599 = vld [vmem:[#allocation7 + $0x2c0] sm:$0xff]
    %v1600 = vld [vmem:[#allocation7 + $0x2c8] sm:$0xff]
    %v1601 = vld [vmem:[#allocation7 + $0x2d0] sm:$0xff]
    %v1602 = vld [vmem:[#allocation7 + $0x2d8] sm:$0xff]
    %v1603 = vld [vmem:[#allocation7 + $0x2e0] sm:$0xff]
    %v1604 = vld [vmem:[#allocation7 + $0x2e8] sm:$0xff]
    %v1605 = vld [vmem:[#allocation7 + $0x2f0] sm:$0xff]
    %v1606 = vld [vmem:[#allocation7 + $0x2f8] sm:$0xff]
    %v1607 = vld [vmem:[#allocation7 + $0x300] sm:$0xff]
    %v1608 = vld [vmem:[#allocation7 + $0x308] sm:$0xff]
    %v1609 = vld [vmem:[#allocation7 + $0x310] sm:$0xff]
    %v1610 = vld [vmem:[#allocation7 + $0x318] sm:$0xff]
    %v1611 = vld [vmem:[#allocation7 + $0x320] sm:$0xff]
    %v1612 = vld [vmem:[#allocation7 + $0x328] sm:$0xff]
    %v1613 = vld [vmem:[#allocation7 + $0x330] sm:$0xff]
    %v1614 = vld [vmem:[#allocation7 + $0x338] sm:$0xff]
    %v1615 = vld [vmem:[#allocation7 + $0x340] sm:$0xff]
    %v1616 = vld [vmem:[#allocation7 + $0x348] sm:$0xff]
    %v1617 = vld [vmem:[#allocation7 + $0x350] sm:$0xff]
    %v1618 = vld [vmem:[#allocation7 + $0x358] sm:$0xff]
    %v1619 = vld [vmem:[#allocation7 + $0x360] sm:$0xff]
    %v1620 = vld [vmem:[#allocation7 + $0x368] sm:$0xff]
    %v1621 = vld [vmem:[#allocation7 + $0x370] sm:$0xff]
    %v1622 = vld [vmem:[#allocation7 + $0x378] sm:$0xff]
    %v1623 = vld [vmem:[#allocation7 + $0x380] sm:$0xff]
    %v1624 = vld [vmem:[#allocation7 + $0x388] sm:$0xff]
    %v1625 = vld [vmem:[#allocation7 + $0x390] sm:$0xff]
    %v1626 = vld [vmem:[#allocation7 + $0x398] sm:$0xff]
    %v1627 = vld [vmem:[#allocation7 + $0x3a0] sm:$0xff]
    %v1628 = vld [vmem:[#allocation7 + $0x3a8] sm:$0xff]
    %v1629 = vld [vmem:[#allocation7 + $0x3b0] sm:$0xff]
    %v1630 = vld [vmem:[#allocation7 + $0x3b8] sm:$0xff]
    %v1631 = vld [vmem:[#allocation7 + $0x3c0] sm:$0xff]
    %v1632 = vld [vmem:[#allocation7 + $0x3c8] sm:$0xff]
    %v1633 = vld [vmem:[#allocation7 + $0x3d0] sm:$0xff]
    %v1634 = vld [vmem:[#allocation7 + $0x3d8] sm:$0xff]
    %v1635 = vld [vmem:[#allocation7 + $0x3e0] sm:$0xff]
    %v1636 = vld [vmem:[#allocation7 + $0x3e8] sm:$0xff]
    %v1637 = vld [vmem:[#allocation7 + $0x3f0] sm:$0xff]
    %v1638 = vld [vmem:[#allocation7 + $0x3f8] sm:$0xff]
    %v1639 = vld [vmem:[%s9] sm:$0x3]
    %v1641 = vlaneseq
    %v1642 = vshrl.u32 %v1641, 7
    %v1643 = vsub.s32 0, %v1642
    %v1644 = vrot.slane %v1639, %v1643
    %v1645 = vlaneseq
    %v1646 = vshrl.u32 %v1645, 7
    %v1647 = vsub.s32 1, %v1646
    %v1648 = vrot.slane %v1639, %v1647
    %1651 = vmatprep.subr.mxu0 %v1542
    %1652 = vmatpush1.msra.mxu0 %v1541
    %1653 = vmatprep.subr.mxu0 %v1540
    %1654 = vmatpush1.msra.mxu0 %v1539
    %1655 = vmatprep.subr.mxu0 %v1538
    %1656 = vmatpush1.msra.mxu0 %v1537
    %1657 = vmatprep.subr.mxu0 %v1536
    %1658 = vmatpush1.msra.mxu0 %v1535
    %1659 = vmatprep.subr.mxu0 %v1534
    %1660 = vmatpush1.msra.mxu0 %v1533
    %1661 = vmatprep.subr.mxu0 %v1532
    %1662 = vmatpush1.msra.mxu0 %v1531
    %1663 = vmatprep.subr.mxu0 %v1530
    %1664 = vmatpush1.msra.mxu0 %v1529
    %1665 = vmatprep.subr.mxu0 %v1528
    %1666 = vmatpush1.msra.mxu0 %v1527
    %1667 = vmatprep.subr.mxu0 %v1526
    %1668 = vmatpush1.msra.mxu0 %v1525
    %1669 = vmatprep.subr.mxu0 %v1524
    %1670 = vmatpush1.msra.mxu0 %v1523
    %1671 = vmatprep.subr.mxu0 %v1522
    %1672 = vmatpush1.msra.mxu0 %v1521
    %1673 = vmatprep.subr.mxu0 %v1520
    %1674 = vmatpush1.msra.mxu0 %v1519
    %1675 = vmatprep.subr.mxu0 %v1518
    %1676 = vmatpush1.msra.mxu0 %v1517
    %1677 = vmatprep.subr.mxu0 %v1516
    %1678 = vmatpush1.msra.mxu0 %v1515
    %1679 = vmatprep.subr.mxu0 %v1514
    %1680 = vmatpush1.msra.mxu0 %v1513
    %1681 = vmatprep.subr.mxu0 %v1512
    %1682 = vmatpush1.msra.mxu0 %v1511
    %1683 = vmatprep.subr.mxu0 %v1574
    %1684 = vmatpush2.msra.mxu0 %v1573
    %1685 = vmatprep.subr.mxu0 %v1572
    %1686 = vmatpush2.msra.mxu0 %v1571
    %1687 = vmatprep.subr.mxu0 %v1570
    %1688 = vmatpush2.msra.mxu0 %v1569
    %1689 = vmatprep.subr.mxu0 %v1568
    %1690 = vmatpush2.msra.mxu0 %v1567
    %1691 = vmatprep.subr.mxu0 %v1566
    %1692 = vmatpush2.msra.mxu0 %v1565
    %1693 = vmatprep.subr.mxu0 %v1564
    %1694 = vmatpush2.msra.mxu0 %v1563
    %1695 = vmatprep.subr.mxu0 %v1562
    %1696 = vmatpush2.msra.mxu0 %v1561
    %1697 = vmatprep.subr.mxu0 %v1560
    %1698 = vmatpush2.msra.mxu0 %v1559
    %1699 = vmatprep.subr.mxu0 %v1558
    %1700 = vmatpush2.msra.mxu0 %v1557
    %1701 = vmatprep.subr.mxu0 %v1556
    %1702 = vmatpush2.msra.mxu0 %v1555
    %1703 = vmatprep.subr.mxu0 %v1554
    %1704 = vmatpush2.msra.mxu0 %v1553
    %1705 = vmatprep.subr.mxu0 %v1552
    %1706 = vmatpush2.msra.mxu0 %v1551
    %1707 = vmatprep.subr.mxu0 %v1550
    %1708 = vmatpush2.msra.mxu0 %v1549
    %1709 = vmatprep.subr.mxu0 %v1548
    %1710 = vmatpush2.msra.mxu0 %v1547
    %1711 = vmatprep.subr.mxu0 %v1546
    %1712 = vmatpush2.msra.mxu0 %v1545
    %1713 = vmatprep.subr.mxu0 %v1544
    %1714 = vmatpush2.msra.mxu0 %v1543
    %1715 = vmatprep.mubr.f32.mxu0 %v1508
    %1716 = vmatmul.mubr.f32.gmra.mxu0 %v1507
    %v1717 = vpop.f32.mrf.mxu0
    %v1718 = vadd.f32 %v1644, %v1717
    %v1719 = vpop.f32.mrf.mxu0
    %v1720 = vadd.f32 %v1648, %v1719
    %1721 = vdwg.mxu0
    %1722 = vmatprep.subr.mxu0 %v1606
    %1723 = vmatpush1.msra.mxu0 %v1605
    %1724 = vmatprep.subr.mxu0 %v1604
    %1725 = vmatpush1.msra.mxu0 %v1603
    %1726 = vmatprep.subr.mxu0 %v1602
    %1727 = vmatpush1.msra.mxu0 %v1601
    %1728 = vmatprep.subr.mxu0 %v1600
    %1729 = vmatpush1.msra.mxu0 %v1599
    %1730 = vmatprep.subr.mxu0 %v1598
    %1731 = vmatpush1.msra.mxu0 %v1597
    %1732 = vmatprep.subr.mxu0 %v1596
    %1733 = vmatpush1.msra.mxu0 %v1595
    %1734 = vmatprep.subr.mxu0 %v1594
    %1735 = vmatpush1.msra.mxu0 %v1593
    %1736 = vmatprep.subr.mxu0 %v1592
    %1737 = vmatpush1.msra.mxu0 %v1591
    %1738 = vmatprep.subr.mxu0 %v1590
    %1739 = vmatpush1.msra.mxu0 %v1589
    %1740 = vmatprep.subr.mxu0 %v1588
    %1741 = vmatpush1.msra.mxu0 %v1587
    %1742 = vmatprep.subr.mxu0 %v1586
    %1743 = vmatpush1.msra.mxu0 %v1585
    %1744 = vmatprep.subr.mxu0 %v1584
    %1745 = vmatpush1.msra.mxu0 %v1583
    %1746 = vmatprep.subr.mxu0 %v1582
    %1747 = vmatpush1.msra.mxu0 %v1581
    %1748 = vmatprep.subr.mxu0 %v1580
    %1749 = vmatpush1.msra.mxu0 %v1579
    %1750 = vmatprep.subr.mxu0 %v1578
    %1751 = vmatpush1.msra.mxu0 %v1577
    %1752 = vmatprep.subr.mxu0 %v1576
    %1753 = vmatpush1.msra.mxu0 %v1575
    %1754 = vmatprep.subr.mxu0 %v1638
    %1755 = vmatpush2.msra.mxu0 %v1637
    %1756 = vmatprep.subr.mxu0 %v1636
    %1757 = vmatpush2.msra.mxu0 %v1635
    %1758 = vmatprep.subr.mxu0 %v1634
    %1759 = vmatpush2.msra.mxu0 %v1633
    %1760 = vmatprep.subr.mxu0 %v1632
    %1761 = vmatpush2.msra.mxu0 %v1631
    %1762 = vmatprep.subr.mxu0 %v1630
    %1763 = vmatpush2.msra.mxu0 %v1629
    %1764 = vmatprep.subr.mxu0 %v1628
    %1765 = vmatpush2.msra.mxu0 %v1627
    %1766 = vmatprep.subr.mxu0 %v1626
    %1767 = vmatpush2.msra.mxu0 %v1625
    %1768 = vmatprep.subr.mxu0 %v1624
    %1769 = vmatpush2.msra.mxu0 %v1623
    %1770 = vmatprep.subr.mxu0 %v1622
    %1771 = vmatpush2.msra.mxu0 %v1621
    %1772 = vmatprep.subr.mxu0 %v1620
    %1773 = vmatpush2.msra.mxu0 %v1619
    %1774 = vmatprep.subr.mxu0 %v1618
    %1775 = vmatpush2.msra.mxu0 %v1617
    %1776 = vmatprep.subr.mxu0 %v1616
    %1777 = vmatpush2.msra.mxu0 %v1615
    %1778 = vmatprep.subr.mxu0 %v1614
    %1779 = vmatpush2.msra.mxu0 %v1613
    %1780 = vmatprep.subr.mxu0 %v1612
    %1781 = vmatpush2.msra.mxu0 %v1611
    %1782 = vmatprep.subr.mxu0 %v1610
    %1783 = vmatpush2.msra.mxu0 %v1609
    %1784 = vmatprep.subr.mxu0 %v1608
    %1785 = vmatpush2.msra.mxu0 %v1607
    %1786 = vmatprep.mubr.f32.mxu0 %v1510
    %1787 = vmatmul.mubr.f32.gmra.mxu0 %v1509
    %v1788 = vpop.f32.mrf.mxu0
    %v1789 = vadd.f32 %v1718, %v1788
    %v1790 = vpop.f32.mrf.mxu0
    %v1791 = vadd.f32 %v1720, %v1790
    %1792 = vdwg.mxu0
    %1793 = vst [vmem:[%s10] sm:$0xff] %v1789
    %1794 = vst [vmem:[%s10 + $0x8] sm:$0xff] %v1791
    // Predicated region
    $region58: #{forward.2} parent=1 // pred_check
      _
    $region59: #{forward.2} parent=1 // pred_check_branch
      %1796 = sbr.rel (0) target = $region61
    $region60: #{forward.2} parent=1 // pred_region
      _
    $region61: #{forward.2} parent=1 // pred_fallthru
      _
    // Predicated region
    $region62: #{forward.2} parent=1 // pred_check
      _
    $region63: #{forward.2} parent=1 // pred_check_branch
      %1798 = sbr.rel (0) target = $region65
    $region64: #{forward.2} parent=1 // pred_region
      _
    $region65: #{forward.2} parent=1 // pred_fallthru
      _
    %1799 = vsyncpa [#allocation3], 1
    %1800 = vsyncpa [#allocation5], 1
    %1801 = vsyncpa [#allocation8], 1

</llo_original>
